<compile_context>
chip_gen: v5e
topology: v5e:2x2
jax: 0.10.0
libtpu: 0.0.40
codegen_flags: <defaults>
</compile_context>

<pallas_src>
import functools
import numpy as np
import jax
import jax.numpy as jnp
from jax.experimental import pallas as pl
from jax.experimental.pallas import tpu as pltpu

# ----------------------------- model dims -----------------------------------
NODE_ATTR_DIM = 8
EDGE_ATTR_DIM = 4      # unused in forward (matches reference)
HIDDEN_DIM = 16
H1_DIM = 16
H2_DIM = 8
HEADS = 4
BN_EPS = 1e-5


# --------------------------- the fused kernel --------------------------------
def _epi_epmp_kernel(
    # graph inputs
    ag_x_ref, a_ag_ref, ab_x_ref, a_ab_ref, bias_ref,
    # ag GCN stack (w, b, bn_gamma, bn_beta) x 2 layers
    ag_w1_ref, ag_b1_ref, ag_g1_ref, ag_be1_ref,
    ag_w2_ref, ag_b2_ref, ag_g2_ref, ag_be2_ref,
    # ab GCN stack
    ab_w1_ref, ab_b1_ref, ab_g1_ref, ab_be1_ref,
    ab_w2_ref, ab_b2_ref, ab_g2_ref, ab_be2_ref,
    # GAT1 (per-head blocks): w [H, H1, C1], att_src/att_dst/bias [H, 1, C1]
    g1w_ref, g1s_ref, g1d_ref, g1b_ref,
    # GAT2: w blocks [H_in, H_out, C1, C2], att_src/att_dst [H, 1, C2], bias [1, C2]
    g2w_ref, g2s_ref, g2d_ref, g2b_ref,
    # classifiers (W1 split into h1-rows / h2-rows)
    agc_w1a_ref, agc_w1b_ref, agc_b1_ref, agc_w2_ref, agc_b2_ref,
    abc_w1a_ref, abc_w1b_ref, abc_b1_ref, abc_w2_ref, abc_b2_ref,
    # outputs
    ag_out_ref, ag_h1_ref, ag_h2_ref, ab_out_ref, ab_h1_ref, ab_h2_ref,
    *, n_ab, heads):

    def mm(a, b):
        return jnp.dot(a, b, preferred_element_type=jnp.float32)

    # ---- GCNConv + tanh + BatchNorm1d (batch stats, biased var), fused ----
    def gcn_bn(x, a_norm, w_ref, b_ref, g_ref, beta_ref):
        h = mm(a_norm, mm(x, w_ref[...])) + b_ref[...]
        h = jnp.tanh(h)
        mean = jnp.mean(h, axis=0, keepdims=True)
        var = jnp.mean(jnp.square(h - mean), axis=0, keepdims=True)   # biased
        return g_ref[...] * (h - mean) * jax.lax.rsqrt(var + BN_EPS) + beta_ref[...]

    a_ag = a_ag_ref[...]
    a_ab = a_ab_ref[...]
    ag_h1 = gcn_bn(ag_x_ref[...], a_ag, ag_w1_ref, ag_b1_ref, ag_g1_ref, ag_be1_ref)
    ag_h1 = gcn_bn(ag_h1,        a_ag, ag_w2_ref, ag_b2_ref, ag_g2_ref, ag_be2_ref)
    ab_h1 = gcn_bn(ab_x_ref[...], a_ab, ab_w1_ref, ab_b1_ref, ab_g1_ref, ab_be1_ref)
    ab_h1 = gcn_bn(ab_h1,        a_ab, ab_w2_ref, ab_b2_ref, ab_g2_ref, ab_be2_ref)

    # ---- bipartite node features, [ab ; ag] order (8-aligned boundary) ----
    x = jnp.concatenate([ab_h1, ag_h1], axis=0)            # [N, H1]
    bias = bias_ref[...]                                    # additive 0 / -1e30 mask

    def head_attention(xh, asrc, adst):
        # xh [N, C]; asrc/adst [1, C]; returns softmax(mask(LeakyReLU(e))) @ xh
        a_src_row = jax.lax.dot_general(
            asrc, xh, (((1,), (1,)), ((), ())),
            preferred_element_type=jnp.float32)              # [1, N]  (sources j)
        a_dst_col = jnp.sum(xh * adst, axis=1, keepdims=True)  # [N, 1] (targets i)
        e = a_dst_col + a_src_row                            # e[i, j] for edge j -> i
        e = jnp.where(e > 0, e, 0.2 * e)                     # LeakyReLU(0.2)
        e = e + bias                                         # mask non-edges
        m = jnp.max(e, axis=1, keepdims=True)
        p = jnp.exp(e - m)
        attn = p * pl.reciprocal(jnp.sum(p, axis=1, keepdims=True), approx=True)
        # TODO(synk): attention dropout (p=0.2) omitted (eval-mode attention).
        return mm(attn, xh)

    # ---- GAT layer 1 (concat=True) + tanh, kept as per-head blocks ----
    h2_heads = []
    for h in range(heads):
        xh = mm(x, g1w_ref[h])                               # [N, HIDDEN]
        oh = head_attention(xh, g1s_ref[h], g1d_ref[h])
        h2_heads.append(jnp.tanh(oh + g1b_ref[h]))

    # ---- GAT layer 2 (concat=False, mean over heads) + tanh ----
    acc = None
    for ho in range(heads):
        xh = mm(h2_heads[0], g2w_ref[0, ho])
        for hi in range(1, heads):
            xh = xh + mm(h2_heads[hi], g2w_ref[hi, ho])      # [N, H2]
        oh = head_attention(xh, g2s_ref[ho], g2d_ref[ho])
        acc = oh if acc is None else acc + oh
    h2 = jnp.tanh(acc * (1.0 / heads) + g2b_ref[...])        # [N, H2]

    ab_h2 = h2[:n_ab]                                        # original ab order
    ag_h2 = h2[n_ab:]                                        # original ag order

    # ---- classifiers: tanh([h1, h2] @ W1 + b1) @ W2 + b2, W1 pre-split ----
    def classify(h1, h2b, w1a_ref, w1b_ref, b1_ref, w2_ref, b2_ref):
        hc = jnp.tanh(mm(h1, w1a_ref[...]) + mm(h2b, w1b_ref[...]) + b1_ref[...])
        return mm(hc, w2_ref[...]) + b2_ref[...]

    ag_out_ref[...] = classify(ag_h1, ag_h2, agc_w1a_ref, agc_w1b_ref,
                               agc_b1_ref, agc_w2_ref, agc_b2_ref)
    ab_out_ref[...] = classify(ab_h1, ab_h2, abc_w1a_ref, abc_w1b_ref,
                               abc_b1_ref, abc_w2_ref, abc_b2_ref)
    ag_h1_ref[...] = ag_h1
    ag_h2_ref[...] = ag_h2
    ab_h1_ref[...] = ab_h1
    ab_h2_ref[...] = ab_h2


# ------------------------ host-side graph glue (numpy) ----------------------
def gcn_norm_dense(edge_index, num_nodes):
    """Dense D^-1/2 (A + I) D^-1/2 for GCNConv."""
    A = np.zeros((num_nodes, num_nodes), np.float32)
    for s, d in zip(edge_index[0], edge_index[1]):
        A[int(d), int(s)] += 1.0
    A += np.eye(num_nodes, dtype=np.float32)          # add self loops (weight 1)
    deg = A.sum(axis=1)                               # degree incl. self loop
    dinv = np.where(deg > 0, 1.0 / np.sqrt(deg), 0.0).astype(np.float32)
    return dinv[:, None] * A * dinv[None, :]


def build_attn_bias(ag_batch, ab_batch):
    """Additive attention mask (0 = edge, -1e30 = non-edge) for the bipartite
    GAT graph, node order = [ab nodes ; ag nodes] (original order per block).
    Edges: one self loop per node (GATConv re-adds self loops) plus complete
    ag -> ab edges within each batch.  bias[i, j] covers edge j -> i."""
    n_ab = int(ab_batch.shape[0])
    n_ag = int(ag_batch.shape[0])
    n = n_ab + n_ag
    bias = np.full((n, n), -1e30, dtype=np.float32)
    np.fill_diagonal(bias, 0.0)
    for b in np.unique(ag_batch):
        ab_ids = np.where(ab_batch == b)[0]            # targets (rows 0..n_ab-1)
        ag_ids = np.where(ag_batch == b)[0] + n_ab     # sources (cols n_ab..n-1)
        bias[np.ix_(ab_ids, ag_ids)] = 0.0
    return bias


# ------------------------------- forward ------------------------------------
def epi_epmp_forward(params, ag_x, ag_edge_index, ag_batch,
                     ab_x, ab_edge_index, ab_batch):
    n_ag, n_ab = int(ag_x.shape[0]), int(ab_x.shape[0])
    a_ag = jnp.asarray(gcn_norm_dense(ag_edge_index, n_ag))
    a_ab = jnp.asarray(gcn_norm_dense(ab_edge_index, n_ab))
    attn_bias = jnp.asarray(build_attn_bias(ag_batch, ab_batch))

    f32 = lambda v: jnp.asarray(v, jnp.float32)
    row = lambda v: f32(v).reshape(1, -1)

    # Per-head weight/bias blocks (one-time host reshapes; kernel never does
    # lane-offset slicing or lane concatenation).
    g1w = f32(params["gat1_w"]).reshape(H1_DIM, HEADS, HIDDEN_DIM).transpose(1, 0, 2)
    g1s = f32(params["gat1_asrc"]).reshape(HEADS, 1, HIDDEN_DIM)
    g1d = f32(params["gat1_adst"]).reshape(HEADS, 1, HIDDEN_DIM)
    g1b = f32(params["gat1_bias"]).reshape(HEADS, 1, HIDDEN_DIM)
    g2w = f32(params["gat2_w"]).reshape(HEADS, HIDDEN_DIM, HEADS, H2_DIM).transpose(0, 2, 1, 3)
    g2s = f32(params["gat2_asrc"]).reshape(HEADS, 1, H2_DIM)
    g2d = f32(params["gat2_adst"]).reshape(HEADS, 1, H2_DIM)
    g2b = row(params["gat2_bias"])
    agc_w1a, agc_w1b = f32(params["ag_cls_w1"][:H1_DIM]), f32(params["ag_cls_w1"][H1_DIM:])
    abc_w1a, abc_w1b = f32(params["ab_cls_w1"][:H1_DIM]), f32(params["ab_cls_w1"][H1_DIM:])

    inputs = [
        f32(ag_x), a_ag, f32(ab_x), a_ab, attn_bias,
        f32(params["ag_w1"]), row(params["ag_b1"]), row(params["ag_bn1_g"]), row(params["ag_bn1_b"]),
        f32(params["ag_w2"]), row(params["ag_b2"]), row(params["ag_bn2_g"]), row(params["ag_bn2_b"]),
        f32(params["ab_w1"]), row(params["ab_b1"]), row(params["ab_bn1_g"]), row(params["ab_bn1_b"]),
        f32(params["ab_w2"]), row(params["ab_b2"]), row(params["ab_bn2_g"]), row(params["ab_bn2_b"]),
        g1w, g1s, g1d, g1b,
        g2w, g2s, g2d, g2b,
        agc_w1a, agc_w1b, row(params["ag_cls_b1"]), f32(params["ag_cls_w2"]), row(params["ag_cls_b2"]),
        abc_w1a, abc_w1b, row(params["ab_cls_b1"]), f32(params["ab_cls_w2"]), row(params["ab_cls_b2"]),
    ]

    vmem = pl.BlockSpec(memory_space=pltpu.MemorySpace.VMEM)
    out_shape = (
        jax.ShapeDtypeStruct((n_ag, 1), jnp.float32),
        jax.ShapeDtypeStruct((n_ag, H1_DIM), jnp.float32),
        jax.ShapeDtypeStruct((n_ag, H2_DIM), jnp.float32),
        jax.ShapeDtypeStruct((n_ab, 1), jnp.float32),
        jax.ShapeDtypeStruct((n_ab, H1_DIM), jnp.float32),
        jax.ShapeDtypeStruct((n_ab, H2_DIM), jnp.float32),
    )

    kernel = functools.partial(_epi_epmp_kernel, n_ab=n_ab, heads=HEADS)
    return pl.pallas_call(
        kernel,
        out_shape=out_shape,
        in_specs=[vmem] * len(inputs),
        out_specs=(vmem,) * 6,
    )(*inputs)


# ------------------------------- setup ---------------------------------------
def init_params(key):
    def nrm(k, shape, scale=0.1):
        return scale * jax.random.normal(k, shape, dtype=jnp.float32)

    keys = jax.random.split(key, 32)
    p = {}
    # GCN stacks (ag / ab not shared)
    p["ag_w1"] = nrm(keys[0], (NODE_ATTR_DIM, HIDDEN_DIM)); p["ag_b1"] = nrm(keys[1], (HIDDEN_DIM,))
    p["ag_w2"] = nrm(keys[2], (HIDDEN_DIM, H1_DIM));         p["ag_b2"] = nrm(keys[3], (H1_DIM,))
    p["ab_w1"] = nrm(keys[4], (NODE_ATTR_DIM, HIDDEN_DIM)); p["ab_b1"] = nrm(keys[5], (HIDDEN_DIM,))
    p["ab_w2"] = nrm(keys[6], (HIDDEN_DIM, H1_DIM));         p["ab_b2"] = nrm(keys[7], (H1_DIM,))
    # BatchNorms
    p["ag_bn1_g"] = 1.0 + nrm(keys[8], (HIDDEN_DIM,));  p["ag_bn1_b"] = nrm(keys[9], (HIDDEN_DIM,))
    p["ag_bn2_g"] = 1.0 + nrm(keys[10], (H1_DIM,));     p["ag_bn2_b"] = nrm(keys[11], (H1_DIM,))
    p["ab_bn1_g"] = 1.0 + nrm(keys[12], (HIDDEN_DIM,)); p["ab_bn1_b"] = nrm(keys[13], (HIDDEN_DIM,))
    p["ab_bn2_g"] = 1.0 + nrm(keys[14], (H1_DIM,));     p["ab_bn2_b"] = nrm(keys[15], (H1_DIM,))
    # GAT 1 (concat=True): in=H1, out=HIDDEN per head
    p["gat1_w"] = nrm(keys[16], (H1_DIM, HEADS * HIDDEN_DIM))
    p["gat1_asrc"] = nrm(keys[17], (HEADS, HIDDEN_DIM))
    p["gat1_adst"] = nrm(keys[18], (HEADS, HIDDEN_DIM))
    p["gat1_bias"] = nrm(keys[19], (HEADS * HIDDEN_DIM,))
    # GAT 2 (concat=False): in=HEADS*HIDDEN, out=H2 per head
    p["gat2_w"] = nrm(keys[20], (HEADS * HIDDEN_DIM, HEADS * H2_DIM))
    p["gat2_asrc"] = nrm(keys[21], (HEADS, H2_DIM))
    p["gat2_adst"] = nrm(keys[22], (HEADS, H2_DIM))
    p["gat2_bias"] = nrm(keys[23], (H2_DIM,))
    # Classifiers
    p["ag_cls_w1"] = nrm(keys[24], (H1_DIM + H2_DIM, HIDDEN_DIM)); p["ag_cls_b1"] = nrm(keys[25], (HIDDEN_DIM,))
    p["ag_cls_w2"] = nrm(keys[26], (HIDDEN_DIM, 1));               p["ag_cls_b2"] = nrm(keys[27], (1,))
    p["ab_cls_w1"] = nrm(keys[28], (H1_DIM + H2_DIM, HIDDEN_DIM)); p["ab_cls_b1"] = nrm(keys[29], (HIDDEN_DIM,))
    p["ab_cls_w2"] = nrm(keys[30], (HIDDEN_DIM, 1));               p["ab_cls_b2"] = nrm(keys[31], (1,))
    return p


def make_edges(batch, rng):
    """Random symmetric (both directions) intra-batch edges, no self loops."""
    src, dst = [], []
    for b in np.unique(batch):
        ids = np.where(batch == b)[0]
        for _ in range(len(ids) * 2):
            i, j = rng.choice(ids, 2, replace=False)
            src += [int(i), int(j)]
            dst += [int(j), int(i)]
    return np.asarray([src, dst], dtype=np.int64)


if __name__ == "__main__":
    key = jax.random.PRNGKey(0)
    k_ag, k_ab, k_params = jax.random.split(key, 3)

    # batch structure: 2 graphs; ag: 5 + 7 nodes, ab: 4 + 4 nodes
    ag_batch = np.asarray([0] * 5 + [1] * 7, dtype=np.int64)
    ab_batch = np.asarray([0] * 4 + [1] * 4, dtype=np.int64)

    rng = np.random.default_rng(0)
    ag_edge_index = make_edges(ag_batch, rng)   # [2, 48]
    ab_edge_index = make_edges(ab_batch, rng)   # [2, 32]

    ag_x = jax.random.normal(k_ag, (ag_batch.shape[0], NODE_ATTR_DIM), dtype=jnp.float32)
    ab_x = jax.random.normal(k_ab, (ab_batch.shape[0], NODE_ATTR_DIM), dtype=jnp.float32)

    params = init_params(k_params)

    outs = epi_epmp_forward(params, ag_x, ag_edge_index, ag_batch,
                            ab_x, ab_edge_index, ab_batch)
    outs = jax.block_until_ready(outs)

    ag_out, ag_h1, ag_h2, ab_out, ab_h1, ab_h2 = outs
    assert ag_out.shape == (12, 1) and ag_h1.shape == (12, H1_DIM) and ag_h2.shape == (12, H2_DIM)
    assert ab_out.shape == (8, 1) and ab_h1.shape == (8, H1_DIM) and ab_h2.shape == (8, H2_DIM)
    assert all(bool(jnp.all(jnp.isfinite(o))) for o in outs)
    print("KERNEL_OK")
</pallas_src>

<mosaic_0001>
module attributes {stable_mosaic.version = 11 : i64} {
  func.func @_epi_epmp_kernel(%arg0: memref<12x8xf32, #tpu.memory_space<vmem>>, %arg1: memref<12x12xf32, #tpu.memory_space<vmem>>, %arg2: memref<8x8xf32, #tpu.memory_space<vmem>>, %arg3: memref<8x8xf32, #tpu.memory_space<vmem>>, %arg4: memref<20x20xf32, #tpu.memory_space<vmem>>, %arg5: memref<8x16xf32, #tpu.memory_space<vmem>>, %arg6: memref<1x16xf32, #tpu.memory_space<vmem>>, %arg7: memref<1x16xf32, #tpu.memory_space<vmem>>, %arg8: memref<1x16xf32, #tpu.memory_space<vmem>>, %arg9: memref<16x16xf32, #tpu.memory_space<vmem>>, %arg10: memref<1x16xf32, #tpu.memory_space<vmem>>, %arg11: memref<1x16xf32, #tpu.memory_space<vmem>>, %arg12: memref<1x16xf32, #tpu.memory_space<vmem>>, %arg13: memref<8x16xf32, #tpu.memory_space<vmem>>, %arg14: memref<1x16xf32, #tpu.memory_space<vmem>>, %arg15: memref<1x16xf32, #tpu.memory_space<vmem>>, %arg16: memref<1x16xf32, #tpu.memory_space<vmem>>, %arg17: memref<16x16xf32, #tpu.memory_space<vmem>>, %arg18: memref<1x16xf32, #tpu.memory_space<vmem>>, %arg19: memref<1x16xf32, #tpu.memory_space<vmem>>, %arg20: memref<1x16xf32, #tpu.memory_space<vmem>>, %arg21: memref<4x16x16xf32, #tpu.memory_space<vmem>>, %arg22: memref<4x1x16xf32, #tpu.memory_space<vmem>>, %arg23: memref<4x1x16xf32, #tpu.memory_space<vmem>>, %arg24: memref<4x1x16xf32, #tpu.memory_space<vmem>>, %arg25: memref<4x4x16x8xf32, #tpu.memory_space<vmem>>, %arg26: memref<4x1x8xf32, #tpu.memory_space<vmem>>, %arg27: memref<4x1x8xf32, #tpu.memory_space<vmem>>, %arg28: memref<1x8xf32, #tpu.memory_space<vmem>>, %arg29: memref<16x16xf32, #tpu.memory_space<vmem>>, %arg30: memref<8x16xf32, #tpu.memory_space<vmem>>, %arg31: memref<1x16xf32, #tpu.memory_space<vmem>>, %arg32: memref<16x1xf32, #tpu.memory_space<vmem>>, %arg33: memref<1x1xf32, #tpu.memory_space<vmem>>, %arg34: memref<16x16xf32, #tpu.memory_space<vmem>>, %arg35: memref<8x16xf32, #tpu.memory_space<vmem>>, %arg36: memref<1x16xf32, #tpu.memory_space<vmem>>, %arg37: memref<16x1xf32, #tpu.memory_space<vmem>>, %arg38: memref<1x1xf32, #tpu.memory_space<vmem>>, %arg39: memref<12x1xf32, #tpu.memory_space<vmem>>, %arg40: memref<12x16xf32, #tpu.memory_space<vmem>>, %arg41: memref<12x8xf32, #tpu.memory_space<vmem>>, %arg42: memref<8x1xf32, #tpu.memory_space<vmem>>, %arg43: memref<8x16xf32, #tpu.memory_space<vmem>>, %arg44: memref<8x8xf32, #tpu.memory_space<vmem>>) attributes {dimension_semantics = [], scalar_prefetch = 0 : i64, scratch_operands = 0 : i64, tpu.core_type = #tpu.core_type<tc>} {
    %c0 = arith.constant 0 : index
    %c0_0 = arith.constant 0 : index
    %0 = vector.load %arg1[%c0, %c0_0] : memref<12x12xf32, #tpu.memory_space<vmem>>, vector<12x12xf32>
    %c0_1 = arith.constant 0 : index
    %c0_2 = arith.constant 0 : index
    %1 = vector.load %arg3[%c0_1, %c0_2] : memref<8x8xf32, #tpu.memory_space<vmem>>, vector<8x8xf32>
    %c0_3 = arith.constant 0 : index
    %c0_4 = arith.constant 0 : index
    %2 = vector.load %arg0[%c0_3, %c0_4] : memref<12x8xf32, #tpu.memory_space<vmem>>, vector<12x8xf32>
    %c0_5 = arith.constant 0 : index
    %c0_6 = arith.constant 0 : index
    %3 = vector.load %arg5[%c0_5, %c0_6] : memref<8x16xf32, #tpu.memory_space<vmem>>, vector<8x16xf32>
    %cst = arith.constant dense<0.000000e+00> : vector<12x16xf32>
    %4 = tpu.matmul %2, %3, %cst {dimension_numbers = #tpu.dot_dimension_numbers<[1], [0], [0], [1], [0, 0, 1, 1], [], []>} : vector<12x8xf32>, vector<8x16xf32>, vector<12x16xf32> -> vector<12x16xf32>
    %cst_7 = arith.constant dense<0.000000e+00> : vector<12x16xf32>
    %5 = tpu.matmul %0, %4, %cst_7 {dimension_numbers = #tpu.dot_dimension_numbers<[1], [0], [0], [1], [0, 0, 1, 1], [], []>} : vector<12x12xf32>, vector<12x16xf32>, vector<12x16xf32> -> vector<12x16xf32>
    %c0_8 = arith.constant 0 : index
    %c0_9 = arith.constant 0 : index
    %6 = vector.load %arg6[%c0_8, %c0_9] : memref<1x16xf32, #tpu.memory_space<vmem>>, vector<1x16xf32>
    %7 = vector.broadcast %6 : vector<1x16xf32> to vector<12x16xf32>
    %8 = arith.addf %5, %7 : vector<12x16xf32>
    %9 = math.tanh %8 : vector<12x16xf32>
    %cst_10 = arith.constant dense<0.000000e+00> : vector<16xf32>
    %10 = vector.multi_reduction <add>, %9, %cst_10 [0] : vector<12x16xf32> to vector<16xf32>
    %11 = vector.shape_cast %10 : vector<16xf32> to vector<1x16xf32>
    %cst_11 = arith.constant 1.200000e+01 : f32
    %12 = vector.broadcast %cst_11 : f32 to vector<1x16xf32>
    %13 = arith.divf %11, %12 : vector<1x16xf32>
    %14 = vector.broadcast %13 : vector<1x16xf32> to vector<12x16xf32>
    %15 = arith.subf %9, %14 : vector<12x16xf32>
    %16 = arith.mulf %15, %15 : vector<12x16xf32>
    %cst_12 = arith.constant dense<0.000000e+00> : vector<16xf32>
    %17 = vector.multi_reduction <add>, %16, %cst_12 [0] : vector<12x16xf32> to vector<16xf32>
    %18 = vector.shape_cast %17 : vector<16xf32> to vector<1x16xf32>
    %cst_13 = arith.constant 1.200000e+01 : f32
    %19 = vector.broadcast %cst_13 : f32 to vector<1x16xf32>
    %20 = arith.divf %18, %19 : vector<1x16xf32>
    %c0_14 = arith.constant 0 : index
    %c0_15 = arith.constant 0 : index
    %21 = vector.load %arg7[%c0_14, %c0_15] : memref<1x16xf32, #tpu.memory_space<vmem>>, vector<1x16xf32>
    %22 = vector.broadcast %13 : vector<1x16xf32> to vector<12x16xf32>
    %23 = arith.subf %9, %22 : vector<12x16xf32>
    %24 = vector.broadcast %21 : vector<1x16xf32> to vector<12x16xf32>
    %25 = arith.mulf %24, %23 : vector<12x16xf32>
    %cst_16 = arith.constant 9.99999974E-6 : f32
    %26 = vector.broadcast %cst_16 : f32 to vector<1x16xf32>
    %27 = arith.addf %20, %26 : vector<1x16xf32>
    %28 = math.rsqrt %27 : vector<1x16xf32>
    %29 = vector.broadcast %28 : vector<1x16xf32> to vector<12x16xf32>
    %30 = arith.mulf %25, %29 : vector<12x16xf32>
    %c0_17 = arith.constant 0 : index
    %c0_18 = arith.constant 0 : index
    %31 = vector.load %arg8[%c0_17, %c0_18] : memref<1x16xf32, #tpu.memory_space<vmem>>, vector<1x16xf32>
    %32 = vector.broadcast %31 : vector<1x16xf32> to vector<12x16xf32>
    %33 = arith.addf %30, %32 : vector<12x16xf32>
    %c0_19 = arith.constant 0 : index
    %c0_20 = arith.constant 0 : index
    %34 = vector.load %arg9[%c0_19, %c0_20] : memref<16x16xf32, #tpu.memory_space<vmem>>, vector<16x16xf32>
    %cst_21 = arith.constant dense<0.000000e+00> : vector<12x16xf32>
    %35 = tpu.matmul %33, %34, %cst_21 {dimension_numbers = #tpu.dot_dimension_numbers<[1], [0], [0], [1], [0, 0, 1, 1], [], []>} : vector<12x16xf32>, vector<16x16xf32>, vector<12x16xf32> -> vector<12x16xf32>
    %cst_22 = arith.constant dense<0.000000e+00> : vector<12x16xf32>
    %36 = tpu.matmul %0, %35, %cst_22 {dimension_numbers = #tpu.dot_dimension_numbers<[1], [0], [0], [1], [0, 0, 1, 1], [], []>} : vector<12x12xf32>, vector<12x16xf32>, vector<12x16xf32> -> vector<12x16xf32>
    %c0_23 = arith.constant 0 : index
    %c0_24 = arith.constant 0 : index
    %37 = vector.load %arg10[%c0_23, %c0_24] : memref<1x16xf32, #tpu.memory_space<vmem>>, vector<1x16xf32>
    %38 = vector.broadcast %37 : vector<1x16xf32> to vector<12x16xf32>
    %39 = arith.addf %36, %38 : vector<12x16xf32>
    %40 = math.tanh %39 : vector<12x16xf32>
    %cst_25 = arith.constant dense<0.000000e+00> : vector<16xf32>
    %41 = vector.multi_reduction <add>, %40, %cst_25 [0] : vector<12x16xf32> to vector<16xf32>
    %42 = vector.shape_cast %41 : vector<16xf32> to vector<1x16xf32>
    %cst_26 = arith.constant 1.200000e+01 : f32
    %43 = vector.broadcast %cst_26 : f32 to vector<1x16xf32>
    %44 = arith.divf %42, %43 : vector<1x16xf32>
    %45 = vector.broadcast %44 : vector<1x16xf32> to vector<12x16xf32>
    %46 = arith.subf %40, %45 : vector<12x16xf32>
    %47 = arith.mulf %46, %46 : vector<12x16xf32>
    %cst_27 = arith.constant dense<0.000000e+00> : vector<16xf32>
    %48 = vector.multi_reduction <add>, %47, %cst_27 [0] : vector<12x16xf32> to vector<16xf32>
    %49 = vector.shape_cast %48 : vector<16xf32> to vector<1x16xf32>
    %cst_28 = arith.constant 1.200000e+01 : f32
    %50 = vector.broadcast %cst_28 : f32 to vector<1x16xf32>
    %51 = arith.divf %49, %50 : vector<1x16xf32>
    %c0_29 = arith.constant 0 : index
    %c0_30 = arith.constant 0 : index
    %52 = vector.load %arg11[%c0_29, %c0_30] : memref<1x16xf32, #tpu.memory_space<vmem>>, vector<1x16xf32>
    %53 = vector.broadcast %44 : vector<1x16xf32> to vector<12x16xf32>
    %54 = arith.subf %40, %53 : vector<12x16xf32>
    %55 = vector.broadcast %52 : vector<1x16xf32> to vector<12x16xf32>
    %56 = arith.mulf %55, %54 : vector<12x16xf32>
    %cst_31 = arith.constant 9.99999974E-6 : f32
    %57 = vector.broadcast %cst_31 : f32 to vector<1x16xf32>
    %58 = arith.addf %51, %57 : vector<1x16xf32>
    %59 = math.rsqrt %58 : vector<1x16xf32>
    %60 = vector.broadcast %59 : vector<1x16xf32> to vector<12x16xf32>
    %61 = arith.mulf %56, %60 : vector<12x16xf32>
    %c0_32 = arith.constant 0 : index
    %c0_33 = arith.constant 0 : index
    %62 = vector.load %arg12[%c0_32, %c0_33] : memref<1x16xf32, #tpu.memory_space<vmem>>, vector<1x16xf32>
    %63 = vector.broadcast %62 : vector<1x16xf32> to vector<12x16xf32>
    %64 = arith.addf %61, %63 : vector<12x16xf32>
    %c0_34 = arith.constant 0 : index
    %c0_35 = arith.constant 0 : index
    %65 = vector.load %arg2[%c0_34, %c0_35] : memref<8x8xf32, #tpu.memory_space<vmem>>, vector<8x8xf32>
    %c0_36 = arith.constant 0 : index
    %c0_37 = arith.constant 0 : index
    %66 = vector.load %arg13[%c0_36, %c0_37] : memref<8x16xf32, #tpu.memory_space<vmem>>, vector<8x16xf32>
    %cst_38 = arith.constant dense<0.000000e+00> : vector<8x16xf32>
    %67 = tpu.matmul %65, %66, %cst_38 {dimension_numbers = #tpu.dot_dimension_numbers<[1], [0], [0], [1], [0, 0, 1, 1], [], []>} : vector<8x8xf32>, vector<8x16xf32>, vector<8x16xf32> -> vector<8x16xf32>
    %cst_39 = arith.constant dense<0.000000e+00> : vector<8x16xf32>
    %68 = tpu.matmul %1, %67, %cst_39 {dimension_numbers = #tpu.dot_dimension_numbers<[1], [0], [0], [1], [0, 0, 1, 1], [], []>} : vector<8x8xf32>, vector<8x16xf32>, vector<8x16xf32> -> vector<8x16xf32>
    %c0_40 = arith.constant 0 : index
    %c0_41 = arith.constant 0 : index
    %69 = vector.load %arg14[%c0_40, %c0_41] : memref<1x16xf32, #tpu.memory_space<vmem>>, vector<1x16xf32>
    %70 = vector.broadcast %69 : vector<1x16xf32> to vector<8x16xf32>
    %71 = arith.addf %68, %70 : vector<8x16xf32>
    %72 = math.tanh %71 : vector<8x16xf32>
    %cst_42 = arith.constant dense<0.000000e+00> : vector<16xf32>
    %73 = vector.multi_reduction <add>, %72, %cst_42 [0] : vector<8x16xf32> to vector<16xf32>
    %74 = vector.shape_cast %73 : vector<16xf32> to vector<1x16xf32>
    %cst_43 = arith.constant 8.000000e+00 : f32
    %75 = vector.broadcast %cst_43 : f32 to vector<1x16xf32>
    %76 = arith.divf %74, %75 : vector<1x16xf32>
    %77 = vector.broadcast %76 : vector<1x16xf32> to vector<8x16xf32>
    %78 = arith.subf %72, %77 : vector<8x16xf32>
    %79 = arith.mulf %78, %78 : vector<8x16xf32>
    %cst_44 = arith.constant dense<0.000000e+00> : vector<16xf32>
    %80 = vector.multi_reduction <add>, %79, %cst_44 [0] : vector<8x16xf32> to vector<16xf32>
    %81 = vector.shape_cast %80 : vector<16xf32> to vector<1x16xf32>
    %cst_45 = arith.constant 8.000000e+00 : f32
    %82 = vector.broadcast %cst_45 : f32 to vector<1x16xf32>
    %83 = arith.divf %81, %82 : vector<1x16xf32>
    %c0_46 = arith.constant 0 : index
    %c0_47 = arith.constant 0 : index
    %84 = vector.load %arg15[%c0_46, %c0_47] : memref<1x16xf32, #tpu.memory_space<vmem>>, vector<1x16xf32>
    %85 = vector.broadcast %76 : vector<1x16xf32> to vector<8x16xf32>
    %86 = arith.subf %72, %85 : vector<8x16xf32>
    %87 = vector.broadcast %84 : vector<1x16xf32> to vector<8x16xf32>
    %88 = arith.mulf %87, %86 : vector<8x16xf32>
    %cst_48 = arith.constant 9.99999974E-6 : f32
    %89 = vector.broadcast %cst_48 : f32 to vector<1x16xf32>
    %90 = arith.addf %83, %89 : vector<1x16xf32>
    %91 = math.rsqrt %90 : vector<1x16xf32>
    %92 = vector.broadcast %91 : vector<1x16xf32> to vector<8x16xf32>
    %93 = arith.mulf %88, %92 : vector<8x16xf32>
    %c0_49 = arith.constant 0 : index
    %c0_50 = arith.constant 0 : index
    %94 = vector.load %arg16[%c0_49, %c0_50] : memref<1x16xf32, #tpu.memory_space<vmem>>, vector<1x16xf32>
    %95 = vector.broadcast %94 : vector<1x16xf32> to vector<8x16xf32>
    %96 = arith.addf %93, %95 : vector<8x16xf32>
    %c0_51 = arith.constant 0 : index
    %c0_52 = arith.constant 0 : index
    %97 = vector.load %arg17[%c0_51, %c0_52] : memref<16x16xf32, #tpu.memory_space<vmem>>, vector<16x16xf32>
    %cst_53 = arith.constant dense<0.000000e+00> : vector<8x16xf32>
    %98 = tpu.matmul %96, %97, %cst_53 {dimension_numbers = #tpu.dot_dimension_numbers<[1], [0], [0], [1], [0, 0, 1, 1], [], []>} : vector<8x16xf32>, vector<16x16xf32>, vector<8x16xf32> -> vector<8x16xf32>
    %cst_54 = arith.constant dense<0.000000e+00> : vector<8x16xf32>
    %99 = tpu.matmul %1, %98, %cst_54 {dimension_numbers = #tpu.dot_dimension_numbers<[1], [0], [0], [1], [0, 0, 1, 1], [], []>} : vector<8x8xf32>, vector<8x16xf32>, vector<8x16xf32> -> vector<8x16xf32>
    %c0_55 = arith.constant 0 : index
    %c0_56 = arith.constant 0 : index
    %100 = vector.load %arg18[%c0_55, %c0_56] : memref<1x16xf32, #tpu.memory_space<vmem>>, vector<1x16xf32>
    %101 = vector.broadcast %100 : vector<1x16xf32> to vector<8x16xf32>
    %102 = arith.addf %99, %101 : vector<8x16xf32>
    %103 = math.tanh %102 : vector<8x16xf32>
    %cst_57 = arith.constant dense<0.000000e+00> : vector<16xf32>
    %104 = vector.multi_reduction <add>, %103, %cst_57 [0] : vector<8x16xf32> to vector<16xf32>
    %105 = vector.shape_cast %104 : vector<16xf32> to vector<1x16xf32>
    %cst_58 = arith.constant 8.000000e+00 : f32
    %106 = vector.broadcast %cst_58 : f32 to vector<1x16xf32>
    %107 = arith.divf %105, %106 : vector<1x16xf32>
    %108 = vector.broadcast %107 : vector<1x16xf32> to vector<8x16xf32>
    %109 = arith.subf %103, %108 : vector<8x16xf32>
    %110 = arith.mulf %109, %109 : vector<8x16xf32>
    %cst_59 = arith.constant dense<0.000000e+00> : vector<16xf32>
    %111 = vector.multi_reduction <add>, %110, %cst_59 [0] : vector<8x16xf32> to vector<16xf32>
    %112 = vector.shape_cast %111 : vector<16xf32> to vector<1x16xf32>
    %cst_60 = arith.constant 8.000000e+00 : f32
    %113 = vector.broadcast %cst_60 : f32 to vector<1x16xf32>
    %114 = arith.divf %112, %113 : vector<1x16xf32>
    %c0_61 = arith.constant 0 : index
    %c0_62 = arith.constant 0 : index
    %115 = vector.load %arg19[%c0_61, %c0_62] : memref<1x16xf32, #tpu.memory_space<vmem>>, vector<1x16xf32>
    %116 = vector.broadcast %107 : vector<1x16xf32> to vector<8x16xf32>
    %117 = arith.subf %103, %116 : vector<8x16xf32>
    %118 = vector.broadcast %115 : vector<1x16xf32> to vector<8x16xf32>
    %119 = arith.mulf %118, %117 : vector<8x16xf32>
    %cst_63 = arith.constant 9.99999974E-6 : f32
    %120 = vector.broadcast %cst_63 : f32 to vector<1x16xf32>
    %121 = arith.addf %114, %120 : vector<1x16xf32>
    %122 = math.rsqrt %121 : vector<1x16xf32>
    %123 = vector.broadcast %122 : vector<1x16xf32> to vector<8x16xf32>
    %124 = arith.mulf %119, %123 : vector<8x16xf32>
    %c0_64 = arith.constant 0 : index
    %c0_65 = arith.constant 0 : index
    %125 = vector.load %arg20[%c0_64, %c0_65] : memref<1x16xf32, #tpu.memory_space<vmem>>, vector<1x16xf32>
    %126 = vector.broadcast %125 : vector<1x16xf32> to vector<8x16xf32>
    %127 = arith.addf %124, %126 : vector<8x16xf32>
    %128 = tpu.concatenate %127, %64 in 0 : vector<8x16xf32>, vector<12x16xf32> -> vector<20x16xf32>
    %c0_66 = arith.constant 0 : index
    %c0_67 = arith.constant 0 : index
    %129 = vector.load %arg4[%c0_66, %c0_67] : memref<20x20xf32, #tpu.memory_space<vmem>>, vector<20x20xf32>
    %c0_68 = arith.constant 0 : index
    %c0_69 = arith.constant 0 : index
    %c0_70 = arith.constant 0 : index
    %130 = vector.load %arg21[%c0_68, %c0_69, %c0_70] : memref<4x16x16xf32, #tpu.memory_space<vmem>>, vector<1x16x16xf32>
    %131 = vector.shape_cast %130 : vector<1x16x16xf32> to vector<16x16xf32>
    %cst_71 = arith.constant dense<0.000000e+00> : vector<20x16xf32>
    %132 = tpu.matmul %128, %131, %cst_71 {dimension_numbers = #tpu.dot_dimension_numbers<[1], [0], [0], [1], [0, 0, 1, 1], [], []>} : vector<20x16xf32>, vector<16x16xf32>, vector<20x16xf32> -> vector<20x16xf32>
    %c0_72 = arith.constant 0 : index
    %c0_73 = arith.constant 0 : index
    %c0_74 = arith.constant 0 : index
    %133 = vector.load %arg22[%c0_72, %c0_73, %c0_74] : memref<4x1x16xf32, #tpu.memory_space<vmem>>, vector<1x1x16xf32>
    %134 = vector.shape_cast %133 : vector<1x1x16xf32> to vector<1x16xf32>
    %c0_75 = arith.constant 0 : index
    %c0_76 = arith.constant 0 : index
    %c0_77 = arith.constant 0 : index
    %135 = vector.load %arg23[%c0_75, %c0_76, %c0_77] : memref<4x1x16xf32, #tpu.memory_space<vmem>>, vector<1x1x16xf32>
    %136 = vector.shape_cast %135 : vector<1x1x16xf32> to vector<1x16xf32>
    %cst_78 = arith.constant dense<0.000000e+00> : vector<1x20xf32>
    %137 = tpu.matmul %134, %132, %cst_78 {dimension_numbers = #tpu.dot_dimension_numbers<[1], [1], [0], [0], [0, 0, 1, 0], [], []>} : vector<1x16xf32>, vector<20x16xf32>, vector<1x20xf32> -> vector<1x20xf32>
    %138 = vector.broadcast %136 : vector<1x16xf32> to vector<20x16xf32>
    %139 = arith.mulf %132, %138 : vector<20x16xf32>
    %cst_79 = arith.constant dense<0.000000e+00> : vector<20xf32>
    %140 = vector.multi_reduction <add>, %139, %cst_79 [1] : vector<20x16xf32> to vector<20xf32>
    %141 = vector.shape_cast %140 : vector<20xf32> to vector<20x1xf32>
    %142 = vector.broadcast %141 : vector<20x1xf32> to vector<20x20xf32>
    %143 = vector.broadcast %137 : vector<1x20xf32> to vector<20x20xf32>
    %144 = arith.addf %142, %143 : vector<20x20xf32>
    %cst_80 = arith.constant 0.000000e+00 : f32
    %145 = vector.broadcast %cst_80 : f32 to vector<20x20xf32>
    %146 = arith.cmpf ogt, %144, %145 : vector<20x20xf32>
    %cst_81 = arith.constant 2.000000e-01 : f32
    %147 = vector.broadcast %cst_81 : f32 to vector<20x20xf32>
    %148 = arith.mulf %147, %144 : vector<20x20xf32>
    %149 = arith.select %146, %144, %148 : vector<20x20xi1>, vector<20x20xf32>
    %150 = arith.addf %149, %129 : vector<20x20xf32>
    %cst_82 = arith.constant dense<0xFF800000> : vector<20xf32>
    %151 = vector.multi_reduction <maximumf>, %150, %cst_82 [1] : vector<20x20xf32> to vector<20xf32>
    %152 = vector.shape_cast %151 : vector<20xf32> to vector<20x1xf32>
    %153 = vector.broadcast %152 : vector<20x1xf32> to vector<20x20xf32>
    %154 = arith.subf %150, %153 : vector<20x20xf32>
    %155 = math.exp %154 : vector<20x20xf32>
    %cst_83 = arith.constant dense<0.000000e+00> : vector<20xf32>
    %156 = vector.multi_reduction <add>, %155, %cst_83 [1] : vector<20x20xf32> to vector<20xf32>
    %157 = vector.shape_cast %156 : vector<20xf32> to vector<20x1xf32>
    %158 = tpu.reciprocal %157 {approx = true} : vector<20x1xf32> -> vector<20x1xf32>
    %159 = vector.broadcast %158 : vector<20x1xf32> to vector<20x20xf32>
    %160 = arith.mulf %155, %159 : vector<20x20xf32>
    %cst_84 = arith.constant dense<0.000000e+00> : vector<20x16xf32>
    %161 = tpu.matmul %160, %132, %cst_84 {dimension_numbers = #tpu.dot_dimension_numbers<[1], [0], [0], [1], [0, 0, 1, 1], [], []>} : vector<20x20xf32>, vector<20x16xf32>, vector<20x16xf32> -> vector<20x16xf32>
    %c0_85 = arith.constant 0 : index
    %c0_86 = arith.constant 0 : index
    %c0_87 = arith.constant 0 : index
    %162 = vector.load %arg24[%c0_85, %c0_86, %c0_87] : memref<4x1x16xf32, #tpu.memory_space<vmem>>, vector<1x1x16xf32>
    %163 = vector.shape_cast %162 : vector<1x1x16xf32> to vector<1x16xf32>
    %164 = vector.broadcast %163 : vector<1x16xf32> to vector<20x16xf32>
    %165 = arith.addf %161, %164 : vector<20x16xf32>
    %166 = math.tanh %165 : vector<20x16xf32>
    %c1 = arith.constant 1 : index
    %c0_88 = arith.constant 0 : index
    %c0_89 = arith.constant 0 : index
    %167 = vector.load %arg21[%c1, %c0_88, %c0_89] : memref<4x16x16xf32, #tpu.memory_space<vmem>>, vector<1x16x16xf32>
    %168 = vector.shape_cast %167 : vector<1x16x16xf32> to vector<16x16xf32>
    %cst_90 = arith.constant dense<0.000000e+00> : vector<20x16xf32>
    %169 = tpu.matmul %128, %168, %cst_90 {dimension_numbers = #tpu.dot_dimension_numbers<[1], [0], [0], [1], [0, 0, 1, 1], [], []>} : vector<20x16xf32>, vector<16x16xf32>, vector<20x16xf32> -> vector<20x16xf32>
    %c1_91 = arith.constant 1 : index
    %c0_92 = arith.constant 0 : index
    %c0_93 = arith.constant 0 : index
    %170 = vector.load %arg22[%c1_91, %c0_92, %c0_93] : memref<4x1x16xf32, #tpu.memory_space<vmem>>, vector<1x1x16xf32>
    %171 = vector.shape_cast %170 : vector<1x1x16xf32> to vector<1x16xf32>
    %c1_94 = arith.constant 1 : index
    %c0_95 = arith.constant 0 : index
    %c0_96 = arith.constant 0 : index
    %172 = vector.load %arg23[%c1_94, %c0_95, %c0_96] : memref<4x1x16xf32, #tpu.memory_space<vmem>>, vector<1x1x16xf32>
    %173 = vector.shape_cast %172 : vector<1x1x16xf32> to vector<1x16xf32>
    %cst_97 = arith.constant dense<0.000000e+00> : vector<1x20xf32>
    %174 = tpu.matmul %171, %169, %cst_97 {dimension_numbers = #tpu.dot_dimension_numbers<[1], [1], [0], [0], [0, 0, 1, 0], [], []>} : vector<1x16xf32>, vector<20x16xf32>, vector<1x20xf32> -> vector<1x20xf32>
    %175 = vector.broadcast %173 : vector<1x16xf32> to vector<20x16xf32>
    %176 = arith.mulf %169, %175 : vector<20x16xf32>
    %cst_98 = arith.constant dense<0.000000e+00> : vector<20xf32>
    %177 = vector.multi_reduction <add>, %176, %cst_98 [1] : vector<20x16xf32> to vector<20xf32>
    %178 = vector.shape_cast %177 : vector<20xf32> to vector<20x1xf32>
    %179 = vector.broadcast %178 : vector<20x1xf32> to vector<20x20xf32>
    %180 = vector.broadcast %174 : vector<1x20xf32> to vector<20x20xf32>
    %181 = arith.addf %179, %180 : vector<20x20xf32>
    %cst_99 = arith.constant 0.000000e+00 : f32
    %182 = vector.broadcast %cst_99 : f32 to vector<20x20xf32>
    %183 = arith.cmpf ogt, %181, %182 : vector<20x20xf32>
    %cst_100 = arith.constant 2.000000e-01 : f32
    %184 = vector.broadcast %cst_100 : f32 to vector<20x20xf32>
    %185 = arith.mulf %184, %181 : vector<20x20xf32>
    %186 = arith.select %183, %181, %185 : vector<20x20xi1>, vector<20x20xf32>
    %187 = arith.addf %186, %129 : vector<20x20xf32>
    %cst_101 = arith.constant dense<0xFF800000> : vector<20xf32>
    %188 = vector.multi_reduction <maximumf>, %187, %cst_101 [1] : vector<20x20xf32> to vector<20xf32>
    %189 = vector.shape_cast %188 : vector<20xf32> to vector<20x1xf32>
    %190 = vector.broadcast %189 : vector<20x1xf32> to vector<20x20xf32>
    %191 = arith.subf %187, %190 : vector<20x20xf32>
    %192 = math.exp %191 : vector<20x20xf32>
    %cst_102 = arith.constant dense<0.000000e+00> : vector<20xf32>
    %193 = vector.multi_reduction <add>, %192, %cst_102 [1] : vector<20x20xf32> to vector<20xf32>
    %194 = vector.shape_cast %193 : vector<20xf32> to vector<20x1xf32>
    %195 = tpu.reciprocal %194 {approx = true} : vector<20x1xf32> -> vector<20x1xf32>
    %196 = vector.broadcast %195 : vector<20x1xf32> to vector<20x20xf32>
    %197 = arith.mulf %192, %196 : vector<20x20xf32>
    %cst_103 = arith.constant dense<0.000000e+00> : vector<20x16xf32>
    %198 = tpu.matmul %197, %169, %cst_103 {dimension_numbers = #tpu.dot_dimension_numbers<[1], [0], [0], [1], [0, 0, 1, 1], [], []>} : vector<20x20xf32>, vector<20x16xf32>, vector<20x16xf32> -> vector<20x16xf32>
    %c1_104 = arith.constant 1 : index
    %c0_105 = arith.constant 0 : index
    %c0_106 = arith.constant 0 : index
    %199 = vector.load %arg24[%c1_104, %c0_105, %c0_106] : memref<4x1x16xf32, #tpu.memory_space<vmem>>, vector<1x1x16xf32>
    %200 = vector.shape_cast %199 : vector<1x1x16xf32> to vector<1x16xf32>
    %201 = vector.broadcast %200 : vector<1x16xf32> to vector<20x16xf32>
    %202 = arith.addf %198, %201 : vector<20x16xf32>
    %203 = math.tanh %202 : vector<20x16xf32>
    %c2 = arith.constant 2 : index
    %c0_107 = arith.constant 0 : index
    %c0_108 = arith.constant 0 : index
    %204 = vector.load %arg21[%c2, %c0_107, %c0_108] : memref<4x16x16xf32, #tpu.memory_space<vmem>>, vector<1x16x16xf32>
    %205 = vector.shape_cast %204 : vector<1x16x16xf32> to vector<16x16xf32>
    %cst_109 = arith.constant dense<0.000000e+00> : vector<20x16xf32>
    %206 = tpu.matmul %128, %205, %cst_109 {dimension_numbers = #tpu.dot_dimension_numbers<[1], [0], [0], [1], [0, 0, 1, 1], [], []>} : vector<20x16xf32>, vector<16x16xf32>, vector<20x16xf32> -> vector<20x16xf32>
    %c2_110 = arith.constant 2 : index
    %c0_111 = arith.constant 0 : index
    %c0_112 = arith.constant 0 : index
    %207 = vector.load %arg22[%c2_110, %c0_111, %c0_112] : memref<4x1x16xf32, #tpu.memory_space<vmem>>, vector<1x1x16xf32>
    %208 = vector.shape_cast %207 : vector<1x1x16xf32> to vector<1x16xf32>
    %c2_113 = arith.constant 2 : index
    %c0_114 = arith.constant 0 : index
    %c0_115 = arith.constant 0 : index
    %209 = vector.load %arg23[%c2_113, %c0_114, %c0_115] : memref<4x1x16xf32, #tpu.memory_space<vmem>>, vector<1x1x16xf32>
    %210 = vector.shape_cast %209 : vector<1x1x16xf32> to vector<1x16xf32>
    %cst_116 = arith.constant dense<0.000000e+00> : vector<1x20xf32>
    %211 = tpu.matmul %208, %206, %cst_116 {dimension_numbers = #tpu.dot_dimension_numbers<[1], [1], [0], [0], [0, 0, 1, 0], [], []>} : vector<1x16xf32>, vector<20x16xf32>, vector<1x20xf32> -> vector<1x20xf32>
    %212 = vector.broadcast %210 : vector<1x16xf32> to vector<20x16xf32>
    %213 = arith.mulf %206, %212 : vector<20x16xf32>
    %cst_117 = arith.constant dense<0.000000e+00> : vector<20xf32>
    %214 = vector.multi_reduction <add>, %213, %cst_117 [1] : vector<20x16xf32> to vector<20xf32>
    %215 = vector.shape_cast %214 : vector<20xf32> to vector<20x1xf32>
    %216 = vector.broadcast %215 : vector<20x1xf32> to vector<20x20xf32>
    %217 = vector.broadcast %211 : vector<1x20xf32> to vector<20x20xf32>
    %218 = arith.addf %216, %217 : vector<20x20xf32>
    %cst_118 = arith.constant 0.000000e+00 : f32
    %219 = vector.broadcast %cst_118 : f32 to vector<20x20xf32>
    %220 = arith.cmpf ogt, %218, %219 : vector<20x20xf32>
    %cst_119 = arith.constant 2.000000e-01 : f32
    %221 = vector.broadcast %cst_119 : f32 to vector<20x20xf32>
    %222 = arith.mulf %221, %218 : vector<20x20xf32>
    %223 = arith.select %220, %218, %222 : vector<20x20xi1>, vector<20x20xf32>
    %224 = arith.addf %223, %129 : vector<20x20xf32>
    %cst_120 = arith.constant dense<0xFF800000> : vector<20xf32>
    %225 = vector.multi_reduction <maximumf>, %224, %cst_120 [1] : vector<20x20xf32> to vector<20xf32>
    %226 = vector.shape_cast %225 : vector<20xf32> to vector<20x1xf32>
    %227 = vector.broadcast %226 : vector<20x1xf32> to vector<20x20xf32>
    %228 = arith.subf %224, %227 : vector<20x20xf32>
    %229 = math.exp %228 : vector<20x20xf32>
    %cst_121 = arith.constant dense<0.000000e+00> : vector<20xf32>
    %230 = vector.multi_reduction <add>, %229, %cst_121 [1] : vector<20x20xf32> to vector<20xf32>
    %231 = vector.shape_cast %230 : vector<20xf32> to vector<20x1xf32>
    %232 = tpu.reciprocal %231 {approx = true} : vector<20x1xf32> -> vector<20x1xf32>
    %233 = vector.broadcast %232 : vector<20x1xf32> to vector<20x20xf32>
    %234 = arith.mulf %229, %233 : vector<20x20xf32>
    %cst_122 = arith.constant dense<0.000000e+00> : vector<20x16xf32>
    %235 = tpu.matmul %234, %206, %cst_122 {dimension_numbers = #tpu.dot_dimension_numbers<[1], [0], [0], [1], [0, 0, 1, 1], [], []>} : vector<20x20xf32>, vector<20x16xf32>, vector<20x16xf32> -> vector<20x16xf32>
    %c2_123 = arith.constant 2 : index
    %c0_124 = arith.constant 0 : index
    %c0_125 = arith.constant 0 : index
    %236 = vector.load %arg24[%c2_123, %c0_124, %c0_125] : memref<4x1x16xf32, #tpu.memory_space<vmem>>, vector<1x1x16xf32>
    %237 = vector.shape_cast %236 : vector<1x1x16xf32> to vector<1x16xf32>
    %238 = vector.broadcast %237 : vector<1x16xf32> to vector<20x16xf32>
    %239 = arith.addf %235, %238 : vector<20x16xf32>
    %240 = math.tanh %239 : vector<20x16xf32>
    %c3 = arith.constant 3 : index
    %c0_126 = arith.constant 0 : index
    %c0_127 = arith.constant 0 : index
    %241 = vector.load %arg21[%c3, %c0_126, %c0_127] : memref<4x16x16xf32, #tpu.memory_space<vmem>>, vector<1x16x16xf32>
    %242 = vector.shape_cast %241 : vector<1x16x16xf32> to vector<16x16xf32>
    %cst_128 = arith.constant dense<0.000000e+00> : vector<20x16xf32>
    %243 = tpu.matmul %128, %242, %cst_128 {dimension_numbers = #tpu.dot_dimension_numbers<[1], [0], [0], [1], [0, 0, 1, 1], [], []>} : vector<20x16xf32>, vector<16x16xf32>, vector<20x16xf32> -> vector<20x16xf32>
    %c3_129 = arith.constant 3 : index
    %c0_130 = arith.constant 0 : index
    %c0_131 = arith.constant 0 : index
    %244 = vector.load %arg22[%c3_129, %c0_130, %c0_131] : memref<4x1x16xf32, #tpu.memory_space<vmem>>, vector<1x1x16xf32>
    %245 = vector.shape_cast %244 : vector<1x1x16xf32> to vector<1x16xf32>
    %c3_132 = arith.constant 3 : index
    %c0_133 = arith.constant 0 : index
    %c0_134 = arith.constant 0 : index
    %246 = vector.load %arg23[%c3_132, %c0_133, %c0_134] : memref<4x1x16xf32, #tpu.memory_space<vmem>>, vector<1x1x16xf32>
    %247 = vector.shape_cast %246 : vector<1x1x16xf32> to vector<1x16xf32>
    %cst_135 = arith.constant dense<0.000000e+00> : vector<1x20xf32>
    %248 = tpu.matmul %245, %243, %cst_135 {dimension_numbers = #tpu.dot_dimension_numbers<[1], [1], [0], [0], [0, 0, 1, 0], [], []>} : vector<1x16xf32>, vector<20x16xf32>, vector<1x20xf32> -> vector<1x20xf32>
    %249 = vector.broadcast %247 : vector<1x16xf32> to vector<20x16xf32>
    %250 = arith.mulf %243, %249 : vector<20x16xf32>
    %cst_136 = arith.constant dense<0.000000e+00> : vector<20xf32>
    %251 = vector.multi_reduction <add>, %250, %cst_136 [1] : vector<20x16xf32> to vector<20xf32>
    %252 = vector.shape_cast %251 : vector<20xf32> to vector<20x1xf32>
    %253 = vector.broadcast %252 : vector<20x1xf32> to vector<20x20xf32>
    %254 = vector.broadcast %248 : vector<1x20xf32> to vector<20x20xf32>
    %255 = arith.addf %253, %254 : vector<20x20xf32>
    %cst_137 = arith.constant 0.000000e+00 : f32
    %256 = vector.broadcast %cst_137 : f32 to vector<20x20xf32>
    %257 = arith.cmpf ogt, %255, %256 : vector<20x20xf32>
    %cst_138 = arith.constant 2.000000e-01 : f32
    %258 = vector.broadcast %cst_138 : f32 to vector<20x20xf32>
    %259 = arith.mulf %258, %255 : vector<20x20xf32>
    %260 = arith.select %257, %255, %259 : vector<20x20xi1>, vector<20x20xf32>
    %261 = arith.addf %260, %129 : vector<20x20xf32>
    %cst_139 = arith.constant dense<0xFF800000> : vector<20xf32>
    %262 = vector.multi_reduction <maximumf>, %261, %cst_139 [1] : vector<20x20xf32> to vector<20xf32>
    %263 = vector.shape_cast %262 : vector<20xf32> to vector<20x1xf32>
    %264 = vector.broadcast %263 : vector<20x1xf32> to vector<20x20xf32>
    %265 = arith.subf %261, %264 : vector<20x20xf32>
    %266 = math.exp %265 : vector<20x20xf32>
    %cst_140 = arith.constant dense<0.000000e+00> : vector<20xf32>
    %267 = vector.multi_reduction <add>, %266, %cst_140 [1] : vector<20x20xf32> to vector<20xf32>
    %268 = vector.shape_cast %267 : vector<20xf32> to vector<20x1xf32>
    %269 = tpu.reciprocal %268 {approx = true} : vector<20x1xf32> -> vector<20x1xf32>
    %270 = vector.broadcast %269 : vector<20x1xf32> to vector<20x20xf32>
    %271 = arith.mulf %266, %270 : vector<20x20xf32>
    %cst_141 = arith.constant dense<0.000000e+00> : vector<20x16xf32>
    %272 = tpu.matmul %271, %243, %cst_141 {dimension_numbers = #tpu.dot_dimension_numbers<[1], [0], [0], [1], [0, 0, 1, 1], [], []>} : vector<20x20xf32>, vector<20x16xf32>, vector<20x16xf32> -> vector<20x16xf32>
    %c3_142 = arith.constant 3 : index
    %c0_143 = arith.constant 0 : index
    %c0_144 = arith.constant 0 : index
    %273 = vector.load %arg24[%c3_142, %c0_143, %c0_144] : memref<4x1x16xf32, #tpu.memory_space<vmem>>, vector<1x1x16xf32>
    %274 = vector.shape_cast %273 : vector<1x1x16xf32> to vector<1x16xf32>
    %275 = vector.broadcast %274 : vector<1x16xf32> to vector<20x16xf32>
    %276 = arith.addf %272, %275 : vector<20x16xf32>
    %277 = math.tanh %276 : vector<20x16xf32>
    %c0_145 = arith.constant 0 : index
    %c0_146 = arith.constant 0 : index
    %c0_147 = arith.constant 0 : index
    %c0_148 = arith.constant 0 : index
    %278 = vector.load %arg25[%c0_145, %c0_146, %c0_147, %c0_148] : memref<4x4x16x8xf32, #tpu.memory_space<vmem>>, vector<1x1x16x8xf32>
    %279 = vector.shape_cast %278 : vector<1x1x16x8xf32> to vector<16x8xf32>
    %cst_149 = arith.constant dense<0.000000e+00> : vector<20x8xf32>
    %280 = tpu.matmul %166, %279, %cst_149 {dimension_numbers = #tpu.dot_dimension_numbers<[1], [0], [0], [1], [0, 0, 1, 1], [], []>} : vector<20x16xf32>, vector<16x8xf32>, vector<20x8xf32> -> vector<20x8xf32>
    %c1_150 = arith.constant 1 : index
    %c0_151 = arith.constant 0 : index
    %c0_152 = arith.constant 0 : index
    %c0_153 = arith.constant 0 : index
    %281 = vector.load %arg25[%c1_150, %c0_151, %c0_152, %c0_153] : memref<4x4x16x8xf32, #tpu.memory_space<vmem>>, vector<1x1x16x8xf32>
    %282 = vector.shape_cast %281 : vector<1x1x16x8xf32> to vector<16x8xf32>
    %cst_154 = arith.constant dense<0.000000e+00> : vector<20x8xf32>
    %283 = tpu.matmul %203, %282, %cst_154 {dimension_numbers = #tpu.dot_dimension_numbers<[1], [0], [0], [1], [0, 0, 1, 1], [], []>} : vector<20x16xf32>, vector<16x8xf32>, vector<20x8xf32> -> vector<20x8xf32>
    %284 = arith.addf %280, %283 : vector<20x8xf32>
    %c2_155 = arith.constant 2 : index
    %c0_156 = arith.constant 0 : index
    %c0_157 = arith.constant 0 : index
    %c0_158 = arith.constant 0 : index
    %285 = vector.load %arg25[%c2_155, %c0_156, %c0_157, %c0_158] : memref<4x4x16x8xf32, #tpu.memory_space<vmem>>, vector<1x1x16x8xf32>
    %286 = vector.shape_cast %285 : vector<1x1x16x8xf32> to vector<16x8xf32>
    %cst_159 = arith.constant dense<0.000000e+00> : vector<20x8xf32>
    %287 = tpu.matmul %240, %286, %cst_159 {dimension_numbers = #tpu.dot_dimension_numbers<[1], [0], [0], [1], [0, 0, 1, 1], [], []>} : vector<20x16xf32>, vector<16x8xf32>, vector<20x8xf32> -> vector<20x8xf32>
    %288 = arith.addf %284, %287 : vector<20x8xf32>
    %c3_160 = arith.constant 3 : index
    %c0_161 = arith.constant 0 : index
    %c0_162 = arith.constant 0 : index
    %c0_163 = arith.constant 0 : index
    %289 = vector.load %arg25[%c3_160, %c0_161, %c0_162, %c0_163] : memref<4x4x16x8xf32, #tpu.memory_space<vmem>>, vector<1x1x16x8xf32>
    %290 = vector.shape_cast %289 : vector<1x1x16x8xf32> to vector<16x8xf32>
    %cst_164 = arith.constant dense<0.000000e+00> : vector<20x8xf32>
    %291 = tpu.matmul %277, %290, %cst_164 {dimension_numbers = #tpu.dot_dimension_numbers<[1], [0], [0], [1], [0, 0, 1, 1], [], []>} : vector<20x16xf32>, vector<16x8xf32>, vector<20x8xf32> -> vector<20x8xf32>
    %292 = arith.addf %288, %291 : vector<20x8xf32>
    %c0_165 = arith.constant 0 : index
    %c0_166 = arith.constant 0 : index
    %c0_167 = arith.constant 0 : index
    %293 = vector.load %arg26[%c0_165, %c0_166, %c0_167] : memref<4x1x8xf32, #tpu.memory_space<vmem>>, vector<1x1x8xf32>
    %294 = vector.shape_cast %293 : vector<1x1x8xf32> to vector<1x8xf32>
    %c0_168 = arith.constant 0 : index
    %c0_169 = arith.constant 0 : index
    %c0_170 = arith.constant 0 : index
    %295 = vector.load %arg27[%c0_168, %c0_169, %c0_170] : memref<4x1x8xf32, #tpu.memory_space<vmem>>, vector<1x1x8xf32>
    %296 = vector.shape_cast %295 : vector<1x1x8xf32> to vector<1x8xf32>
    %cst_171 = arith.constant dense<0.000000e+00> : vector<1x20xf32>
    %297 = tpu.matmul %294, %292, %cst_171 {dimension_numbers = #tpu.dot_dimension_numbers<[1], [1], [0], [0], [0, 0, 1, 0], [], []>} : vector<1x8xf32>, vector<20x8xf32>, vector<1x20xf32> -> vector<1x20xf32>
    %298 = vector.broadcast %296 : vector<1x8xf32> to vector<20x8xf32>
    %299 = arith.mulf %292, %298 : vector<20x8xf32>
    %cst_172 = arith.constant dense<0.000000e+00> : vector<20xf32>
    %300 = vector.multi_reduction <add>, %299, %cst_172 [1] : vector<20x8xf32> to vector<20xf32>
    %301 = vector.shape_cast %300 : vector<20xf32> to vector<20x1xf32>
    %302 = vector.broadcast %301 : vector<20x1xf32> to vector<20x20xf32>
    %303 = vector.broadcast %297 : vector<1x20xf32> to vector<20x20xf32>
    %304 = arith.addf %302, %303 : vector<20x20xf32>
    %cst_173 = arith.constant 0.000000e+00 : f32
    %305 = vector.broadcast %cst_173 : f32 to vector<20x20xf32>
    %306 = arith.cmpf ogt, %304, %305 : vector<20x20xf32>
    %cst_174 = arith.constant 2.000000e-01 : f32
    %307 = vector.broadcast %cst_174 : f32 to vector<20x20xf32>
    %308 = arith.mulf %307, %304 : vector<20x20xf32>
    %309 = arith.select %306, %304, %308 : vector<20x20xi1>, vector<20x20xf32>
    %310 = arith.addf %309, %129 : vector<20x20xf32>
    %cst_175 = arith.constant dense<0xFF800000> : vector<20xf32>
    %311 = vector.multi_reduction <maximumf>, %310, %cst_175 [1] : vector<20x20xf32> to vector<20xf32>
    %312 = vector.shape_cast %311 : vector<20xf32> to vector<20x1xf32>
    %313 = vector.broadcast %312 : vector<20x1xf32> to vector<20x20xf32>
    %314 = arith.subf %310, %313 : vector<20x20xf32>
    %315 = math.exp %314 : vector<20x20xf32>
    %cst_176 = arith.constant dense<0.000000e+00> : vector<20xf32>
    %316 = vector.multi_reduction <add>, %315, %cst_176 [1] : vector<20x20xf32> to vector<20xf32>
    %317 = vector.shape_cast %316 : vector<20xf32> to vector<20x1xf32>
    %318 = tpu.reciprocal %317 {approx = true} : vector<20x1xf32> -> vector<20x1xf32>
    %319 = vector.broadcast %318 : vector<20x1xf32> to vector<20x20xf32>
    %320 = arith.mulf %315, %319 : vector<20x20xf32>
    %cst_177 = arith.constant dense<0.000000e+00> : vector<20x8xf32>
    %321 = tpu.matmul %320, %292, %cst_177 {dimension_numbers = #tpu.dot_dimension_numbers<[1], [0], [0], [1], [0, 0, 1, 1], [], []>} : vector<20x20xf32>, vector<20x8xf32>, vector<20x8xf32> -> vector<20x8xf32>
    %c0_178 = arith.constant 0 : index
    %c1_179 = arith.constant 1 : index
    %c0_180 = arith.constant 0 : index
    %c0_181 = arith.constant 0 : index
    %322 = vector.load %arg25[%c0_178, %c1_179, %c0_180, %c0_181] : memref<4x4x16x8xf32, #tpu.memory_space<vmem>>, vector<1x1x16x8xf32>
    %323 = vector.shape_cast %322 : vector<1x1x16x8xf32> to vector<16x8xf32>
    %cst_182 = arith.constant dense<0.000000e+00> : vector<20x8xf32>
    %324 = tpu.matmul %166, %323, %cst_182 {dimension_numbers = #tpu.dot_dimension_numbers<[1], [0], [0], [1], [0, 0, 1, 1], [], []>} : vector<20x16xf32>, vector<16x8xf32>, vector<20x8xf32> -> vector<20x8xf32>
    %c1_183 = arith.constant 1 : index
    %c1_184 = arith.constant 1 : index
    %c0_185 = arith.constant 0 : index
    %c0_186 = arith.constant 0 : index
    %325 = vector.load %arg25[%c1_183, %c1_184, %c0_185, %c0_186] : memref<4x4x16x8xf32, #tpu.memory_space<vmem>>, vector<1x1x16x8xf32>
    %326 = vector.shape_cast %325 : vector<1x1x16x8xf32> to vector<16x8xf32>
    %cst_187 = arith.constant dense<0.000000e+00> : vector<20x8xf32>
    %327 = tpu.matmul %203, %326, %cst_187 {dimension_numbers = #tpu.dot_dimension_numbers<[1], [0], [0], [1], [0, 0, 1, 1], [], []>} : vector<20x16xf32>, vector<16x8xf32>, vector<20x8xf32> -> vector<20x8xf32>
    %328 = arith.addf %324, %327 : vector<20x8xf32>
    %c2_188 = arith.constant 2 : index
    %c1_189 = arith.constant 1 : index
    %c0_190 = arith.constant 0 : index
    %c0_191 = arith.constant 0 : index
    %329 = vector.load %arg25[%c2_188, %c1_189, %c0_190, %c0_191] : memref<4x4x16x8xf32, #tpu.memory_space<vmem>>, vector<1x1x16x8xf32>
    %330 = vector.shape_cast %329 : vector<1x1x16x8xf32> to vector<16x8xf32>
    %cst_192 = arith.constant dense<0.000000e+00> : vector<20x8xf32>
    %331 = tpu.matmul %240, %330, %cst_192 {dimension_numbers = #tpu.dot_dimension_numbers<[1], [0], [0], [1], [0, 0, 1, 1], [], []>} : vector<20x16xf32>, vector<16x8xf32>, vector<20x8xf32> -> vector<20x8xf32>
    %332 = arith.addf %328, %331 : vector<20x8xf32>
    %c3_193 = arith.constant 3 : index
    %c1_194 = arith.constant 1 : index
    %c0_195 = arith.constant 0 : index
    %c0_196 = arith.constant 0 : index
    %333 = vector.load %arg25[%c3_193, %c1_194, %c0_195, %c0_196] : memref<4x4x16x8xf32, #tpu.memory_space<vmem>>, vector<1x1x16x8xf32>
    %334 = vector.shape_cast %333 : vector<1x1x16x8xf32> to vector<16x8xf32>
    %cst_197 = arith.constant dense<0.000000e+00> : vector<20x8xf32>
    %335 = tpu.matmul %277, %334, %cst_197 {dimension_numbers = #tpu.dot_dimension_numbers<[1], [0], [0], [1], [0, 0, 1, 1], [], []>} : vector<20x16xf32>, vector<16x8xf32>, vector<20x8xf32> -> vector<20x8xf32>
    %336 = arith.addf %332, %335 : vector<20x8xf32>
    %c1_198 = arith.constant 1 : index
    %c0_199 = arith.constant 0 : index
    %c0_200 = arith.constant 0 : index
    %337 = vector.load %arg26[%c1_198, %c0_199, %c0_200] : memref<4x1x8xf32, #tpu.memory_space<vmem>>, vector<1x1x8xf32>
    %338 = vector.shape_cast %337 : vector<1x1x8xf32> to vector<1x8xf32>
    %c1_201 = arith.constant 1 : index
    %c0_202 = arith.constant 0 : index
    %c0_203 = arith.constant 0 : index
    %339 = vector.load %arg27[%c1_201, %c0_202, %c0_203] : memref<4x1x8xf32, #tpu.memory_space<vmem>>, vector<1x1x8xf32>
    %340 = vector.shape_cast %339 : vector<1x1x8xf32> to vector<1x8xf32>
    %cst_204 = arith.constant dense<0.000000e+00> : vector<1x20xf32>
    %341 = tpu.matmul %338, %336, %cst_204 {dimension_numbers = #tpu.dot_dimension_numbers<[1], [1], [0], [0], [0, 0, 1, 0], [], []>} : vector<1x8xf32>, vector<20x8xf32>, vector<1x20xf32> -> vector<1x20xf32>
    %342 = vector.broadcast %340 : vector<1x8xf32> to vector<20x8xf32>
    %343 = arith.mulf %336, %342 : vector<20x8xf32>
    %cst_205 = arith.constant dense<0.000000e+00> : vector<20xf32>
    %344 = vector.multi_reduction <add>, %343, %cst_205 [1] : vector<20x8xf32> to vector<20xf32>
    %345 = vector.shape_cast %344 : vector<20xf32> to vector<20x1xf32>
    %346 = vector.broadcast %345 : vector<20x1xf32> to vector<20x20xf32>
    %347 = vector.broadcast %341 : vector<1x20xf32> to vector<20x20xf32>
    %348 = arith.addf %346, %347 : vector<20x20xf32>
    %cst_206 = arith.constant 0.000000e+00 : f32
    %349 = vector.broadcast %cst_206 : f32 to vector<20x20xf32>
    %350 = arith.cmpf ogt, %348, %349 : vector<20x20xf32>
    %cst_207 = arith.constant 2.000000e-01 : f32
    %351 = vector.broadcast %cst_207 : f32 to vector<20x20xf32>
    %352 = arith.mulf %351, %348 : vector<20x20xf32>
    %353 = arith.select %350, %348, %352 : vector<20x20xi1>, vector<20x20xf32>
    %354 = arith.addf %353, %129 : vector<20x20xf32>
    %cst_208 = arith.constant dense<0xFF800000> : vector<20xf32>
    %355 = vector.multi_reduction <maximumf>, %354, %cst_208 [1] : vector<20x20xf32> to vector<20xf32>
    %356 = vector.shape_cast %355 : vector<20xf32> to vector<20x1xf32>
    %357 = vector.broadcast %356 : vector<20x1xf32> to vector<20x20xf32>
    %358 = arith.subf %354, %357 : vector<20x20xf32>
    %359 = math.exp %358 : vector<20x20xf32>
    %cst_209 = arith.constant dense<0.000000e+00> : vector<20xf32>
    %360 = vector.multi_reduction <add>, %359, %cst_209 [1] : vector<20x20xf32> to vector<20xf32>
    %361 = vector.shape_cast %360 : vector<20xf32> to vector<20x1xf32>
    %362 = tpu.reciprocal %361 {approx = true} : vector<20x1xf32> -> vector<20x1xf32>
    %363 = vector.broadcast %362 : vector<20x1xf32> to vector<20x20xf32>
    %364 = arith.mulf %359, %363 : vector<20x20xf32>
    %cst_210 = arith.constant dense<0.000000e+00> : vector<20x8xf32>
    %365 = tpu.matmul %364, %336, %cst_210 {dimension_numbers = #tpu.dot_dimension_numbers<[1], [0], [0], [1], [0, 0, 1, 1], [], []>} : vector<20x20xf32>, vector<20x8xf32>, vector<20x8xf32> -> vector<20x8xf32>
    %366 = arith.addf %321, %365 : vector<20x8xf32>
    %c0_211 = arith.constant 0 : index
    %c2_212 = arith.constant 2 : index
    %c0_213 = arith.constant 0 : index
    %c0_214 = arith.constant 0 : index
    %367 = vector.load %arg25[%c0_211, %c2_212, %c0_213, %c0_214] : memref<4x4x16x8xf32, #tpu.memory_space<vmem>>, vector<1x1x16x8xf32>
    %368 = vector.shape_cast %367 : vector<1x1x16x8xf32> to vector<16x8xf32>
    %cst_215 = arith.constant dense<0.000000e+00> : vector<20x8xf32>
    %369 = tpu.matmul %166, %368, %cst_215 {dimension_numbers = #tpu.dot_dimension_numbers<[1], [0], [0], [1], [0, 0, 1, 1], [], []>} : vector<20x16xf32>, vector<16x8xf32>, vector<20x8xf32> -> vector<20x8xf32>
    %c1_216 = arith.constant 1 : index
    %c2_217 = arith.constant 2 : index
    %c0_218 = arith.constant 0 : index
    %c0_219 = arith.constant 0 : index
    %370 = vector.load %arg25[%c1_216, %c2_217, %c0_218, %c0_219] : memref<4x4x16x8xf32, #tpu.memory_space<vmem>>, vector<1x1x16x8xf32>
    %371 = vector.shape_cast %370 : vector<1x1x16x8xf32> to vector<16x8xf32>
    %cst_220 = arith.constant dense<0.000000e+00> : vector<20x8xf32>
    %372 = tpu.matmul %203, %371, %cst_220 {dimension_numbers = #tpu.dot_dimension_numbers<[1], [0], [0], [1], [0, 0, 1, 1], [], []>} : vector<20x16xf32>, vector<16x8xf32>, vector<20x8xf32> -> vector<20x8xf32>
    %373 = arith.addf %369, %372 : vector<20x8xf32>
    %c2_221 = arith.constant 2 : index
    %c2_222 = arith.constant 2 : index
    %c0_223 = arith.constant 0 : index
    %c0_224 = arith.constant 0 : index
    %374 = vector.load %arg25[%c2_221, %c2_222, %c0_223, %c0_224] : memref<4x4x16x8xf32, #tpu.memory_space<vmem>>, vector<1x1x16x8xf32>
    %375 = vector.shape_cast %374 : vector<1x1x16x8xf32> to vector<16x8xf32>
    %cst_225 = arith.constant dense<0.000000e+00> : vector<20x8xf32>
    %376 = tpu.matmul %240, %375, %cst_225 {dimension_numbers = #tpu.dot_dimension_numbers<[1], [0], [0], [1], [0, 0, 1, 1], [], []>} : vector<20x16xf32>, vector<16x8xf32>, vector<20x8xf32> -> vector<20x8xf32>
    %377 = arith.addf %373, %376 : vector<20x8xf32>
    %c3_226 = arith.constant 3 : index
    %c2_227 = arith.constant 2 : index
    %c0_228 = arith.constant 0 : index
    %c0_229 = arith.constant 0 : index
    %378 = vector.load %arg25[%c3_226, %c2_227, %c0_228, %c0_229] : memref<4x4x16x8xf32, #tpu.memory_space<vmem>>, vector<1x1x16x8xf32>
    %379 = vector.shape_cast %378 : vector<1x1x16x8xf32> to vector<16x8xf32>
    %cst_230 = arith.constant dense<0.000000e+00> : vector<20x8xf32>
    %380 = tpu.matmul %277, %379, %cst_230 {dimension_numbers = #tpu.dot_dimension_numbers<[1], [0], [0], [1], [0, 0, 1, 1], [], []>} : vector<20x16xf32>, vector<16x8xf32>, vector<20x8xf32> -> vector<20x8xf32>
    %381 = arith.addf %377, %380 : vector<20x8xf32>
    %c2_231 = arith.constant 2 : index
    %c0_232 = arith.constant 0 : index
    %c0_233 = arith.constant 0 : index
    %382 = vector.load %arg26[%c2_231, %c0_232, %c0_233] : memref<4x1x8xf32, #tpu.memory_space<vmem>>, vector<1x1x8xf32>
    %383 = vector.shape_cast %382 : vector<1x1x8xf32> to vector<1x8xf32>
    %c2_234 = arith.constant 2 : index
    %c0_235 = arith.constant 0 : index
    %c0_236 = arith.constant 0 : index
    %384 = vector.load %arg27[%c2_234, %c0_235, %c0_236] : memref<4x1x8xf32, #tpu.memory_space<vmem>>, vector<1x1x8xf32>
    %385 = vector.shape_cast %384 : vector<1x1x8xf32> to vector<1x8xf32>
    %cst_237 = arith.constant dense<0.000000e+00> : vector<1x20xf32>
    %386 = tpu.matmul %383, %381, %cst_237 {dimension_numbers = #tpu.dot_dimension_numbers<[1], [1], [0], [0], [0, 0, 1, 0], [], []>} : vector<1x8xf32>, vector<20x8xf32>, vector<1x20xf32> -> vector<1x20xf32>
    %387 = vector.broadcast %385 : vector<1x8xf32> to vector<20x8xf32>
    %388 = arith.mulf %381, %387 : vector<20x8xf32>
    %cst_238 = arith.constant dense<0.000000e+00> : vector<20xf32>
    %389 = vector.multi_reduction <add>, %388, %cst_238 [1] : vector<20x8xf32> to vector<20xf32>
    %390 = vector.shape_cast %389 : vector<20xf32> to vector<20x1xf32>
    %391 = vector.broadcast %390 : vector<20x1xf32> to vector<20x20xf32>
    %392 = vector.broadcast %386 : vector<1x20xf32> to vector<20x20xf32>
    %393 = arith.addf %391, %392 : vector<20x20xf32>
    %cst_239 = arith.constant 0.000000e+00 : f32
    %394 = vector.broadcast %cst_239 : f32 to vector<20x20xf32>
    %395 = arith.cmpf ogt, %393, %394 : vector<20x20xf32>
    %cst_240 = arith.constant 2.000000e-01 : f32
    %396 = vector.broadcast %cst_240 : f32 to vector<20x20xf32>
    %397 = arith.mulf %396, %393 : vector<20x20xf32>
    %398 = arith.select %395, %393, %397 : vector<20x20xi1>, vector<20x20xf32>
    %399 = arith.addf %398, %129 : vector<20x20xf32>
    %cst_241 = arith.constant dense<0xFF800000> : vector<20xf32>
    %400 = vector.multi_reduction <maximumf>, %399, %cst_241 [1] : vector<20x20xf32> to vector<20xf32>
    %401 = vector.shape_cast %400 : vector<20xf32> to vector<20x1xf32>
    %402 = vector.broadcast %401 : vector<20x1xf32> to vector<20x20xf32>
    %403 = arith.subf %399, %402 : vector<20x20xf32>
    %404 = math.exp %403 : vector<20x20xf32>
    %cst_242 = arith.constant dense<0.000000e+00> : vector<20xf32>
    %405 = vector.multi_reduction <add>, %404, %cst_242 [1] : vector<20x20xf32> to vector<20xf32>
    %406 = vector.shape_cast %405 : vector<20xf32> to vector<20x1xf32>
    %407 = tpu.reciprocal %406 {approx = true} : vector<20x1xf32> -> vector<20x1xf32>
    %408 = vector.broadcast %407 : vector<20x1xf32> to vector<20x20xf32>
    %409 = arith.mulf %404, %408 : vector<20x20xf32>
    %cst_243 = arith.constant dense<0.000000e+00> : vector<20x8xf32>
    %410 = tpu.matmul %409, %381, %cst_243 {dimension_numbers = #tpu.dot_dimension_numbers<[1], [0], [0], [1], [0, 0, 1, 1], [], []>} : vector<20x20xf32>, vector<20x8xf32>, vector<20x8xf32> -> vector<20x8xf32>
    %411 = arith.addf %366, %410 : vector<20x8xf32>
    %c0_244 = arith.constant 0 : index
    %c3_245 = arith.constant 3 : index
    %c0_246 = arith.constant 0 : index
    %c0_247 = arith.constant 0 : index
    %412 = vector.load %arg25[%c0_244, %c3_245, %c0_246, %c0_247] : memref<4x4x16x8xf32, #tpu.memory_space<vmem>>, vector<1x1x16x8xf32>
    %413 = vector.shape_cast %412 : vector<1x1x16x8xf32> to vector<16x8xf32>
    %cst_248 = arith.constant dense<0.000000e+00> : vector<20x8xf32>
    %414 = tpu.matmul %166, %413, %cst_248 {dimension_numbers = #tpu.dot_dimension_numbers<[1], [0], [0], [1], [0, 0, 1, 1], [], []>} : vector<20x16xf32>, vector<16x8xf32>, vector<20x8xf32> -> vector<20x8xf32>
    %c1_249 = arith.constant 1 : index
    %c3_250 = arith.constant 3 : index
    %c0_251 = arith.constant 0 : index
    %c0_252 = arith.constant 0 : index
    %415 = vector.load %arg25[%c1_249, %c3_250, %c0_251, %c0_252] : memref<4x4x16x8xf32, #tpu.memory_space<vmem>>, vector<1x1x16x8xf32>
    %416 = vector.shape_cast %415 : vector<1x1x16x8xf32> to vector<16x8xf32>
    %cst_253 = arith.constant dense<0.000000e+00> : vector<20x8xf32>
    %417 = tpu.matmul %203, %416, %cst_253 {dimension_numbers = #tpu.dot_dimension_numbers<[1], [0], [0], [1], [0, 0, 1, 1], [], []>} : vector<20x16xf32>, vector<16x8xf32>, vector<20x8xf32> -> vector<20x8xf32>
    %418 = arith.addf %414, %417 : vector<20x8xf32>
    %c2_254 = arith.constant 2 : index
    %c3_255 = arith.constant 3 : index
    %c0_256 = arith.constant 0 : index
    %c0_257 = arith.constant 0 : index
    %419 = vector.load %arg25[%c2_254, %c3_255, %c0_256, %c0_257] : memref<4x4x16x8xf32, #tpu.memory_space<vmem>>, vector<1x1x16x8xf32>
    %420 = vector.shape_cast %419 : vector<1x1x16x8xf32> to vector<16x8xf32>
    %cst_258 = arith.constant dense<0.000000e+00> : vector<20x8xf32>
    %421 = tpu.matmul %240, %420, %cst_258 {dimension_numbers = #tpu.dot_dimension_numbers<[1], [0], [0], [1], [0, 0, 1, 1], [], []>} : vector<20x16xf32>, vector<16x8xf32>, vector<20x8xf32> -> vector<20x8xf32>
    %422 = arith.addf %418, %421 : vector<20x8xf32>
    %c3_259 = arith.constant 3 : index
    %c3_260 = arith.constant 3 : index
    %c0_261 = arith.constant 0 : index
    %c0_262 = arith.constant 0 : index
    %423 = vector.load %arg25[%c3_259, %c3_260, %c0_261, %c0_262] : memref<4x4x16x8xf32, #tpu.memory_space<vmem>>, vector<1x1x16x8xf32>
    %424 = vector.shape_cast %423 : vector<1x1x16x8xf32> to vector<16x8xf32>
    %cst_263 = arith.constant dense<0.000000e+00> : vector<20x8xf32>
    %425 = tpu.matmul %277, %424, %cst_263 {dimension_numbers = #tpu.dot_dimension_numbers<[1], [0], [0], [1], [0, 0, 1, 1], [], []>} : vector<20x16xf32>, vector<16x8xf32>, vector<20x8xf32> -> vector<20x8xf32>
    %426 = arith.addf %422, %425 : vector<20x8xf32>
    %c3_264 = arith.constant 3 : index
    %c0_265 = arith.constant 0 : index
    %c0_266 = arith.constant 0 : index
    %427 = vector.load %arg26[%c3_264, %c0_265, %c0_266] : memref<4x1x8xf32, #tpu.memory_space<vmem>>, vector<1x1x8xf32>
    %428 = vector.shape_cast %427 : vector<1x1x8xf32> to vector<1x8xf32>
    %c3_267 = arith.constant 3 : index
    %c0_268 = arith.constant 0 : index
    %c0_269 = arith.constant 0 : index
    %429 = vector.load %arg27[%c3_267, %c0_268, %c0_269] : memref<4x1x8xf32, #tpu.memory_space<vmem>>, vector<1x1x8xf32>
    %430 = vector.shape_cast %429 : vector<1x1x8xf32> to vector<1x8xf32>
    %cst_270 = arith.constant dense<0.000000e+00> : vector<1x20xf32>
    %431 = tpu.matmul %428, %426, %cst_270 {dimension_numbers = #tpu.dot_dimension_numbers<[1], [1], [0], [0], [0, 0, 1, 0], [], []>} : vector<1x8xf32>, vector<20x8xf32>, vector<1x20xf32> -> vector<1x20xf32>
    %432 = vector.broadcast %430 : vector<1x8xf32> to vector<20x8xf32>
    %433 = arith.mulf %426, %432 : vector<20x8xf32>
    %cst_271 = arith.constant dense<0.000000e+00> : vector<20xf32>
    %434 = vector.multi_reduction <add>, %433, %cst_271 [1] : vector<20x8xf32> to vector<20xf32>
    %435 = vector.shape_cast %434 : vector<20xf32> to vector<20x1xf32>
    %436 = vector.broadcast %435 : vector<20x1xf32> to vector<20x20xf32>
    %437 = vector.broadcast %431 : vector<1x20xf32> to vector<20x20xf32>
    %438 = arith.addf %436, %437 : vector<20x20xf32>
    %cst_272 = arith.constant 0.000000e+00 : f32
    %439 = vector.broadcast %cst_272 : f32 to vector<20x20xf32>
    %440 = arith.cmpf ogt, %438, %439 : vector<20x20xf32>
    %cst_273 = arith.constant 2.000000e-01 : f32
    %441 = vector.broadcast %cst_273 : f32 to vector<20x20xf32>
    %442 = arith.mulf %441, %438 : vector<20x20xf32>
    %443 = arith.select %440, %438, %442 : vector<20x20xi1>, vector<20x20xf32>
    %444 = arith.addf %443, %129 : vector<20x20xf32>
    %cst_274 = arith.constant dense<0xFF800000> : vector<20xf32>
    %445 = vector.multi_reduction <maximumf>, %444, %cst_274 [1] : vector<20x20xf32> to vector<20xf32>
    %446 = vector.shape_cast %445 : vector<20xf32> to vector<20x1xf32>
    %447 = vector.broadcast %446 : vector<20x1xf32> to vector<20x20xf32>
    %448 = arith.subf %444, %447 : vector<20x20xf32>
    %449 = math.exp %448 : vector<20x20xf32>
    %cst_275 = arith.constant dense<0.000000e+00> : vector<20xf32>
    %450 = vector.multi_reduction <add>, %449, %cst_275 [1] : vector<20x20xf32> to vector<20xf32>
    %451 = vector.shape_cast %450 : vector<20xf32> to vector<20x1xf32>
    %452 = tpu.reciprocal %451 {approx = true} : vector<20x1xf32> -> vector<20x1xf32>
    %453 = vector.broadcast %452 : vector<20x1xf32> to vector<20x20xf32>
    %454 = arith.mulf %449, %453 : vector<20x20xf32>
    %cst_276 = arith.constant dense<0.000000e+00> : vector<20x8xf32>
    %455 = tpu.matmul %454, %426, %cst_276 {dimension_numbers = #tpu.dot_dimension_numbers<[1], [0], [0], [1], [0, 0, 1, 1], [], []>} : vector<20x20xf32>, vector<20x8xf32>, vector<20x8xf32> -> vector<20x8xf32>
    %456 = arith.addf %411, %455 : vector<20x8xf32>
    %cst_277 = arith.constant 2.500000e-01 : f32
    %457 = vector.broadcast %cst_277 : f32 to vector<20x8xf32>
    %458 = arith.mulf %456, %457 : vector<20x8xf32>
    %c0_278 = arith.constant 0 : index
    %c0_279 = arith.constant 0 : index
    %459 = vector.load %arg28[%c0_278, %c0_279] : memref<1x8xf32, #tpu.memory_space<vmem>>, vector<1x8xf32>
    %460 = vector.broadcast %459 : vector<1x8xf32> to vector<20x8xf32>
    %461 = arith.addf %458, %460 : vector<20x8xf32>
    %462 = math.tanh %461 : vector<20x8xf32>
    %463 = vector.extract_strided_slice %462 {offsets = [0, 0], sizes = [8, 8], strides = [1, 1]} : vector<20x8xf32> to vector<8x8xf32>
    %464 = vector.extract_strided_slice %462 {offsets = [8, 0], sizes = [12, 8], strides = [1, 1]} : vector<20x8xf32> to vector<12x8xf32>
    %c0_280 = arith.constant 0 : index
    %c0_281 = arith.constant 0 : index
    %465 = vector.load %arg29[%c0_280, %c0_281] : memref<16x16xf32, #tpu.memory_space<vmem>>, vector<16x16xf32>
    %cst_282 = arith.constant dense<0.000000e+00> : vector<12x16xf32>
    %466 = tpu.matmul %64, %465, %cst_282 {dimension_numbers = #tpu.dot_dimension_numbers<[1], [0], [0], [1], [0, 0, 1, 1], [], []>} : vector<12x16xf32>, vector<16x16xf32>, vector<12x16xf32> -> vector<12x16xf32>
    %c0_283 = arith.constant 0 : index
    %c0_284 = arith.constant 0 : index
    %467 = vector.load %arg30[%c0_283, %c0_284] : memref<8x16xf32, #tpu.memory_space<vmem>>, vector<8x16xf32>
    %cst_285 = arith.constant dense<0.000000e+00> : vector<12x16xf32>
    %468 = tpu.matmul %464, %467, %cst_285 {dimension_numbers = #tpu.dot_dimension_numbers<[1], [0], [0], [1], [0, 0, 1, 1], [], []>} : vector<12x8xf32>, vector<8x16xf32>, vector<12x16xf32> -> vector<12x16xf32>
    %469 = arith.addf %466, %468 : vector<12x16xf32>
    %c0_286 = arith.constant 0 : index
    %c0_287 = arith.constant 0 : index
    %470 = vector.load %arg31[%c0_286, %c0_287] : memref<1x16xf32, #tpu.memory_space<vmem>>, vector<1x16xf32>
    %471 = vector.broadcast %470 : vector<1x16xf32> to vector<12x16xf32>
    %472 = arith.addf %469, %471 : vector<12x16xf32>
    %473 = math.tanh %472 : vector<12x16xf32>
    %c0_288 = arith.constant 0 : index
    %c0_289 = arith.constant 0 : index
    %474 = vector.load %arg32[%c0_288, %c0_289] : memref<16x1xf32, #tpu.memory_space<vmem>>, vector<16x1xf32>
    %cst_290 = arith.constant dense<0.000000e+00> : vector<12x1xf32>
    %475 = tpu.matmul %473, %474, %cst_290 {dimension_numbers = #tpu.dot_dimension_numbers<[1], [0], [0], [1], [0, 0, 1, 1], [], []>} : vector<12x16xf32>, vector<16x1xf32>, vector<12x1xf32> -> vector<12x1xf32>
    %c0_291 = arith.constant 0 : index
    %c0_292 = arith.constant 0 : index
    %476 = vector.load %arg33[%c0_291, %c0_292] : memref<1x1xf32, #tpu.memory_space<vmem>>, vector<1x1xf32>
    %477 = vector.broadcast %476 : vector<1x1xf32> to vector<12x1xf32>
    %478 = arith.addf %475, %477 : vector<12x1xf32>
    %c0_293 = arith.constant 0 : index
    %c0_294 = arith.constant 0 : index
    %479 = vector.load %arg39[%c0_293, %c0_294] : memref<12x1xf32, #tpu.memory_space<vmem>>, vector<12x1xf32>
    tpu.vector_store %arg39[%c0_293, %c0_294], %478 {strides = array<i32>} : memref<12x1xf32, #tpu.memory_space<vmem>>, vector<12x1xf32>,
    %c0_295 = arith.constant 0 : index
    %c0_296 = arith.constant 0 : index
    %480 = vector.load %arg34[%c0_295, %c0_296] : memref<16x16xf32, #tpu.memory_space<vmem>>, vector<16x16xf32>
    %cst_297 = arith.constant dense<0.000000e+00> : vector<8x16xf32>
    %481 = tpu.matmul %127, %480, %cst_297 {dimension_numbers = #tpu.dot_dimension_numbers<[1], [0], [0], [1], [0, 0, 1, 1], [], []>} : vector<8x16xf32>, vector<16x16xf32>, vector<8x16xf32> -> vector<8x16xf32>
    %c0_298 = arith.constant 0 : index
    %c0_299 = arith.constant 0 : index
    %482 = vector.load %arg35[%c0_298, %c0_299] : memref<8x16xf32, #tpu.memory_space<vmem>>, vector<8x16xf32>
    %cst_300 = arith.constant dense<0.000000e+00> : vector<8x16xf32>
    %483 = tpu.matmul %463, %482, %cst_300 {dimension_numbers = #tpu.dot_dimension_numbers<[1], [0], [0], [1], [0, 0, 1, 1], [], []>} : vector<8x8xf32>, vector<8x16xf32>, vector<8x16xf32> -> vector<8x16xf32>
    %484 = arith.addf %481, %483 : vector<8x16xf32>
    %c0_301 = arith.constant 0 : index
    %c0_302 = arith.constant 0 : index
    %485 = vector.load %arg36[%c0_301, %c0_302] : memref<1x16xf32, #tpu.memory_space<vmem>>, vector<1x16xf32>
    %486 = vector.broadcast %485 : vector<1x16xf32> to vector<8x16xf32>
    %487 = arith.addf %484, %486 : vector<8x16xf32>
    %488 = math.tanh %487 : vector<8x16xf32>
    %c0_303 = arith.constant 0 : index
    %c0_304 = arith.constant 0 : index
    %489 = vector.load %arg37[%c0_303, %c0_304] : memref<16x1xf32, #tpu.memory_space<vmem>>, vector<16x1xf32>
    %cst_305 = arith.constant dense<0.000000e+00> : vector<8x1xf32>
    %490 = tpu.matmul %488, %489, %cst_305 {dimension_numbers = #tpu.dot_dimension_numbers<[1], [0], [0], [1], [0, 0, 1, 1], [], []>} : vector<8x16xf32>, vector<16x1xf32>, vector<8x1xf32> -> vector<8x1xf32>
    %c0_306 = arith.constant 0 : index
    %c0_307 = arith.constant 0 : index
    %491 = vector.load %arg38[%c0_306, %c0_307] : memref<1x1xf32, #tpu.memory_space<vmem>>, vector<1x1xf32>
    %492 = vector.broadcast %491 : vector<1x1xf32> to vector<8x1xf32>
    %493 = arith.addf %490, %492 : vector<8x1xf32>
    %c0_308 = arith.constant 0 : index
    %c0_309 = arith.constant 0 : index
    %494 = vector.load %arg42[%c0_308, %c0_309] : memref<8x1xf32, #tpu.memory_space<vmem>>, vector<8x1xf32>
    tpu.vector_store %arg42[%c0_308, %c0_309], %493 {strides = array<i32>} : memref<8x1xf32, #tpu.memory_space<vmem>>, vector<8x1xf32>,
    %c0_310 = arith.constant 0 : index
    %c0_311 = arith.constant 0 : index
    %495 = vector.load %arg40[%c0_310, %c0_311] : memref<12x16xf32, #tpu.memory_space<vmem>>, vector<12x16xf32>
    tpu.vector_store %arg40[%c0_310, %c0_311], %64 {strides = array<i32>} : memref<12x16xf32, #tpu.memory_space<vmem>>, vector<12x16xf32>,
    %c0_312 = arith.constant 0 : index
    %c0_313 = arith.constant 0 : index
    %496 = vector.load %arg41[%c0_312, %c0_313] : memref<12x8xf32, #tpu.memory_space<vmem>>, vector<12x8xf32>
    tpu.vector_store %arg41[%c0_312, %c0_313], %464 {strides = array<i32>} : memref<12x8xf32, #tpu.memory_space<vmem>>, vector<12x8xf32>,
    %c0_314 = arith.constant 0 : index
    %c0_315 = arith.constant 0 : index
    %497 = vector.load %arg43[%c0_314, %c0_315] : memref<8x16xf32, #tpu.memory_space<vmem>>, vector<8x16xf32>
    tpu.vector_store %arg43[%c0_314, %c0_315], %127 {strides = array<i32>} : memref<8x16xf32, #tpu.memory_space<vmem>>, vector<8x16xf32>,
    %c0_316 = arith.constant 0 : index
    %c0_317 = arith.constant 0 : index
    %498 = vector.load %arg44[%c0_316, %c0_317] : memref<8x8xf32, #tpu.memory_space<vmem>>, vector<8x8xf32>
    tpu.vector_store %arg44[%c0_316, %c0_317], %463 {strides = array<i32>} : memref<8x8xf32, #tpu.memory_space<vmem>>, vector<8x8xf32>,
    return
  }
}

</mosaic_0001>

<llo_original>
// kernel: tpu_custom_call.1
$region0: #{tpu_custom_call.1}
  #allocation0 [shape = 'u32[]', space=smem, size = 0x4, offset = 0x4, fixed_abs, tag = 'smem constant byte address 0x4 - core index']
  #allocation1 [shape = 'u32[72,128]{1,0:T(1,128)}', space=vmem, size = 0x9000, scoped, tag = 'internal scratch']
  #allocation2 [shape = 'f32[1,1]{1,0:T(1,128)S(1)}', space=vmem, size = 0x200, scoped, tag = 'scoped memory for tpu_custom_call.1']
  #allocation3 [shape = 'f32[1,1]{1,0:T(1,128)S(1)}', space=vmem, size = 0x200, scoped, tag = 'scoped memory for tpu_custom_call.1']
  %s0 = inlined_call_operand.smem [shape: u32[45], index: -1, kind: input, shape index: {}]
  %s1 = sld [smem:[%s0]]
  %s2 = scalar_lea.smem %s0, 1
  %s3 = sld [smem:[%s2]]
  %s4 = scalar_lea.smem %s0, 2
  %s5 = sld [smem:[%s4]]
  %s6 = scalar_lea.smem %s0, 3
  %s7 = sld [smem:[%s6]]
  %s8 = scalar_lea.smem %s0, 4
  %s9 = sld [smem:[%s8]]
  %s10 = scalar_lea.smem %s0, 5
  %s11 = sld [smem:[%s10]]
  %s12 = scalar_lea.smem %s0, 6
  %s13 = sld [smem:[%s12]]
  %s14 = scalar_lea.smem %s0, 7
  %s15 = sld [smem:[%s14]]
  %s16 = scalar_lea.smem %s0, 8
  %s17 = sld [smem:[%s16]]
  %s18 = scalar_lea.smem %s0, 9
  %s19 = sld [smem:[%s18]]
  %s20 = scalar_lea.smem %s0, 10
  %s21 = sld [smem:[%s20]]
  %s22 = scalar_lea.smem %s0, 11
  %s23 = sld [smem:[%s22]]
  %s24 = scalar_lea.smem %s0, 12
  %s25 = sld [smem:[%s24]]
  %s26 = scalar_lea.smem %s0, 13
  %s27 = sld [smem:[%s26]]
  %s28 = scalar_lea.smem %s0, 14
  %s29 = sld [smem:[%s28]]
  %s30 = scalar_lea.smem %s0, 15
  %s31 = sld [smem:[%s30]]
  %s32 = scalar_lea.smem %s0, 16
  %s33 = sld [smem:[%s32]]
  %s34 = scalar_lea.smem %s0, 17
  %s35 = sld [smem:[%s34]]
  %s36 = scalar_lea.smem %s0, 18
  %s37 = sld [smem:[%s36]]
  %s38 = scalar_lea.smem %s0, 19
  %s39 = sld [smem:[%s38]]
  %s40 = scalar_lea.smem %s0, 20
  %s41 = sld [smem:[%s40]]
  %s42 = scalar_lea.smem %s0, 21
  %s43 = sld [smem:[%s42]]
  %s44 = scalar_lea.smem %s0, 22
  %s45 = sld [smem:[%s44]]
  %s46 = scalar_lea.smem %s0, 23
  %s47 = sld [smem:[%s46]]
  %s48 = scalar_lea.smem %s0, 24
  %s49 = sld [smem:[%s48]]
  %s50 = scalar_lea.smem %s0, 25
  %s51 = sld [smem:[%s50]]
  %s52 = scalar_lea.smem %s0, 26
  %s53 = sld [smem:[%s52]]
  %s54 = scalar_lea.smem %s0, 27
  %s55 = sld [smem:[%s54]]
  %s56 = scalar_lea.smem %s0, 28
  %s57 = sld [smem:[%s56]]
  %s58 = scalar_lea.smem %s0, 29
  %s59 = sld [smem:[%s58]]
  %s60 = scalar_lea.smem %s0, 30
  %s61 = sld [smem:[%s60]]
  %s62 = scalar_lea.smem %s0, 31
  %s63 = sld [smem:[%s62]]
  %s64 = scalar_lea.smem %s0, 32
  %s65 = sld [smem:[%s64]]
  %s66 = scalar_lea.smem %s0, 33
  %s67 = sld [smem:[%s66]]
  %s68 = scalar_lea.smem %s0, 34
  %s69 = sld [smem:[%s68]]
  %s70 = scalar_lea.smem %s0, 35
  %s71 = sld [smem:[%s70]]
  %s72 = scalar_lea.smem %s0, 36
  %s73 = sld [smem:[%s72]]
  %s74 = scalar_lea.smem %s0, 37
  %s75 = sld [smem:[%s74]]
  %s76 = scalar_lea.smem %s0, 38
  %s77 = sld [smem:[%s76]]
  %s78 = scalar_lea.smem %s0, 39
  %s79 = sld [smem:[%s78]]
  %s80 = scalar_lea.smem %s0, 40
  %s81 = sld [smem:[%s80]]
  %s82 = scalar_lea.smem %s0, 41
  %s83 = sld [smem:[%s82]]
  %s84 = scalar_lea.smem %s0, 42
  %s85 = sld [smem:[%s84]]
  %s86 = scalar_lea.smem %s0, 43
  %s87 = sld [smem:[%s86]]
  %s88 = scalar_lea.smem %s0, 44
  %s89 = sld [smem:[%s88]]
  %90 = xla_tuple %s79, %s81, %s83, %s85, %s87, %s89
  %s91 = sld [smem:[#allocation0]]
  $region206: #{tpu_custom_call.1} parent=0
    _
  %s93 = ssub.s32 1, %s91
  %s94 = scalar_select 0, %s93, %s91
  %v95 = vstv %s67
  %96 = vst [vmem:[#allocation2] sm:$0x1] %v95
  %v97 = vstv %s77
  %98 = vst [vmem:[#allocation3] sm:$0x1] %v97
  $region1: #{tpu_custom_call.1} parent=0
    #allocation4 [shape = 'u8[8192]{0}', space=vmem, size = 0x2000, scoped, tag = 'output window, operand 1, single buffered']
    #allocation5 [shape = 's32[1]{0}', space=sflag, size = 0x4, scoped, tag = 'scoped memory for tpu_custom_call.1']
    #allocation6 [shape = 'u8[4096]{0}', space=vmem, size = 0x1000, scoped, tag = 'output window, operand 4, single buffered']
    #allocation7 [shape = 's32[1]{0}', space=sflag, size = 0x4, scoped, tag = 'scoped memory for tpu_custom_call.1']
    #allocation8 [shape = 'u8[4096]{0}', space=vmem, size = 0x1000, scoped, tag = 'output window, operand 5, single buffered']
    %99 = vsyncpa [#allocation5], 0
    %100 = vsyncpa [#allocation7], 0
    // Predicated region
    $region2: #{tpu_custom_call.1} parent=1 // pred_check
      _
    $region3: #{tpu_custom_call.1} parent=1 // pred_check_branch
      %102 = sbr.rel (0) target = $region5
    $region4: #{tpu_custom_call.1} parent=1 // pred_region
      _
    $region5: #{tpu_custom_call.1} parent=1 // pred_fallthru
      _
    // Predicated region
    $region6: #{tpu_custom_call.1} parent=1 // pred_check
      _
    $region7: #{tpu_custom_call.1} parent=1 // pred_check_branch
      %104 = sbr.rel (0) target = $region9
    $region8: #{tpu_custom_call.1} parent=1 // pred_region
      _
    $region9: #{tpu_custom_call.1} parent=1 // pred_fallthru
      _
    // Predicated region
    $region10: #{tpu_custom_call.1} parent=1 // pred_check
      _
    $region11: #{tpu_custom_call.1} parent=1 // pred_check_branch
      %106 = sbr.rel (0) target = $region13
    $region12: #{tpu_custom_call.1} parent=1 // pred_region
      _
    $region13: #{tpu_custom_call.1} parent=1 // pred_fallthru
      _
    // Predicated region
    $region14: #{tpu_custom_call.1} parent=1 // pred_check
      _
    $region15: #{tpu_custom_call.1} parent=1 // pred_check_branch
      %108 = sbr.rel (0) target = $region17
    $region16: #{tpu_custom_call.1} parent=1 // pred_region
      _
    $region17: #{tpu_custom_call.1} parent=1 // pred_fallthru
      _
    // Predicated region
    $region18: #{tpu_custom_call.1} parent=1 // pred_check
      _
    $region19: #{tpu_custom_call.1} parent=1 // pred_check_branch
      %110 = sbr.rel (0) target = $region21
    $region20: #{tpu_custom_call.1} parent=1 // pred_region
      _
    $region21: #{tpu_custom_call.1} parent=1 // pred_fallthru
      _
    // Predicated region
    $region22: #{tpu_custom_call.1} parent=1 // pred_check
      _
    $region23: #{tpu_custom_call.1} parent=1 // pred_check_branch
      %112 = sbr.rel (0) target = $region25
    $region24: #{tpu_custom_call.1} parent=1 // pred_region
      _
    $region25: #{tpu_custom_call.1} parent=1 // pred_fallthru
      _
    // Predicated region
    $region26: #{tpu_custom_call.1} parent=1 // pred_check
      _
    $region27: #{tpu_custom_call.1} parent=1 // pred_check_branch
      %114 = sbr.rel (0) target = $region29
    $region28: #{tpu_custom_call.1} parent=1 // pred_region
      _
    $region29: #{tpu_custom_call.1} parent=1 // pred_fallthru
      _
    // Predicated region
    $region30: #{tpu_custom_call.1} parent=1 // pred_check
      _
    $region31: #{tpu_custom_call.1} parent=1 // pred_check_branch
      %116 = sbr.rel (0) target = $region33
    $region32: #{tpu_custom_call.1} parent=1 // pred_region
      _
    $region33: #{tpu_custom_call.1} parent=1 // pred_fallthru
      _
    // Predicated region
    $region34: #{tpu_custom_call.1} parent=1 // pred_check
      _
    $region35: #{tpu_custom_call.1} parent=1 // pred_check_branch
      %118 = sbr.rel (0) target = $region37
    $region36: #{tpu_custom_call.1} parent=1 // pred_region
      _
    $region37: #{tpu_custom_call.1} parent=1 // pred_fallthru
      _
    // Predicated region
    $region38: #{tpu_custom_call.1} parent=1 // pred_check
      _
    $region39: #{tpu_custom_call.1} parent=1 // pred_check_branch
      %120 = sbr.rel (0) target = $region41
    $region40: #{tpu_custom_call.1} parent=1 // pred_region
      _
    $region41: #{tpu_custom_call.1} parent=1 // pred_fallthru
      _
    // Predicated region
    $region42: #{tpu_custom_call.1} parent=1 // pred_check
      _
    $region43: #{tpu_custom_call.1} parent=1 // pred_check_branch
      %122 = sbr.rel (0) target = $region45
    $region44: #{tpu_custom_call.1} parent=1 // pred_region
      _
    $region45: #{tpu_custom_call.1} parent=1 // pred_fallthru
      _
    // Predicated region
    $region46: #{tpu_custom_call.1} parent=1 // pred_check
      _
    $region47: #{tpu_custom_call.1} parent=1 // pred_check_branch
      %124 = sbr.rel (0) target = $region49
    $region48: #{tpu_custom_call.1} parent=1 // pred_region
      _
    $region49: #{tpu_custom_call.1} parent=1 // pred_fallthru
      _
    // Predicated region
    $region50: #{tpu_custom_call.1} parent=1 // pred_check
      _
    $region51: #{tpu_custom_call.1} parent=1 // pred_check_branch
      %126 = sbr.rel (0) target = $region53
    $region52: #{tpu_custom_call.1} parent=1 // pred_region
      _
    $region53: #{tpu_custom_call.1} parent=1 // pred_fallthru
      _
    // Predicated region
    $region54: #{tpu_custom_call.1} parent=1 // pred_check
      _
    $region55: #{tpu_custom_call.1} parent=1 // pred_check_branch
      %128 = sbr.rel (0) target = $region57
    $region56: #{tpu_custom_call.1} parent=1 // pred_region
      _
    $region57: #{tpu_custom_call.1} parent=1 // pred_fallthru
      _
    // Predicated region
    $region58: #{tpu_custom_call.1} parent=1 // pred_check
      _
    $region59: #{tpu_custom_call.1} parent=1 // pred_check_branch
      %130 = sbr.rel (0) target = $region61
    $region60: #{tpu_custom_call.1} parent=1 // pred_region
      _
    $region61: #{tpu_custom_call.1} parent=1 // pred_fallthru
      _
    // Predicated region
    $region62: #{tpu_custom_call.1} parent=1 // pred_check
      _
    $region63: #{tpu_custom_call.1} parent=1 // pred_check_branch
      %132 = sbr.rel (0) target = $region65
    $region64: #{tpu_custom_call.1} parent=1 // pred_region
      _
    $region65: #{tpu_custom_call.1} parent=1 // pred_fallthru
      _
    // Predicated region
    $region66: #{tpu_custom_call.1} parent=1 // pred_check
      _
    $region67: #{tpu_custom_call.1} parent=1 // pred_check_branch
      %134 = sbr.rel (0) target = $region69
    $region68: #{tpu_custom_call.1} parent=1 // pred_region
      _
    $region69: #{tpu_custom_call.1} parent=1 // pred_fallthru
      _
    // Predicated region
    $region70: #{tpu_custom_call.1} parent=1 // pred_check
      _
    $region71: #{tpu_custom_call.1} parent=1 // pred_check_branch
      %136 = sbr.rel (0) target = $region73
    $region72: #{tpu_custom_call.1} parent=1 // pred_region
      _
    $region73: #{tpu_custom_call.1} parent=1 // pred_fallthru
      _
    // Predicated region
    $region74: #{tpu_custom_call.1} parent=1 // pred_check
      _
    $region75: #{tpu_custom_call.1} parent=1 // pred_check_branch
      %138 = sbr.rel (0) target = $region77
    $region76: #{tpu_custom_call.1} parent=1 // pred_region
      _
    $region77: #{tpu_custom_call.1} parent=1 // pred_fallthru
      _
    // Predicated region
    $region78: #{tpu_custom_call.1} parent=1 // pred_check
      _
    $region79: #{tpu_custom_call.1} parent=1 // pred_check_branch
      %140 = sbr.rel (0) target = $region81
    $region80: #{tpu_custom_call.1} parent=1 // pred_region
      _
    $region81: #{tpu_custom_call.1} parent=1 // pred_fallthru
      _
    // Predicated region
    $region82: #{tpu_custom_call.1} parent=1 // pred_check
      _
    $region83: #{tpu_custom_call.1} parent=1 // pred_check_branch
      %142 = sbr.rel (0) target = $region85
    $region84: #{tpu_custom_call.1} parent=1 // pred_region
      _
    $region85: #{tpu_custom_call.1} parent=1 // pred_fallthru
      _
    // Predicated region
    $region86: #{tpu_custom_call.1} parent=1 // pred_check
      _
    $region87: #{tpu_custom_call.1} parent=1 // pred_check_branch
      %144 = sbr.rel (0) target = $region89
    $region88: #{tpu_custom_call.1} parent=1 // pred_region
      _
    $region89: #{tpu_custom_call.1} parent=1 // pred_fallthru
      _
    // Predicated region
    $region90: #{tpu_custom_call.1} parent=1 // pred_check
      _
    $region91: #{tpu_custom_call.1} parent=1 // pred_check_branch
      %146 = sbr.rel (0) target = $region93
    $region92: #{tpu_custom_call.1} parent=1 // pred_region
      _
    $region93: #{tpu_custom_call.1} parent=1 // pred_fallthru
      _
    // Predicated region
    $region94: #{tpu_custom_call.1} parent=1 // pred_check
      _
    $region95: #{tpu_custom_call.1} parent=1 // pred_check_branch
      %148 = sbr.rel (0) target = $region97
    $region96: #{tpu_custom_call.1} parent=1 // pred_region
      _
    $region97: #{tpu_custom_call.1} parent=1 // pred_fallthru
      _
    // Predicated region
    $region98: #{tpu_custom_call.1} parent=1 // pred_check
      _
    $region99: #{tpu_custom_call.1} parent=1 // pred_check_branch
      %150 = sbr.rel (0) target = $region101
    $region100: #{tpu_custom_call.1} parent=1 // pred_region
      _
    $region101: #{tpu_custom_call.1} parent=1 // pred_fallthru
      _
    // Predicated region
    $region102: #{tpu_custom_call.1} parent=1 // pred_check
      _
    $region103: #{tpu_custom_call.1} parent=1 // pred_check_branch
      %152 = sbr.rel (0) target = $region105
    $region104: #{tpu_custom_call.1} parent=1 // pred_region
      _
    $region105: #{tpu_custom_call.1} parent=1 // pred_fallthru
      _
    // Predicated region
    $region106: #{tpu_custom_call.1} parent=1 // pred_check
      _
    $region107: #{tpu_custom_call.1} parent=1 // pred_check_branch
      %154 = sbr.rel (0) target = $region109
    $region108: #{tpu_custom_call.1} parent=1 // pred_region
      _
    $region109: #{tpu_custom_call.1} parent=1 // pred_fallthru
      _
    // Predicated region
    $region110: #{tpu_custom_call.1} parent=1 // pred_check
      _
    $region111: #{tpu_custom_call.1} parent=1 // pred_check_branch
      %156 = sbr.rel (0) target = $region113
    $region112: #{tpu_custom_call.1} parent=1 // pred_region
      _
    $region113: #{tpu_custom_call.1} parent=1 // pred_fallthru
      _
    // Predicated region
    $region114: #{tpu_custom_call.1} parent=1 // pred_check
      _
    $region115: #{tpu_custom_call.1} parent=1 // pred_check_branch
      %158 = sbr.rel (0) target = $region117
    $region116: #{tpu_custom_call.1} parent=1 // pred_region
      _
    $region117: #{tpu_custom_call.1} parent=1 // pred_fallthru
      _
    // Predicated region
    $region118: #{tpu_custom_call.1} parent=1 // pred_check
      _
    $region119: #{tpu_custom_call.1} parent=1 // pred_check_branch
      %160 = sbr.rel (0) target = $region121
    $region120: #{tpu_custom_call.1} parent=1 // pred_region
      _
    $region121: #{tpu_custom_call.1} parent=1 // pred_fallthru
      _
    // Predicated region
    $region122: #{tpu_custom_call.1} parent=1 // pred_check
      _
    $region123: #{tpu_custom_call.1} parent=1 // pred_check_branch
      %162 = sbr.rel (0) target = $region125
    $region124: #{tpu_custom_call.1} parent=1 // pred_region
      _
    $region125: #{tpu_custom_call.1} parent=1 // pred_fallthru
      _
    // Predicated region
    $region126: #{tpu_custom_call.1} parent=1 // pred_check
      _
    $region127: #{tpu_custom_call.1} parent=1 // pred_check_branch
      %164 = sbr.rel (0) target = $region129
    $region128: #{tpu_custom_call.1} parent=1 // pred_region
      _
    $region129: #{tpu_custom_call.1} parent=1 // pred_fallthru
      _
    // Predicated region
    $region130: #{tpu_custom_call.1} parent=1 // pred_check
      _
    $region131: #{tpu_custom_call.1} parent=1 // pred_check_branch
      %166 = sbr.rel (0) target = $region133
    $region132: #{tpu_custom_call.1} parent=1 // pred_region
      _
    $region133: #{tpu_custom_call.1} parent=1 // pred_fallthru
      _
    // Predicated region
    $region134: #{tpu_custom_call.1} parent=1 // pred_check
      _
    $region135: #{tpu_custom_call.1} parent=1 // pred_check_branch
      %168 = sbr.rel (0) target = $region137
    $region136: #{tpu_custom_call.1} parent=1 // pred_region
      _
    $region137: #{tpu_custom_call.1} parent=1 // pred_fallthru
      _
    // Predicated region
    $region138: #{tpu_custom_call.1} parent=1 // pred_check
      _
    $region139: #{tpu_custom_call.1} parent=1 // pred_check_branch
      %170 = sbr.rel (0) target = $region141
    $region140: #{tpu_custom_call.1} parent=1 // pred_region
      _
    $region141: #{tpu_custom_call.1} parent=1 // pred_fallthru
      _
    // Predicated region
    $region142: #{tpu_custom_call.1} parent=1 // pred_check
      _
    $region143: #{tpu_custom_call.1} parent=1 // pred_check_branch
      %172 = sbr.rel (0) target = $region145
    $region144: #{tpu_custom_call.1} parent=1 // pred_region
      _
    $region145: #{tpu_custom_call.1} parent=1 // pred_fallthru
      _
    // Predicated region
    $region146: #{tpu_custom_call.1} parent=1 // pred_check
      _
    $region147: #{tpu_custom_call.1} parent=1 // pred_check_branch
      %174 = sbr.rel (0) target = $region149
    $region148: #{tpu_custom_call.1} parent=1 // pred_region
      _
    $region149: #{tpu_custom_call.1} parent=1 // pred_fallthru
      _
    // Predicated region
    $region150: #{tpu_custom_call.1} parent=1 // pred_check
      _
    $region151: #{tpu_custom_call.1} parent=1 // pred_check_branch
      %176 = sbr.rel (0) target = $region153
    $region152: #{tpu_custom_call.1} parent=1 // pred_region
      _
    $region153: #{tpu_custom_call.1} parent=1 // pred_fallthru
      _
    // Predicated region
    $region154: #{tpu_custom_call.1} parent=1 // pred_check
      _
    $region155: #{tpu_custom_call.1} parent=1 // pred_check_branch
      %178 = sbr.rel (0) target = $region157
    $region156: #{tpu_custom_call.1} parent=1 // pred_region
      _
    $region157: #{tpu_custom_call.1} parent=1 // pred_fallthru
      _
    %v179 = vld [vmem:[%s3] sm:$0xff]
    %v180 = vld [vmem:[%s3 + $0x8] sm:$0xf]
    %v181 = vld [vmem:[%s7] sm:$0xff]
    %v182 = vld [vmem:[%s1] sm:$0xff]
    %v183 = vld [vmem:[%s1 + $0x8] sm:$0xf]
    %v184 = vld [vmem:[%s11] sm:$0xff]
    %vm185 = vcmask 64512
    %v187 = vsel %vm185, %v182, 0
    %v190 = vsel %vm185, %v183, 0
    %192 = vmatpush.msra.mxu0 0.0
    %193 = vmatpush.msra.mxu0 0.0
    %194 = vmatpush.msra.mxu0 0.0
    %195 = vmatpush.msra.mxu0 0.0
    %196 = vmatpush.msra.mxu0 0.0
    %197 = vmatpush.msra.mxu0 0.0
    %198 = vmatpush.msra.mxu0 0.0
    %199 = vmatpush.msra.mxu0 0.0
    %200 = vmatpush.msra.mxu0 0.0
    %201 = vmatpush.msra.mxu0 0.0
    %202 = vmatpush.msra.mxu0 0.0
    %203 = vmatpush.msra.mxu0 0.0
    %204 = vmatpush.msra.mxu0 0.0
    %205 = vmatpush.msra.mxu0 0.0
    %206 = vmatpush.msra.mxu0 0.0
    %207 = vmatpush.msra.mxu0 %v184
    %208 = vmatmul.f32.gmra.mxu0 %v187
    %v209 = vpop.f32.mrf.mxu0
    %v210 = vadd.f32 0.0, %v209
    %211 = vmatmul.f32.gmra.mxu0 %v190
    %v212 = vpop.f32.mrf.mxu0
    %v213 = vadd.f32 0.0, %v212
    %214 = vdwg.mxu0
    %v215 = vld [vmem:[%s13] sm:$0x1]
    %v217 = vperm.slane %v215, 0
    %vm219 = vcmask 97280
    %v221 = vsel %vm219, %v179, 0
    %v224 = vsel %vm219, %v180, 0
    %vm226 = vcmask 1043456
    %v228 = vsel %vm226, %v213, 0
    %230 = vmatpush.msra.mxu0 0.0
    %231 = vmatpush.msra.mxu0 0.0
    %232 = vmatpush.msra.mxu0 0.0
    %233 = vmatpush.msra.mxu0 0.0
    %234 = vmatpush.msra.mxu0 0.0
    %235 = vmatpush.msra.mxu0 0.0
    %236 = vmatpush.msra.mxu0 0.0
    %237 = vmatpush.msra.mxu0 0.0
    %238 = vmatpush.msra.mxu0 0.0
    %239 = vmatpush.msra.mxu0 0.0
    %240 = vmatpush.msra.mxu0 0.0
    %241 = vmatpush.msra.mxu0 0.0
    %242 = vmatpush.msra.mxu0 0.0
    %243 = vmatpush.msra.mxu0 0.0
    %244 = vmatpush.msra.mxu0 %v228
    %245 = vmatpush.msra.mxu0 %v210
    %246 = vmatmul.f32.gmra.mxu0 %v221
    %v247 = vpop.f32.mrf.mxu0
    %v248 = vadd.f32 %v217, %v247
    %249 = vmatmul.f32.gmra.mxu0 %v224
    %v250 = vpop.f32.mrf.mxu0
    %v251 = vadd.f32 %v217, %v250
    %252 = vdwg.mxu0
    %v253 = vtanh.pop %v248
    %v254 = vtanh.pop %v251
    %vm255 = vcmask 130048
    %v256 = vsel %vm255, %v253, 0.0
    %vm257 = vcmask 125952
    %v258 = vsel %vm257, %v254, 0.0
    %v259 = vadd.f32 %v256, %v258
    %v260 = vrot.slane %v259, 4
    %v261 = vadd.f32 %v259, %v260
    %v262 = vrot.slane %v261, 2
    %v263 = vadd.f32 %v261, %v262
    %v264 = vrot.slane %v263, 1
    %v265 = vadd.f32 %v263, %v264
    %v266 = vrcp.pop 12.0
    %v267 = vmul.f32 12.0, %v266
    %v268 = vsub.f32 1.0, %v267
    %v269 = vmul.f32 %v266, %v268
    %v270 = vadd.f32 %v266, %v269
    %vm271 = vweird.f32 %v266
    %v272 = vsel %vm271, %v266, %v270
    %v273 = vmul.f32 %v265, %v272
    %v274 = vsub.f32 %v253, %v273
    %v275 = vsub.f32 %v254, %v273
    %v276 = vmul.f32 %v274, %v274
    %v277 = vmul.f32 %v275, %v275
    %v278 = vsel %vm255, %v276, 0.0
    %v279 = vsel %vm257, %v277, 0.0
    %v280 = vadd.f32 %v278, %v279
    %v281 = vrot.slane %v280, 4
    %v282 = vadd.f32 %v280, %v281
    %v283 = vrot.slane %v282, 2
    %v284 = vadd.f32 %v282, %v283
    %v285 = vrot.slane %v284, 1
    %v286 = vadd.f32 %v284, %v285
    %v287 = vmul.f32 %v286, %v272
    %v288 = vld [vmem:[%s15] sm:$0x1]
    %v290 = vperm.slane %v288, 0
    %v292 = vmul.f32 %v290, %v274
    %v293 = vmul.f32 %v290, %v275
    %v294 = vadd.f32 %v287, 1e-05
    %v295 = vrsqrt.pop %v294
    %v296 = vmul.f32 %v295, %v294
    %v297 = vmul.f32 %v296, %v295
    %v298 = vmul.f32 0.5, %v297
    %v299 = vsub.f32 1.5, %v298
    %v300 = vmul.f32 %v295, %v299
    %vm301 = vweird.f32 %v294
    %vm302 = vweird.f32 %v295
    %vm303 = vmor %vm301, %vm302
    %v304 = vsel %vm303, %v295, %v300
    %v305 = vmul.f32 %v292, %v304
    %v306 = vmul.f32 %v293, %v304
    %v307 = vld [vmem:[%s17] sm:$0x1]
    %v309 = vperm.slane %v307, 0
    %v311 = vadd.f32 %v305, %v309
    %v312 = vadd.f32 %v306, %v309
    %v313 = vld [vmem:[%s19] sm:$0xff]
    %v314 = vld [vmem:[%s19 + $0x8] sm:$0xff]
    %v316 = vsel %vm255, %v311, 0
    %v319 = vsel %vm255, %v312, 0
    %321 = vmatpush.msra.mxu0 0.0
    %322 = vmatpush.msra.mxu0 0.0
    %323 = vmatpush.msra.mxu0 0.0
    %324 = vmatpush.msra.mxu0 0.0
    %325 = vmatpush.msra.mxu0 0.0
    %326 = vmatpush.msra.mxu0 0.0
    %327 = vmatpush.msra.mxu0 0.0
    %328 = vmatpush.msra.mxu0 0.0
    %329 = vmatpush.msra.mxu0 0.0
    %330 = vmatpush.msra.mxu0 0.0
    %331 = vmatpush.msra.mxu0 0.0
    %332 = vmatpush.msra.mxu0 0.0
    %333 = vmatpush.msra.mxu0 0.0
    %334 = vmatpush.msra.mxu0 0.0
    %335 = vmatpush.msra.mxu0 %v314
    %336 = vmatpush.msra.mxu0 %v313
    %337 = vmatmul.f32.gmra.mxu0 %v316
    %v338 = vpop.f32.mrf.mxu0
    %v339 = vadd.f32 0.0, %v338
    %340 = vmatmul.f32.gmra.mxu0 %v319
    %v341 = vpop.f32.mrf.mxu0
    %v342 = vadd.f32 0.0, %v341
    %343 = vdwg.mxu0
    %v344 = vld [vmem:[%s21] sm:$0x1]
    %v346 = vperm.slane %v344, 0
    %v349 = vsel %vm226, %v342, 0
    %351 = vmatpush.msra.mxu0 0.0
    %352 = vmatpush.msra.mxu0 0.0
    %353 = vmatpush.msra.mxu0 0.0
    %354 = vmatpush.msra.mxu0 0.0
    %355 = vmatpush.msra.mxu0 0.0
    %356 = vmatpush.msra.mxu0 0.0
    %357 = vmatpush.msra.mxu0 0.0
    %358 = vmatpush.msra.mxu0 0.0
    %359 = vmatpush.msra.mxu0 0.0
    %360 = vmatpush.msra.mxu0 0.0
    %361 = vmatpush.msra.mxu0 0.0
    %362 = vmatpush.msra.mxu0 0.0
    %363 = vmatpush.msra.mxu0 0.0
    %364 = vmatpush.msra.mxu0 0.0
    %365 = vmatpush.msra.mxu0 %v349
    %366 = vmatpush.msra.mxu0 %v339
    %367 = vmatmul.f32.gmra.mxu0 %v221
    %v368 = vpop.f32.mrf.mxu0
    %v369 = vadd.f32 %v346, %v368
    %370 = vmatmul.f32.gmra.mxu0 %v224
    %v371 = vpop.f32.mrf.mxu0
    %v372 = vadd.f32 %v346, %v371
    %373 = vdwg.mxu0
    %v374 = vtanh.pop %v369
    %v375 = vtanh.pop %v372
    %v376 = vsel %vm255, %v374, 0.0
    %v377 = vsel %vm257, %v375, 0.0
    %v378 = vadd.f32 %v376, %v377
    %v379 = vrot.slane %v378, 4
    %v380 = vadd.f32 %v378, %v379
    %v381 = vrot.slane %v380, 2
    %v382 = vadd.f32 %v380, %v381
    %v383 = vrot.slane %v382, 1
    %v384 = vadd.f32 %v382, %v383
    %v385 = vmul.f32 %v384, %v272
    %v386 = vsub.f32 %v374, %v385
    %v387 = vsub.f32 %v375, %v385
    %v388 = vmul.f32 %v386, %v386
    %v389 = vmul.f32 %v387, %v387
    %v390 = vsel %vm255, %v388, 0.0
    %v391 = vsel %vm257, %v389, 0.0
    %v392 = vadd.f32 %v390, %v391
    %v393 = vrot.slane %v392, 4
    %v394 = vadd.f32 %v392, %v393
    %v395 = vrot.slane %v394, 2
    %v396 = vadd.f32 %v394, %v395
    %v397 = vrot.slane %v396, 1
    %v398 = vadd.f32 %v396, %v397
    %v399 = vmul.f32 %v398, %v272
    %v400 = vld [vmem:[%s23] sm:$0x1]
    %v402 = vperm.slane %v400, 0
    %v404 = vmul.f32 %v402, %v386
    %v405 = vmul.f32 %v402, %v387
    %v406 = vadd.f32 %v399, 1e-05
    %v407 = vrsqrt.pop %v406
    %v408 = vmul.f32 %v407, %v406
    %v409 = vmul.f32 %v408, %v407
    %v410 = vmul.f32 0.5, %v409
    %v411 = vsub.f32 1.5, %v410
    %v412 = vmul.f32 %v407, %v411
    %vm413 = vweird.f32 %v406
    %vm414 = vweird.f32 %v407
    %vm415 = vmor %vm413, %vm414
    %v416 = vsel %vm415, %v407, %v412
    %v417 = vmul.f32 %v404, %v416
    %v418 = vmul.f32 %v405, %v416
    %v419 = vld [vmem:[%s25] sm:$0x1]
    %v421 = vperm.slane %v419, 0
    %v423 = vadd.f32 %v417, %v421
    %v424 = vadd.f32 %v418, %v421
    %v425 = vld [vmem:[%s5] sm:$0xff]
    %v426 = vld [vmem:[%s27] sm:$0xff]
    %v428 = vsel %vm185, %v425, 0
    %430 = vmatpush.msra.mxu0 0.0
    %431 = vmatpush.msra.mxu0 0.0
    %432 = vmatpush.msra.mxu0 0.0
    %433 = vmatpush.msra.mxu0 0.0
    %434 = vmatpush.msra.mxu0 0.0
    %435 = vmatpush.msra.mxu0 0.0
    %436 = vmatpush.msra.mxu0 0.0
    %437 = vmatpush.msra.mxu0 0.0
    %438 = vmatpush.msra.mxu0 0.0
    %439 = vmatpush.msra.mxu0 0.0
    %440 = vmatpush.msra.mxu0 0.0
    %441 = vmatpush.msra.mxu0 0.0
    %442 = vmatpush.msra.mxu0 0.0
    %443 = vmatpush.msra.mxu0 0.0
    %444 = vmatpush.msra.mxu0 0.0
    %445 = vmatpush.msra.mxu0 %v426
    %446 = vmatmul.f32.gmra.mxu0 %v428
    %v447 = vpop.f32.mrf.mxu0
    %v448 = vadd.f32 0.0, %v447
    %449 = vdwg.mxu0
    %v450 = vld [vmem:[%s29] sm:$0x1]
    %v452 = vperm.slane %v450, 0
    %v455 = vsel %vm185, %v181, 0
    %457 = vmatpush.msra.mxu0 0.0
    %458 = vmatpush.msra.mxu0 0.0
    %459 = vmatpush.msra.mxu0 0.0
    %460 = vmatpush.msra.mxu0 0.0
    %461 = vmatpush.msra.mxu0 0.0
    %462 = vmatpush.msra.mxu0 0.0
    %463 = vmatpush.msra.mxu0 0.0
    %464 = vmatpush.msra.mxu0 0.0
    %465 = vmatpush.msra.mxu0 0.0
    %466 = vmatpush.msra.mxu0 0.0
    %467 = vmatpush.msra.mxu0 0.0
    %468 = vmatpush.msra.mxu0 0.0
    %469 = vmatpush.msra.mxu0 0.0
    %470 = vmatpush.msra.mxu0 0.0
    %471 = vmatpush.msra.mxu0 0.0
    %472 = vmatpush.msra.mxu0 %v448
    %473 = vmatmul.f32.gmra.mxu0 %v455
    %v474 = vpop.f32.mrf.mxu0
    %v475 = vadd.f32 %v452, %v474
    %476 = vdwg.mxu0
    %v477 = vtanh.pop %v475
    %v478 = vsel %vm255, %v477, 0.0
    %v479 = vrot.slane %v478, 4
    %v480 = vadd.f32 %v478, %v479
    %v481 = vrot.slane %v480, 2
    %v482 = vadd.f32 %v480, %v481
    %v483 = vrot.slane %v482, 1
    %v484 = vadd.f32 %v482, %v483
    %v485 = vrcp.pop 8.0
    %v486 = vmul.f32 8.0, %v485
    %v487 = vsub.f32 1.0, %v486
    %v488 = vmul.f32 %v485, %v487
    %v489 = vadd.f32 %v485, %v488
    %vm490 = vweird.f32 %v485
    %v491 = vsel %vm490, %v485, %v489
    %v492 = vmul.f32 %v484, %v491
    %v493 = vsub.f32 %v477, %v492
    %v494 = vmul.f32 %v493, %v493
    %v495 = vsel %vm255, %v494, 0.0
    %v496 = vrot.slane %v495, 4
    %v497 = vadd.f32 %v495, %v496
    %v498 = vrot.slane %v497, 2
    %v499 = vadd.f32 %v497, %v498
    %v500 = vrot.slane %v499, 1
    %v501 = vadd.f32 %v499, %v500
    %v502 = vmul.f32 %v501, %v491
    %v503 = vld [vmem:[%s31] sm:$0x1]
    %v505 = vperm.slane %v503, 0
    %v507 = vmul.f32 %v505, %v493
    %v508 = vadd.f32 %v502, 1e-05
    %v509 = vrsqrt.pop %v508
    %v510 = vmul.f32 %v509, %v508
    %v511 = vmul.f32 %v510, %v509
    %v512 = vmul.f32 0.5, %v511
    %v513 = vsub.f32 1.5, %v512
    %v514 = vmul.f32 %v509, %v513
    %vm515 = vweird.f32 %v508
    %vm516 = vweird.f32 %v509
    %vm517 = vmor %vm515, %vm516
    %v518 = vsel %vm517, %v509, %v514
    %v519 = vmul.f32 %v507, %v518
    %v520 = vld [vmem:[%s33] sm:$0x1]
    %v522 = vperm.slane %v520, 0
    %v524 = vadd.f32 %v519, %v522
    %v525 = vld [vmem:[%s35] sm:$0xff]
    %v526 = vld [vmem:[%s35 + $0x8] sm:$0xff]
    %v528 = vsel %vm255, %v524, 0
    %530 = vmatpush.msra.mxu0 0.0
    %531 = vmatpush.msra.mxu0 0.0
    %532 = vmatpush.msra.mxu0 0.0
    %533 = vmatpush.msra.mxu0 0.0
    %534 = vmatpush.msra.mxu0 0.0
    %535 = vmatpush.msra.mxu0 0.0
    %536 = vmatpush.msra.mxu0 0.0
    %537 = vmatpush.msra.mxu0 0.0
    %538 = vmatpush.msra.mxu0 0.0
    %539 = vmatpush.msra.mxu0 0.0
    %540 = vmatpush.msra.mxu0 0.0
    %541 = vmatpush.msra.mxu0 0.0
    %542 = vmatpush.msra.mxu0 0.0
    %543 = vmatpush.msra.mxu0 0.0
    %544 = vmatpush.msra.mxu0 %v526
    %545 = vmatpush.msra.mxu0 %v525
    %546 = vmatmul.f32.gmra.mxu0 %v528
    %v547 = vpop.f32.mrf.mxu0
    %v548 = vadd.f32 0.0, %v547
    %549 = vdwg.mxu0
    %v550 = vld [vmem:[%s37] sm:$0x1]
    %v552 = vperm.slane %v550, 0
    %554 = vmatpush.msra.mxu0 0.0
    %555 = vmatpush.msra.mxu0 0.0
    %556 = vmatpush.msra.mxu0 0.0
    %557 = vmatpush.msra.mxu0 0.0
    %558 = vmatpush.msra.mxu0 0.0
    %559 = vmatpush.msra.mxu0 0.0
    %560 = vmatpush.msra.mxu0 0.0
    %561 = vmatpush.msra.mxu0 0.0
    %562 = vmatpush.msra.mxu0 0.0
    %563 = vmatpush.msra.mxu0 0.0
    %564 = vmatpush.msra.mxu0 0.0
    %565 = vmatpush.msra.mxu0 0.0
    %566 = vmatpush.msra.mxu0 0.0
    %567 = vmatpush.msra.mxu0 0.0
    %568 = vmatpush.msra.mxu0 0.0
    %569 = vmatpush.msra.mxu0 %v548
    %570 = vmatmul.f32.gmra.mxu0 %v455
    %v571 = vpop.f32.mrf.mxu0
    %v572 = vadd.f32 %v552, %v571
    %573 = vdwg.mxu0
    %v574 = vtanh.pop %v572
    %v575 = vsel %vm255, %v574, 0.0
    %v576 = vrot.slane %v575, 4
    %v577 = vadd.f32 %v575, %v576
    %v578 = vrot.slane %v577, 2
    %v579 = vadd.f32 %v577, %v578
    %v580 = vrot.slane %v579, 1
    %v581 = vadd.f32 %v579, %v580
    %v582 = vmul.f32 %v581, %v491
    %v583 = vsub.f32 %v574, %v582
    %v584 = vmul.f32 %v583, %v583
    %v585 = vsel %vm255, %v584, 0.0
    %v586 = vrot.slane %v585, 4
    %v587 = vadd.f32 %v585, %v586
    %v588 = vrot.slane %v587, 2
    %v589 = vadd.f32 %v587, %v588
    %v590 = vrot.slane %v589, 1
    %v591 = vadd.f32 %v589, %v590
    %v592 = vmul.f32 %v591, %v491
    %v593 = vld [vmem:[%s39] sm:$0x1]
    %v595 = vperm.slane %v593, 0
    %v597 = vmul.f32 %v595, %v583
    %v598 = vadd.f32 %v592, 1e-05
    %v599 = vrsqrt.pop %v598
    %v600 = vmul.f32 %v599, %v598
    %v601 = vmul.f32 %v600, %v599
    %v602 = vmul.f32 0.5, %v601
    %v603 = vsub.f32 1.5, %v602
    %v604 = vmul.f32 %v599, %v603
    %vm605 = vweird.f32 %v598
    %vm606 = vweird.f32 %v599
    %vm607 = vmor %vm605, %vm606
    %v608 = vsel %vm607, %v599, %v604
    %v609 = vmul.f32 %v597, %v608
    %v610 = vld [vmem:[%s41] sm:$0x1]
    %v612 = vperm.slane %v610, 0
    %v614 = vadd.f32 %v609, %v612
    %v615 = vld [vmem:[%s9] sm:$0xff]
    %v616 = vld [vmem:[%s9 + $0x8] sm:$0xff]
    %v617 = vld [vmem:[%s9 + $0x10] sm:$0xf]
    %v618 = vld [vmem:[%s43] sm:$0xff]
    %v619 = vld [vmem:[%s43 + $0x8] sm:$0xff]
    %v621 = vsel %vm255, %v614, 0
    %v624 = vsel %vm255, %v423, 0
    %v627 = vsel %vm255, %v424, 0
    %629 = vmatpush.msra.mxu0 0.0
    %630 = vmatpush.msra.mxu0 0.0
    %631 = vmatpush.msra.mxu0 0.0
    %632 = vmatpush.msra.mxu0 0.0
    %633 = vmatpush.msra.mxu0 0.0
    %634 = vmatpush.msra.mxu0 0.0
    %635 = vmatpush.msra.mxu0 0.0
    %636 = vmatpush.msra.mxu0 0.0
    %637 = vmatpush.msra.mxu0 0.0
    %638 = vmatpush.msra.mxu0 0.0
    %639 = vmatpush.msra.mxu0 0.0
    %640 = vmatpush.msra.mxu0 0.0
    %641 = vmatpush.msra.mxu0 0.0
    %642 = vmatpush.msra.mxu0 0.0
    %643 = vmatpush.msra.mxu0 %v619
    %644 = vmatpush.msra.mxu0 %v618
    %645 = vmatmul.f32.gmra.mxu0 %v621
    %v646 = vpop.f32.mrf.mxu0
    %v647 = vadd.f32 0.0, %v646
    %648 = vmatmul.f32.gmra.mxu0 %v624
    %v649 = vpop.f32.mrf.mxu0
    %v650 = vadd.f32 0.0, %v649
    %651 = vmatmul.f32.gmra.mxu0 %v627
    %v652 = vpop.f32.mrf.mxu0
    %v653 = vadd.f32 0.0, %v652
    %654 = vdwg.mxu0
    %v655 = vld [vmem:[%s45] sm:$0x1]
    %v656 = vld [vmem:[%s47] sm:$0x1]
    %v658 = vsel %vm255, %v655, 0
    %v661 = vsel %vm255, %v647, 0
    %v664 = vsel %vm255, %v650, 0
    %v667 = vsel %vm255, %v653, 0
    %669 = vmatpush.xpose.msra.mxu0 0.0
    %670 = vmatpush.xpose.msra.mxu0 0.0
    %671 = vmatpush.xpose.msra.mxu0 0.0
    %672 = vmatpush.xpose.msra.mxu0 0.0
    %673 = vmatpush.xpose.msra.mxu0 0.0
    %674 = vmatpush.xpose.msra.mxu0 0.0
    %675 = vmatpush.xpose.msra.mxu0 0.0
    %676 = vmatpush.xpose.msra.mxu0 0.0
    %677 = vmatpush.xpose.msra.mxu0 0.0
    %678 = vmatpush.xpose.msra.mxu0 0.0
    %679 = vmatpush.xpose.msra.mxu0 0.0
    %680 = vmatpush.xpose.msra.mxu0 0.0
    %681 = vmatpush.xpose.msra.mxu0 0.0
    %682 = vmatpush.xpose.msra.mxu0 %v667
    %683 = vmatpush.xpose.msra.mxu0 %v664
    %684 = vmatpush.xpose.msra.mxu0 %v661
    %685 = vmatmul.f32.gmra.mxu0 %v658
    %v686 = vpop.f32.mrf.mxu0
    %v687 = vadd.f32 0.0, %v686
    %688 = vdwg.mxu0
    %v690 = vperm.slane %v656, 0
    %v692 = vmul.f32 %v647, %v690
    %v693 = vmul.f32 %v650, %v690
    %v694 = vmul.f32 %v653, %v690
    %v695 = vsel %vm255, %v692, 0.0
    %696 = vadd.xlane.f32.xlu0 %v695
    %v697 = vpop.xlane.xlu0 %696
    %v698 = vsel %vm255, %v693, 0.0
    %699 = vadd.xlane.f32.xlu0 %v698
    %v700 = vpop.xlane.xlu0 %699
    %v701 = vsel %vm257, %v694, 0.0
    %702 = vadd.xlane.f32.xlu0 %v701
    %v703 = vpop.xlane.xlu0 %702
    %v704 = vperm.slane %v687, 0
    %v705 = vadd.f32 %v697, %v704
    %v706 = vadd.f32 %v700, %v704
    %v707 = vadd.f32 %v703, %v704
    %vm708 = vcmp.gt.f32.partialorder %v705, 0.0
    %vm709 = vcmp.gt.f32.partialorder %v706, 0.0
    %vm710 = vcmp.gt.f32.partialorder %v707, 0.0
    %v711 = vmul.f32 %v705, 0.2
    %v712 = vmul.f32 %v706, 0.2
    %v713 = vmul.f32 %v707, 0.2
    %v714 = vsel %vm708, %v705, %v711
    %v715 = vsel %vm709, %v706, %v712
    %v716 = vsel %vm710, %v707, %v713
    %v717 = vadd.f32 %v714, %v615
    %v718 = vadd.f32 %v715, %v616
    %v719 = vadd.f32 %v716, %v617
    %vm720 = vcmask 162816
    %v721 = vsel %vm720, %v717, -inf
    %722 = vmax.xlane.f32.xlu0 %v721
    %v723 = vpop.xlane.xlu0 %722
    %v724 = vsel %vm720, %v718, -inf
    %725 = vmax.xlane.f32.xlu0 %v724
    %v726 = vpop.xlane.xlu0 %725
    %vm727 = vcmask 158720
    %v728 = vsel %vm727, %v719, -inf
    %729 = vmax.xlane.f32.xlu0 %v728
    %v730 = vpop.xlane.xlu0 %729
    %v731 = vsub.f32 %v717, %v723
    %v732 = vsub.f32 %v718, %v726
    %v733 = vsub.f32 %v719, %v730
    %v734 = vmul.f32 %v731, 1.442695
    %v735 = vpow.pop %v734
    %v736 = vmul.f32 %v732, 1.442695
    %v737 = vpow.pop %v736
    %v738 = vmul.f32 %v733, 1.442695
    %v739 = vpow.pop %v738
    %v740 = vsel %vm720, %v735, 0.0
    %741 = vadd.xlane.f32.xlu0 %v740
    %v742 = vpop.xlane.xlu0 %741
    %v743 = vsel %vm720, %v737, 0.0
    %744 = vadd.xlane.f32.xlu0 %v743
    %v745 = vpop.xlane.xlu0 %744
    %v746 = vsel %vm727, %v739, 0.0
    %747 = vadd.xlane.f32.xlu0 %v746
    %v748 = vpop.xlane.xlu0 %747
    %v749 = vrcp.pop %v742
    %v750 = vrcp.pop %v745
    %v751 = vrcp.pop %v748
    %v752 = vmul.f32 %v735, %v749
    %v753 = vmul.f32 %v737, %v750
    %v754 = vmul.f32 %v739, %v751
    %v755 = vld [vmem:[%s49] sm:$0x1]
    %v757 = vperm.slane %v755, 0
    %v760 = vsel %vm720, %v752, 0
    %v763 = vsel %vm720, %v753, 0
    %v766 = vsel %vm720, %v754, 0
    %v768 = vsel %vm226, %v653, 0
    %770 = vmatpush.msra.mxu0 0.0
    %771 = vmatpush.msra.mxu0 0.0
    %772 = vmatpush.msra.mxu0 0.0
    %773 = vmatpush.msra.mxu0 0.0
    %774 = vmatpush.msra.mxu0 0.0
    %775 = vmatpush.msra.mxu0 0.0
    %776 = vmatpush.msra.mxu0 0.0
    %777 = vmatpush.msra.mxu0 0.0
    %778 = vmatpush.msra.mxu0 0.0
    %779 = vmatpush.msra.mxu0 0.0
    %780 = vmatpush.msra.mxu0 0.0
    %781 = vmatpush.msra.mxu0 0.0
    %782 = vmatpush.msra.mxu0 0.0
    %783 = vmatpush.msra.mxu0 %v768
    %784 = vmatpush.msra.mxu0 %v650
    %785 = vmatpush.msra.mxu0 %v647
    %786 = vmatmul.f32.gmra.mxu0 %v760
    %v787 = vpop.f32.mrf.mxu0
    %v788 = vadd.f32 %v757, %v787
    %789 = vmatmul.f32.gmra.mxu0 %v763
    %v790 = vpop.f32.mrf.mxu0
    %v791 = vadd.f32 %v757, %v790
    %792 = vmatmul.f32.gmra.mxu0 %v766
    %v793 = vpop.f32.mrf.mxu0
    %v794 = vadd.f32 %v757, %v793
    %795 = vdwg.mxu0
    %v796 = vtanh.pop %v788
    %v797 = vtanh.pop %v791
    %v798 = vtanh.pop %v794
    %s799 = scalar_lea.vmem %s43, 16
    %v800 = vld [vmem:[%s799] sm:$0xff]
    %v801 = vld [vmem:[%s799 + $0x8] sm:$0xff]
    %802 = vmatpush.msra.mxu0 0.0
    %803 = vmatpush.msra.mxu0 0.0
    %804 = vmatpush.msra.mxu0 0.0
    %805 = vmatpush.msra.mxu0 0.0
    %806 = vmatpush.msra.mxu0 0.0
    %807 = vmatpush.msra.mxu0 0.0
    %808 = vmatpush.msra.mxu0 0.0
    %809 = vmatpush.msra.mxu0 0.0
    %810 = vmatpush.msra.mxu0 0.0
    %811 = vmatpush.msra.mxu0 0.0
    %812 = vmatpush.msra.mxu0 0.0
    %813 = vmatpush.msra.mxu0 0.0
    %814 = vmatpush.msra.mxu0 0.0
    %815 = vmatpush.msra.mxu0 0.0
    %816 = vmatpush.msra.mxu0 %v801
    %817 = vmatpush.msra.mxu0 %v800
    %818 = vmatmul.f32.gmra.mxu0 %v621
    %v819 = vpop.f32.mrf.mxu0
    %v820 = vadd.f32 0.0, %v819
    %821 = vmatmul.f32.gmra.mxu0 %v624
    %v822 = vpop.f32.mrf.mxu0
    %v823 = vadd.f32 0.0, %v822
    %824 = vmatmul.f32.gmra.mxu0 %v627
    %v825 = vpop.f32.mrf.mxu0
    %v826 = vadd.f32 0.0, %v825
    %827 = vdwg.mxu0
    %s828 = scalar_lea.vmem %s45, 1
    %v829 = vld [vmem:[%s828] sm:$0x1]
    %s830 = scalar_lea.vmem %s47, 1
    %v831 = vld [vmem:[%s830] sm:$0x1]
    %v833 = vsel %vm255, %v829, 0
    %v836 = vsel %vm255, %v820, 0
    %v839 = vsel %vm255, %v823, 0
    %v842 = vsel %vm255, %v826, 0
    %844 = vmatpush.xpose.msra.mxu0 0.0
    %845 = vmatpush.xpose.msra.mxu0 0.0
    %846 = vmatpush.xpose.msra.mxu0 0.0
    %847 = vmatpush.xpose.msra.mxu0 0.0
    %848 = vmatpush.xpose.msra.mxu0 0.0
    %849 = vmatpush.xpose.msra.mxu0 0.0
    %850 = vmatpush.xpose.msra.mxu0 0.0
    %851 = vmatpush.xpose.msra.mxu0 0.0
    %852 = vmatpush.xpose.msra.mxu0 0.0
    %853 = vmatpush.xpose.msra.mxu0 0.0
    %854 = vmatpush.xpose.msra.mxu0 0.0
    %855 = vmatpush.xpose.msra.mxu0 0.0
    %856 = vmatpush.xpose.msra.mxu0 0.0
    %857 = vmatpush.xpose.msra.mxu0 %v842
    %858 = vmatpush.xpose.msra.mxu0 %v839
    %859 = vmatpush.xpose.msra.mxu0 %v836
    %860 = vmatmul.f32.gmra.mxu0 %v833
    %v861 = vpop.f32.mrf.mxu0
    %v862 = vadd.f32 0.0, %v861
    %863 = vdwg.mxu0
    %v865 = vperm.slane %v831, 0
    %v867 = vmul.f32 %v820, %v865
    %v868 = vmul.f32 %v823, %v865
    %v869 = vmul.f32 %v826, %v865
    %v870 = vsel %vm255, %v867, 0.0
    %871 = vadd.xlane.f32.xlu0 %v870
    %v872 = vpop.xlane.xlu0 %871
    %v873 = vsel %vm255, %v868, 0.0
    %874 = vadd.xlane.f32.xlu0 %v873
    %v875 = vpop.xlane.xlu0 %874
    %v876 = vsel %vm257, %v869, 0.0
    %877 = vadd.xlane.f32.xlu0 %v876
    %v878 = vpop.xlane.xlu0 %877
    %v879 = vperm.slane %v862, 0
    %v880 = vadd.f32 %v872, %v879
    %v881 = vadd.f32 %v875, %v879
    %v882 = vadd.f32 %v878, %v879
    %vm883 = vcmp.gt.f32.partialorder %v880, 0.0
    %vm884 = vcmp.gt.f32.partialorder %v881, 0.0
    %vm885 = vcmp.gt.f32.partialorder %v882, 0.0
    %v886 = vmul.f32 %v880, 0.2
    %v887 = vmul.f32 %v881, 0.2
    %v888 = vmul.f32 %v882, 0.2
    %v889 = vsel %vm883, %v880, %v886
    %v890 = vsel %vm884, %v881, %v887
    %v891 = vsel %vm885, %v882, %v888
    %v892 = vadd.f32 %v889, %v615
    %v893 = vadd.f32 %v890, %v616
    %v894 = vadd.f32 %v891, %v617
    %v895 = vsel %vm720, %v892, -inf
    %896 = vmax.xlane.f32.xlu0 %v895
    %v897 = vpop.xlane.xlu0 %896
    %v898 = vsel %vm720, %v893, -inf
    %899 = vmax.xlane.f32.xlu0 %v898
    %v900 = vpop.xlane.xlu0 %899
    %v901 = vsel %vm727, %v894, -inf
    %902 = vmax.xlane.f32.xlu0 %v901
    %v903 = vpop.xlane.xlu0 %902
    %v904 = vsub.f32 %v892, %v897
    %v905 = vsub.f32 %v893, %v900
    %v906 = vsub.f32 %v894, %v903
    %v907 = vmul.f32 %v904, 1.442695
    %v908 = vpow.pop %v907
    %v909 = vmul.f32 %v905, 1.442695
    %v910 = vpow.pop %v909
    %v911 = vmul.f32 %v906, 1.442695
    %v912 = vpow.pop %v911
    %v913 = vsel %vm720, %v908, 0.0
    %914 = vadd.xlane.f32.xlu0 %v913
    %v915 = vpop.xlane.xlu0 %914
    %v916 = vsel %vm720, %v910, 0.0
    %917 = vadd.xlane.f32.xlu0 %v916
    %v918 = vpop.xlane.xlu0 %917
    %v919 = vsel %vm727, %v912, 0.0
    %920 = vadd.xlane.f32.xlu0 %v919
    %v921 = vpop.xlane.xlu0 %920
    %v922 = vrcp.pop %v915
    %v923 = vrcp.pop %v918
    %v924 = vrcp.pop %v921
    %v925 = vmul.f32 %v908, %v922
    %v926 = vmul.f32 %v910, %v923
    %v927 = vmul.f32 %v912, %v924
    %s928 = scalar_lea.vmem %s49, 1
    %v929 = vld [vmem:[%s928] sm:$0x1]
    %v931 = vperm.slane %v929, 0
    %v934 = vsel %vm720, %v925, 0
    %v937 = vsel %vm720, %v926, 0
    %v940 = vsel %vm720, %v927, 0
    %v942 = vsel %vm226, %v826, 0
    %944 = vmatpush.msra.mxu0 0.0
    %945 = vmatpush.msra.mxu0 0.0
    %946 = vmatpush.msra.mxu0 0.0
    %947 = vmatpush.msra.mxu0 0.0
    %948 = vmatpush.msra.mxu0 0.0
    %949 = vmatpush.msra.mxu0 0.0
    %950 = vmatpush.msra.mxu0 0.0
    %951 = vmatpush.msra.mxu0 0.0
    %952 = vmatpush.msra.mxu0 0.0
    %953 = vmatpush.msra.mxu0 0.0
    %954 = vmatpush.msra.mxu0 0.0
    %955 = vmatpush.msra.mxu0 0.0
    %956 = vmatpush.msra.mxu0 0.0
    %957 = vmatpush.msra.mxu0 %v942
    %958 = vmatpush.msra.mxu0 %v823
    %959 = vmatpush.msra.mxu0 %v820
    %960 = vmatmul.f32.gmra.mxu0 %v934
    %v961 = vpop.f32.mrf.mxu0
    %v962 = vadd.f32 %v931, %v961
    %963 = vmatmul.f32.gmra.mxu0 %v937
    %v964 = vpop.f32.mrf.mxu0
    %v965 = vadd.f32 %v931, %v964
    %966 = vmatmul.f32.gmra.mxu0 %v940
    %v967 = vpop.f32.mrf.mxu0
    %v968 = vadd.f32 %v931, %v967
    %969 = vdwg.mxu0
    %v970 = vtanh.pop %v962
    %v971 = vtanh.pop %v965
    %v972 = vtanh.pop %v968
    %s973 = scalar_lea.vmem %s43, 32
    %v974 = vld [vmem:[%s973] sm:$0xff]
    %v975 = vld [vmem:[%s973 + $0x8] sm:$0xff]
    %976 = vmatpush.msra.mxu0 0.0
    %977 = vmatpush.msra.mxu0 0.0
    %978 = vmatpush.msra.mxu0 0.0
    %979 = vmatpush.msra.mxu0 0.0
    %980 = vmatpush.msra.mxu0 0.0
    %981 = vmatpush.msra.mxu0 0.0
    %982 = vmatpush.msra.mxu0 0.0
    %983 = vmatpush.msra.mxu0 0.0
    %984 = vmatpush.msra.mxu0 0.0
    %985 = vmatpush.msra.mxu0 0.0
    %986 = vmatpush.msra.mxu0 0.0
    %987 = vmatpush.msra.mxu0 0.0
    %988 = vmatpush.msra.mxu0 0.0
    %989 = vmatpush.msra.mxu0 0.0
    %990 = vmatpush.msra.mxu0 %v975
    %991 = vmatpush.msra.mxu0 %v974
    %992 = vmatmul.f32.gmra.mxu0 %v621
    %v993 = vpop.f32.mrf.mxu0
    %v994 = vadd.f32 0.0, %v993
    %995 = vmatmul.f32.gmra.mxu0 %v624
    %v996 = vpop.f32.mrf.mxu0
    %v997 = vadd.f32 0.0, %v996
    %998 = vmatmul.f32.gmra.mxu0 %v627
    %v999 = vpop.f32.mrf.mxu0
    %v1000 = vadd.f32 0.0, %v999
    %1001 = vdwg.mxu0
    %s1002 = scalar_lea.vmem %s45, 2
    %v1003 = vld [vmem:[%s1002] sm:$0x1]
    %s1004 = scalar_lea.vmem %s47, 2
    %v1005 = vld [vmem:[%s1004] sm:$0x1]
    %v1007 = vsel %vm255, %v1003, 0
    %v1010 = vsel %vm255, %v994, 0
    %v1013 = vsel %vm255, %v997, 0
    %v1016 = vsel %vm255, %v1000, 0
    %1018 = vmatpush.xpose.msra.mxu0 0.0
    %1019 = vmatpush.xpose.msra.mxu0 0.0
    %1020 = vmatpush.xpose.msra.mxu0 0.0
    %1021 = vmatpush.xpose.msra.mxu0 0.0
    %1022 = vmatpush.xpose.msra.mxu0 0.0
    %1023 = vmatpush.xpose.msra.mxu0 0.0
    %1024 = vmatpush.xpose.msra.mxu0 0.0
    %1025 = vmatpush.xpose.msra.mxu0 0.0
    %1026 = vmatpush.xpose.msra.mxu0 0.0
    %1027 = vmatpush.xpose.msra.mxu0 0.0
    %1028 = vmatpush.xpose.msra.mxu0 0.0
    %1029 = vmatpush.xpose.msra.mxu0 0.0
    %1030 = vmatpush.xpose.msra.mxu0 0.0
    %1031 = vmatpush.xpose.msra.mxu0 %v1016
    %1032 = vmatpush.xpose.msra.mxu0 %v1013
    %1033 = vmatpush.xpose.msra.mxu0 %v1010
    %1034 = vmatmul.f32.gmra.mxu0 %v1007
    %v1035 = vpop.f32.mrf.mxu0
    %v1036 = vadd.f32 0.0, %v1035
    %1037 = vdwg.mxu0
    %v1039 = vperm.slane %v1005, 0
    %v1041 = vmul.f32 %v994, %v1039
    %v1042 = vmul.f32 %v997, %v1039
    %v1043 = vmul.f32 %v1000, %v1039
    %v1044 = vsel %vm255, %v1041, 0.0
    %1045 = vadd.xlane.f32.xlu0 %v1044
    %v1046 = vpop.xlane.xlu0 %1045
    %v1047 = vsel %vm255, %v1042, 0.0
    %1048 = vadd.xlane.f32.xlu0 %v1047
    %v1049 = vpop.xlane.xlu0 %1048
    %v1050 = vsel %vm257, %v1043, 0.0
    %1051 = vadd.xlane.f32.xlu0 %v1050
    %v1052 = vpop.xlane.xlu0 %1051
    %v1053 = vperm.slane %v1036, 0
    %v1054 = vadd.f32 %v1046, %v1053
    %v1055 = vadd.f32 %v1049, %v1053
    %v1056 = vadd.f32 %v1052, %v1053
    %vm1057 = vcmp.gt.f32.partialorder %v1054, 0.0
    %vm1058 = vcmp.gt.f32.partialorder %v1055, 0.0
    %vm1059 = vcmp.gt.f32.partialorder %v1056, 0.0
    %v1060 = vmul.f32 %v1054, 0.2
    %v1061 = vmul.f32 %v1055, 0.2
    %v1062 = vmul.f32 %v1056, 0.2
    %v1063 = vsel %vm1057, %v1054, %v1060
    %v1064 = vsel %vm1058, %v1055, %v1061
    %v1065 = vsel %vm1059, %v1056, %v1062
    %v1066 = vadd.f32 %v1063, %v615
    %v1067 = vadd.f32 %v1064, %v616
    %v1068 = vadd.f32 %v1065, %v617
    %v1069 = vsel %vm720, %v1066, -inf
    %1070 = vmax.xlane.f32.xlu0 %v1069
    %v1071 = vpop.xlane.xlu0 %1070
    %v1072 = vsel %vm720, %v1067, -inf
    %1073 = vmax.xlane.f32.xlu0 %v1072
    %v1074 = vpop.xlane.xlu0 %1073
    %v1075 = vsel %vm727, %v1068, -inf
    %1076 = vmax.xlane.f32.xlu0 %v1075
    %v1077 = vpop.xlane.xlu0 %1076
    %v1078 = vsub.f32 %v1066, %v1071
    %v1079 = vsub.f32 %v1067, %v1074
    %v1080 = vsub.f32 %v1068, %v1077
    %v1081 = vmul.f32 %v1078, 1.442695
    %v1082 = vpow.pop %v1081
    %v1083 = vmul.f32 %v1079, 1.442695
    %v1084 = vpow.pop %v1083
    %v1085 = vmul.f32 %v1080, 1.442695
    %v1086 = vpow.pop %v1085
    %v1087 = vsel %vm720, %v1082, 0.0
    %1088 = vadd.xlane.f32.xlu0 %v1087
    %v1089 = vpop.xlane.xlu0 %1088
    %v1090 = vsel %vm720, %v1084, 0.0
    %1091 = vadd.xlane.f32.xlu0 %v1090
    %v1092 = vpop.xlane.xlu0 %1091
    %v1093 = vsel %vm727, %v1086, 0.0
    %1094 = vadd.xlane.f32.xlu0 %v1093
    %v1095 = vpop.xlane.xlu0 %1094
    %v1096 = vrcp.pop %v1089
    %v1097 = vrcp.pop %v1092
    %v1098 = vrcp.pop %v1095
    %v1099 = vmul.f32 %v1082, %v1096
    %v1100 = vmul.f32 %v1084, %v1097
    %v1101 = vmul.f32 %v1086, %v1098
    %s1102 = scalar_lea.vmem %s49, 2
    %v1103 = vld [vmem:[%s1102] sm:$0x1]
    %v1105 = vperm.slane %v1103, 0
    %v1108 = vsel %vm720, %v1099, 0
    %v1111 = vsel %vm720, %v1100, 0
    %v1114 = vsel %vm720, %v1101, 0
    %v1116 = vsel %vm226, %v1000, 0
    %1118 = vmatpush.msra.mxu0 0.0
    %1119 = vmatpush.msra.mxu0 0.0
    %1120 = vmatpush.msra.mxu0 0.0
    %1121 = vmatpush.msra.mxu0 0.0
    %1122 = vmatpush.msra.mxu0 0.0
    %1123 = vmatpush.msra.mxu0 0.0
    %1124 = vmatpush.msra.mxu0 0.0
    %1125 = vmatpush.msra.mxu0 0.0
    %1126 = vmatpush.msra.mxu0 0.0
    %1127 = vmatpush.msra.mxu0 0.0
    %1128 = vmatpush.msra.mxu0 0.0
    %1129 = vmatpush.msra.mxu0 0.0
    %1130 = vmatpush.msra.mxu0 0.0
    %1131 = vmatpush.msra.mxu0 %v1116
    %1132 = vmatpush.msra.mxu0 %v997
    %1133 = vmatpush.msra.mxu0 %v994
    %1134 = vmatmul.f32.gmra.mxu0 %v1108
    %v1135 = vpop.f32.mrf.mxu0
    %v1136 = vadd.f32 %v1105, %v1135
    %1137 = vmatmul.f32.gmra.mxu0 %v1111
    %v1138 = vpop.f32.mrf.mxu0
    %v1139 = vadd.f32 %v1105, %v1138
    %1140 = vmatmul.f32.gmra.mxu0 %v1114
    %v1141 = vpop.f32.mrf.mxu0
    %v1142 = vadd.f32 %v1105, %v1141
    %1143 = vdwg.mxu0
    %v1144 = vtanh.pop %v1136
    %v1145 = vtanh.pop %v1139
    %v1146 = vtanh.pop %v1142
    %s1147 = scalar_lea.vmem %s43, 48
    %v1148 = vld [vmem:[%s1147] sm:$0xff]
    %v1149 = vld [vmem:[%s1147 + $0x8] sm:$0xff]
    %1150 = vmatpush.msra.mxu0 0.0
    %1151 = vmatpush.msra.mxu0 0.0
    %1152 = vmatpush.msra.mxu0 0.0
    %1153 = vmatpush.msra.mxu0 0.0
    %1154 = vmatpush.msra.mxu0 0.0
    %1155 = vmatpush.msra.mxu0 0.0
    %1156 = vmatpush.msra.mxu0 0.0
    %1157 = vmatpush.msra.mxu0 0.0
    %1158 = vmatpush.msra.mxu0 0.0
    %1159 = vmatpush.msra.mxu0 0.0
    %1160 = vmatpush.msra.mxu0 0.0
    %1161 = vmatpush.msra.mxu0 0.0
    %1162 = vmatpush.msra.mxu0 0.0
    %1163 = vmatpush.msra.mxu0 0.0
    %1164 = vmatpush.msra.mxu0 %v1149
    %1165 = vmatpush.msra.mxu0 %v1148
    %1166 = vmatmul.f32.gmra.mxu0 %v621
    %v1167 = vpop.f32.mrf.mxu0
    %v1168 = vadd.f32 0.0, %v1167
    %1169 = vmatmul.f32.gmra.mxu0 %v624
    %v1170 = vpop.f32.mrf.mxu0
    %v1171 = vadd.f32 0.0, %v1170
    %1172 = vmatmul.f32.gmra.mxu0 %v627
    %v1173 = vpop.f32.mrf.mxu0
    %v1174 = vadd.f32 0.0, %v1173
    %1175 = vdwg.mxu0
    %s1176 = scalar_lea.vmem %s45, 3
    %v1177 = vld [vmem:[%s1176] sm:$0x1]
    %s1178 = scalar_lea.vmem %s47, 3
    %v1179 = vld [vmem:[%s1178] sm:$0x1]
    %v1181 = vsel %vm255, %v1177, 0
    %v1184 = vsel %vm255, %v1168, 0
    %v1187 = vsel %vm255, %v1171, 0
    %v1190 = vsel %vm255, %v1174, 0
    %1192 = vmatpush.xpose.msra.mxu0 0.0
    %1193 = vmatpush.xpose.msra.mxu0 0.0
    %1194 = vmatpush.xpose.msra.mxu0 0.0
    %1195 = vmatpush.xpose.msra.mxu0 0.0
    %1196 = vmatpush.xpose.msra.mxu0 0.0
    %1197 = vmatpush.xpose.msra.mxu0 0.0
    %1198 = vmatpush.xpose.msra.mxu0 0.0
    %1199 = vmatpush.xpose.msra.mxu0 0.0
    %1200 = vmatpush.xpose.msra.mxu0 0.0
    %1201 = vmatpush.xpose.msra.mxu0 0.0
    %1202 = vmatpush.xpose.msra.mxu0 0.0
    %1203 = vmatpush.xpose.msra.mxu0 0.0
    %1204 = vmatpush.xpose.msra.mxu0 0.0
    %1205 = vmatpush.xpose.msra.mxu0 %v1190
    %1206 = vmatpush.xpose.msra.mxu0 %v1187
    %1207 = vmatpush.xpose.msra.mxu0 %v1184
    %1208 = vmatmul.f32.gmra.mxu0 %v1181
    %v1209 = vpop.f32.mrf.mxu0
    %v1210 = vadd.f32 0.0, %v1209
    %1211 = vdwg.mxu0
    %v1213 = vperm.slane %v1179, 0
    %v1215 = vmul.f32 %v1168, %v1213
    %v1216 = vmul.f32 %v1171, %v1213
    %v1217 = vmul.f32 %v1174, %v1213
    %v1218 = vsel %vm255, %v1215, 0.0
    %1219 = vadd.xlane.f32.xlu0 %v1218
    %v1220 = vpop.xlane.xlu0 %1219
    %v1221 = vsel %vm255, %v1216, 0.0
    %1222 = vadd.xlane.f32.xlu0 %v1221
    %v1223 = vpop.xlane.xlu0 %1222
    %v1224 = vsel %vm257, %v1217, 0.0
    %1225 = vadd.xlane.f32.xlu0 %v1224
    %v1226 = vpop.xlane.xlu0 %1225
    %v1227 = vperm.slane %v1210, 0
    %v1228 = vadd.f32 %v1220, %v1227
    %v1229 = vadd.f32 %v1223, %v1227
    %v1230 = vadd.f32 %v1226, %v1227
    %vm1231 = vcmp.gt.f32.partialorder %v1228, 0.0
    %vm1232 = vcmp.gt.f32.partialorder %v1229, 0.0
    %vm1233 = vcmp.gt.f32.partialorder %v1230, 0.0
    %v1234 = vmul.f32 %v1228, 0.2
    %v1235 = vmul.f32 %v1229, 0.2
    %v1236 = vmul.f32 %v1230, 0.2
    %v1237 = vsel %vm1231, %v1228, %v1234
    %v1238 = vsel %vm1232, %v1229, %v1235
    %v1239 = vsel %vm1233, %v1230, %v1236
    %v1240 = vadd.f32 %v1237, %v615
    %v1241 = vadd.f32 %v1238, %v616
    %v1242 = vadd.f32 %v1239, %v617
    %v1243 = vsel %vm720, %v1240, -inf
    %1244 = vmax.xlane.f32.xlu0 %v1243
    %v1245 = vpop.xlane.xlu0 %1244
    %v1246 = vsel %vm720, %v1241, -inf
    %1247 = vmax.xlane.f32.xlu0 %v1246
    %v1248 = vpop.xlane.xlu0 %1247
    %v1249 = vsel %vm727, %v1242, -inf
    %1250 = vmax.xlane.f32.xlu0 %v1249
    %v1251 = vpop.xlane.xlu0 %1250
    %v1252 = vsub.f32 %v1240, %v1245
    %v1253 = vsub.f32 %v1241, %v1248
    %v1254 = vsub.f32 %v1242, %v1251
    %v1255 = vmul.f32 %v1252, 1.442695
    %v1256 = vpow.pop %v1255
    %v1257 = vmul.f32 %v1253, 1.442695
    %v1258 = vpow.pop %v1257
    %v1259 = vmul.f32 %v1254, 1.442695
    %v1260 = vpow.pop %v1259
    %v1261 = vsel %vm720, %v1256, 0.0
    %1262 = vadd.xlane.f32.xlu0 %v1261
    %v1263 = vpop.xlane.xlu0 %1262
    %v1264 = vsel %vm720, %v1258, 0.0
    %1265 = vadd.xlane.f32.xlu0 %v1264
    %v1266 = vpop.xlane.xlu0 %1265
    %v1267 = vsel %vm727, %v1260, 0.0
    %1268 = vadd.xlane.f32.xlu0 %v1267
    %v1269 = vpop.xlane.xlu0 %1268
    %v1270 = vrcp.pop %v1263
    %v1271 = vrcp.pop %v1266
    %v1272 = vrcp.pop %v1269
    %v1273 = vmul.f32 %v1256, %v1270
    %v1274 = vmul.f32 %v1258, %v1271
    %v1275 = vmul.f32 %v1260, %v1272
    %s1276 = scalar_lea.vmem %s49, 3
    %v1277 = vld [vmem:[%s1276] sm:$0x1]
    %v1279 = vperm.slane %v1277, 0
    %v1282 = vsel %vm720, %v1273, 0
    %v1285 = vsel %vm720, %v1274, 0
    %v1288 = vsel %vm720, %v1275, 0
    %v1290 = vsel %vm226, %v1174, 0
    %1292 = vmatpush.msra.mxu0 0.0
    %1293 = vmatpush.msra.mxu0 0.0
    %1294 = vmatpush.msra.mxu0 0.0
    %1295 = vmatpush.msra.mxu0 0.0
    %1296 = vmatpush.msra.mxu0 0.0
    %1297 = vmatpush.msra.mxu0 0.0
    %1298 = vmatpush.msra.mxu0 0.0
    %1299 = vmatpush.msra.mxu0 0.0
    %1300 = vmatpush.msra.mxu0 0.0
    %1301 = vmatpush.msra.mxu0 0.0
    %1302 = vmatpush.msra.mxu0 0.0
    %1303 = vmatpush.msra.mxu0 0.0
    %1304 = vmatpush.msra.mxu0 0.0
    %1305 = vmatpush.msra.mxu0 %v1290
    %1306 = vmatpush.msra.mxu0 %v1171
    %1307 = vmatpush.msra.mxu0 %v1168
    %1308 = vmatmul.f32.gmra.mxu0 %v1282
    %v1309 = vpop.f32.mrf.mxu0
    %v1310 = vadd.f32 %v1279, %v1309
    %1311 = vmatmul.f32.gmra.mxu0 %v1285
    %v1312 = vpop.f32.mrf.mxu0
    %v1313 = vadd.f32 %v1279, %v1312
    %1314 = vmatmul.f32.gmra.mxu0 %v1288
    %v1315 = vpop.f32.mrf.mxu0
    %v1316 = vadd.f32 %v1279, %v1315
    %1317 = vdwg.mxu0
    %v1318 = vtanh.pop %v1310
    %v1319 = vtanh.pop %v1313
    %v1320 = vtanh.pop %v1316
    %v1321 = vld [vmem:[%s51] sm:$0xff]
    %v1322 = vld [vmem:[%s51 + $0x8] sm:$0xff]
    %s1323 = scalar_lea.vmem %s51, 64
    %v1324 = vld [vmem:[%s1323] sm:$0xff]
    %v1325 = vld [vmem:[%s1323 + $0x8] sm:$0xff]
    %v1327 = vsel %vm255, %v970, 0
    %v1330 = vsel %vm255, %v971, 0
    %v1333 = vsel %vm255, %v972, 0
    %1335 = vmatpush.msra.mxu0 0.0
    %1336 = vmatpush.msra.mxu0 0.0
    %1337 = vmatpush.msra.mxu0 0.0
    %1338 = vmatpush.msra.mxu0 0.0
    %1339 = vmatpush.msra.mxu0 0.0
    %1340 = vmatpush.msra.mxu0 0.0
    %1341 = vmatpush.msra.mxu0 0.0
    %1342 = vmatpush.msra.mxu0 0.0
    %1343 = vmatpush.msra.mxu0 0.0
    %1344 = vmatpush.msra.mxu0 0.0
    %1345 = vmatpush.msra.mxu0 0.0
    %1346 = vmatpush.msra.mxu0 0.0
    %1347 = vmatpush.msra.mxu0 0.0
    %1348 = vmatpush.msra.mxu0 0.0
    %1349 = vmatpush.msra.mxu0 %v1325
    %1350 = vmatpush.msra.mxu0 %v1324
    %1351 = vmatmul.f32.gmra.mxu0 %v1327
    %v1352 = vpop.f32.mrf.mxu0
    %v1353 = vadd.f32 0.0, %v1352
    %1354 = vmatmul.f32.gmra.mxu0 %v1330
    %v1355 = vpop.f32.mrf.mxu0
    %v1356 = vadd.f32 0.0, %v1355
    %1357 = vmatmul.f32.gmra.mxu0 %v1333
    %v1358 = vpop.f32.mrf.mxu0
    %v1359 = vadd.f32 0.0, %v1358
    %1360 = vdwg.mxu0
    %v1362 = vsel %vm255, %v796, 0
    %v1365 = vsel %vm255, %v797, 0
    %v1368 = vsel %vm255, %v798, 0
    %1370 = vmatpush.msra.mxu0 0.0
    %1371 = vmatpush.msra.mxu0 0.0
    %1372 = vmatpush.msra.mxu0 0.0
    %1373 = vmatpush.msra.mxu0 0.0
    %1374 = vmatpush.msra.mxu0 0.0
    %1375 = vmatpush.msra.mxu0 0.0
    %1376 = vmatpush.msra.mxu0 0.0
    %1377 = vmatpush.msra.mxu0 0.0
    %1378 = vmatpush.msra.mxu0 0.0
    %1379 = vmatpush.msra.mxu0 0.0
    %1380 = vmatpush.msra.mxu0 0.0
    %1381 = vmatpush.msra.mxu0 0.0
    %1382 = vmatpush.msra.mxu0 0.0
    %1383 = vmatpush.msra.mxu0 0.0
    %1384 = vmatpush.msra.mxu0 %v1322
    %1385 = vmatpush.msra.mxu0 %v1321
    %1386 = vmatmul.f32.gmra.mxu0 %v1362
    %v1387 = vpop.f32.mrf.mxu0
    %v1388 = vadd.f32 %v1353, %v1387
    %1389 = vmatmul.f32.gmra.mxu0 %v1365
    %v1390 = vpop.f32.mrf.mxu0
    %v1391 = vadd.f32 %v1356, %v1390
    %1392 = vmatmul.f32.gmra.mxu0 %v1368
    %v1393 = vpop.f32.mrf.mxu0
    %v1394 = vadd.f32 %v1359, %v1393
    %1395 = vdwg.mxu0
    %s1396 = scalar_lea.vmem %s51, 128
    %v1397 = vld [vmem:[%s1396] sm:$0xff]
    %v1398 = vld [vmem:[%s1396 + $0x8] sm:$0xff]
    %v1400 = vsel %vm255, %v1144, 0
    %v1403 = vsel %vm255, %v1145, 0
    %v1406 = vsel %vm255, %v1146, 0
    %1408 = vmatpush.msra.mxu0 0.0
    %1409 = vmatpush.msra.mxu0 0.0
    %1410 = vmatpush.msra.mxu0 0.0
    %1411 = vmatpush.msra.mxu0 0.0
    %1412 = vmatpush.msra.mxu0 0.0
    %1413 = vmatpush.msra.mxu0 0.0
    %1414 = vmatpush.msra.mxu0 0.0
    %1415 = vmatpush.msra.mxu0 0.0
    %1416 = vmatpush.msra.mxu0 0.0
    %1417 = vmatpush.msra.mxu0 0.0
    %1418 = vmatpush.msra.mxu0 0.0
    %1419 = vmatpush.msra.mxu0 0.0
    %1420 = vmatpush.msra.mxu0 0.0
    %1421 = vmatpush.msra.mxu0 0.0
    %1422 = vmatpush.msra.mxu0 %v1398
    %1423 = vmatpush.msra.mxu0 %v1397
    %1424 = vmatmul.f32.gmra.mxu0 %v1400
    %v1425 = vpop.f32.mrf.mxu0
    %v1426 = vadd.f32 0.0, %v1425
    %1427 = vmatmul.f32.gmra.mxu0 %v1403
    %v1428 = vpop.f32.mrf.mxu0
    %v1429 = vadd.f32 0.0, %v1428
    %1430 = vmatmul.f32.gmra.mxu0 %v1406
    %v1431 = vpop.f32.mrf.mxu0
    %v1432 = vadd.f32 0.0, %v1431
    %1433 = vdwg.mxu0
    %v1434 = vadd.f32 %v1388, %v1426
    %v1435 = vadd.f32 %v1391, %v1429
    %v1436 = vadd.f32 %v1394, %v1432
    %s1437 = scalar_lea.vmem %s51, 192
    %v1438 = vld [vmem:[%s1437] sm:$0xff]
    %v1439 = vld [vmem:[%s1437 + $0x8] sm:$0xff]
    %v1441 = vsel %vm255, %v1318, 0
    %v1444 = vsel %vm255, %v1319, 0
    %v1447 = vsel %vm255, %v1320, 0
    %1449 = vmatpush.msra.mxu0 0.0
    %1450 = vmatpush.msra.mxu0 0.0
    %1451 = vmatpush.msra.mxu0 0.0
    %1452 = vmatpush.msra.mxu0 0.0
    %1453 = vmatpush.msra.mxu0 0.0
    %1454 = vmatpush.msra.mxu0 0.0
    %1455 = vmatpush.msra.mxu0 0.0
    %1456 = vmatpush.msra.mxu0 0.0
    %1457 = vmatpush.msra.mxu0 0.0
    %1458 = vmatpush.msra.mxu0 0.0
    %1459 = vmatpush.msra.mxu0 0.0
    %1460 = vmatpush.msra.mxu0 0.0
    %1461 = vmatpush.msra.mxu0 0.0
    %1462 = vmatpush.msra.mxu0 0.0
    %1463 = vmatpush.msra.mxu0 %v1439
    %1464 = vmatpush.msra.mxu0 %v1438
    %1465 = vmatmul.f32.gmra.mxu0 %v1441
    %v1466 = vpop.f32.mrf.mxu0
    %v1467 = vadd.f32 0.0, %v1466
    %1468 = vmatmul.f32.gmra.mxu0 %v1444
    %v1469 = vpop.f32.mrf.mxu0
    %v1470 = vadd.f32 0.0, %v1469
    %1471 = vmatmul.f32.gmra.mxu0 %v1447
    %v1472 = vpop.f32.mrf.mxu0
    %v1473 = vadd.f32 0.0, %v1472
    %1474 = vdwg.mxu0
    %v1475 = vadd.f32 %v1434, %v1467
    %v1476 = vadd.f32 %v1435, %v1470
    %v1477 = vadd.f32 %v1436, %v1473
    %v1478 = vld [vmem:[%s53] sm:$0x1]
    %v1479 = vld [vmem:[%s55] sm:$0x1]
    %v1481 = vsel %vm185, %v1478, 0
    %v1484 = vsel %vm185, %v1475, 0
    %v1487 = vsel %vm185, %v1476, 0
    %v1490 = vsel %vm185, %v1477, 0
    %1492 = vmatpush.xpose.msra.mxu0 0.0
    %1493 = vmatpush.xpose.msra.mxu0 0.0
    %1494 = vmatpush.xpose.msra.mxu0 0.0
    %1495 = vmatpush.xpose.msra.mxu0 0.0
    %1496 = vmatpush.xpose.msra.mxu0 0.0
    %1497 = vmatpush.xpose.msra.mxu0 0.0
    %1498 = vmatpush.xpose.msra.mxu0 0.0
    %1499 = vmatpush.xpose.msra.mxu0 0.0
    %1500 = vmatpush.xpose.msra.mxu0 0.0
    %1501 = vmatpush.xpose.msra.mxu0 0.0
    %1502 = vmatpush.xpose.msra.mxu0 0.0
    %1503 = vmatpush.xpose.msra.mxu0 0.0
    %1504 = vmatpush.xpose.msra.mxu0 0.0
    %1505 = vmatpush.xpose.msra.mxu0 %v1490
    %1506 = vmatpush.xpose.msra.mxu0 %v1487
    %1507 = vmatpush.xpose.msra.mxu0 %v1484
    %1508 = vmatmul.f32.gmra.mxu0 %v1481
    %v1509 = vpop.f32.mrf.mxu0
    %v1510 = vadd.f32 0.0, %v1509
    %1511 = vdwg.mxu0
    %v1513 = vperm.slane %v1479, 0
    %v1515 = vmul.f32 %v1475, %v1513
    %v1516 = vmul.f32 %v1476, %v1513
    %v1517 = vmul.f32 %v1477, %v1513
    %v1518 = vsel %vm185, %v1515, 0.0
    %1519 = vadd.xlane.f32.xlu0 %v1518
    %v1520 = vpop.xlane.xlu0 %1519
    %v1521 = vsel %vm185, %v1516, 0.0
    %1522 = vadd.xlane.f32.xlu0 %v1521
    %v1523 = vpop.xlane.xlu0 %1522
    %vm1524 = vcmask 60416
    %v1525 = vsel %vm1524, %v1517, 0.0
    %1526 = vadd.xlane.f32.xlu0 %v1525
    %v1527 = vpop.xlane.xlu0 %1526
    %v1528 = vperm.slane %v1510, 0
    %v1529 = vadd.f32 %v1520, %v1528
    %v1530 = vadd.f32 %v1523, %v1528
    %v1531 = vadd.f32 %v1527, %v1528
    %vm1532 = vcmp.gt.f32.partialorder %v1529, 0.0
    %vm1533 = vcmp.gt.f32.partialorder %v1530, 0.0
    %vm1534 = vcmp.gt.f32.partialorder %v1531, 0.0
    %v1535 = vmul.f32 %v1529, 0.2
    %v1536 = vmul.f32 %v1530, 0.2
    %v1537 = vmul.f32 %v1531, 0.2
    %v1538 = vsel %vm1532, %v1529, %v1535
    %v1539 = vsel %vm1533, %v1530, %v1536
    %v1540 = vsel %vm1534, %v1531, %v1537
    %v1541 = vadd.f32 %v1538, %v615
    %v1542 = vadd.f32 %v1539, %v616
    %v1543 = vadd.f32 %v1540, %v617
    %v1544 = vsel %vm720, %v1541, -inf
    %1545 = vmax.xlane.f32.xlu0 %v1544
    %v1546 = vpop.xlane.xlu0 %1545
    %v1547 = vsel %vm720, %v1542, -inf
    %1548 = vmax.xlane.f32.xlu0 %v1547
    %v1549 = vpop.xlane.xlu0 %1548
    %v1550 = vsel %vm727, %v1543, -inf
    %1551 = vmax.xlane.f32.xlu0 %v1550
    %v1552 = vpop.xlane.xlu0 %1551
    %v1553 = vsub.f32 %v1541, %v1546
    %v1554 = vsub.f32 %v1542, %v1549
    %v1555 = vsub.f32 %v1543, %v1552
    %v1556 = vmul.f32 %v1553, 1.442695
    %v1557 = vpow.pop %v1556
    %v1558 = vmul.f32 %v1554, 1.442695
    %v1559 = vpow.pop %v1558
    %v1560 = vmul.f32 %v1555, 1.442695
    %v1561 = vpow.pop %v1560
    %v1562 = vsel %vm720, %v1557, 0.0
    %1563 = vadd.xlane.f32.xlu0 %v1562
    %v1564 = vpop.xlane.xlu0 %1563
    %v1565 = vsel %vm720, %v1559, 0.0
    %1566 = vadd.xlane.f32.xlu0 %v1565
    %v1567 = vpop.xlane.xlu0 %1566
    %v1568 = vsel %vm727, %v1561, 0.0
    %1569 = vadd.xlane.f32.xlu0 %v1568
    %v1570 = vpop.xlane.xlu0 %1569
    %v1571 = vrcp.pop %v1564
    %v1572 = vrcp.pop %v1567
    %v1573 = vrcp.pop %v1570
    %v1574 = vmul.f32 %v1557, %v1571
    %v1575 = vmul.f32 %v1559, %v1572
    %v1576 = vmul.f32 %v1561, %v1573
    %s1577 = scalar_lea.vmem %s51, 16
    %v1578 = vld [vmem:[%s1577] sm:$0xff]
    %v1579 = vld [vmem:[%s1577 + $0x8] sm:$0xff]
    %s1580 = scalar_lea.vmem %s51, 80
    %v1581 = vld [vmem:[%s1580] sm:$0xff]
    %v1582 = vld [vmem:[%s1580 + $0x8] sm:$0xff]
    %1583 = vmatpush.msra.mxu0 0.0
    %1584 = vmatpush.msra.mxu0 0.0
    %1585 = vmatpush.msra.mxu0 0.0
    %1586 = vmatpush.msra.mxu0 0.0
    %1587 = vmatpush.msra.mxu0 0.0
    %1588 = vmatpush.msra.mxu0 0.0
    %1589 = vmatpush.msra.mxu0 0.0
    %1590 = vmatpush.msra.mxu0 0.0
    %1591 = vmatpush.msra.mxu0 0.0
    %1592 = vmatpush.msra.mxu0 0.0
    %1593 = vmatpush.msra.mxu0 0.0
    %1594 = vmatpush.msra.mxu0 0.0
    %1595 = vmatpush.msra.mxu0 0.0
    %1596 = vmatpush.msra.mxu0 0.0
    %1597 = vmatpush.msra.mxu0 %v1582
    %1598 = vmatpush.msra.mxu0 %v1581
    %1599 = vmatmul.f32.gmra.mxu0 %v1327
    %v1600 = vpop.f32.mrf.mxu0
    %v1601 = vadd.f32 0.0, %v1600
    %1602 = vmatmul.f32.gmra.mxu0 %v1330
    %v1603 = vpop.f32.mrf.mxu0
    %v1604 = vadd.f32 0.0, %v1603
    %1605 = vmatmul.f32.gmra.mxu0 %v1333
    %v1606 = vpop.f32.mrf.mxu0
    %v1607 = vadd.f32 0.0, %v1606
    %1608 = vdwg.mxu0
    %1609 = vmatpush.msra.mxu0 0.0
    %1610 = vmatpush.msra.mxu0 0.0
    %1611 = vmatpush.msra.mxu0 0.0
    %1612 = vmatpush.msra.mxu0 0.0
    %1613 = vmatpush.msra.mxu0 0.0
    %1614 = vmatpush.msra.mxu0 0.0
    %1615 = vmatpush.msra.mxu0 0.0
    %1616 = vmatpush.msra.mxu0 0.0
    %1617 = vmatpush.msra.mxu0 0.0
    %1618 = vmatpush.msra.mxu0 0.0
    %1619 = vmatpush.msra.mxu0 0.0
    %1620 = vmatpush.msra.mxu0 0.0
    %1621 = vmatpush.msra.mxu0 0.0
    %1622 = vmatpush.msra.mxu0 0.0
    %1623 = vmatpush.msra.mxu0 %v1579
    %1624 = vmatpush.msra.mxu0 %v1578
    %1625 = vmatmul.f32.gmra.mxu0 %v1362
    %v1626 = vpop.f32.mrf.mxu0
    %v1627 = vadd.f32 %v1601, %v1626
    %1628 = vmatmul.f32.gmra.mxu0 %v1365
    %v1629 = vpop.f32.mrf.mxu0
    %v1630 = vadd.f32 %v1604, %v1629
    %1631 = vmatmul.f32.gmra.mxu0 %v1368
    %v1632 = vpop.f32.mrf.mxu0
    %v1633 = vadd.f32 %v1607, %v1632
    %1634 = vdwg.mxu0
    %s1635 = scalar_lea.vmem %s51, 144
    %v1636 = vld [vmem:[%s1635] sm:$0xff]
    %v1637 = vld [vmem:[%s1635 + $0x8] sm:$0xff]
    %1638 = vmatpush.msra.mxu0 0.0
    %1639 = vmatpush.msra.mxu0 0.0
    %1640 = vmatpush.msra.mxu0 0.0
    %1641 = vmatpush.msra.mxu0 0.0
    %1642 = vmatpush.msra.mxu0 0.0
    %1643 = vmatpush.msra.mxu0 0.0
    %1644 = vmatpush.msra.mxu0 0.0
    %1645 = vmatpush.msra.mxu0 0.0
    %1646 = vmatpush.msra.mxu0 0.0
    %1647 = vmatpush.msra.mxu0 0.0
    %1648 = vmatpush.msra.mxu0 0.0
    %1649 = vmatpush.msra.mxu0 0.0
    %1650 = vmatpush.msra.mxu0 0.0
    %1651 = vmatpush.msra.mxu0 0.0
    %1652 = vmatpush.msra.mxu0 %v1637
    %1653 = vmatpush.msra.mxu0 %v1636
    %1654 = vmatmul.f32.gmra.mxu0 %v1400
    %v1655 = vpop.f32.mrf.mxu0
    %v1656 = vadd.f32 0.0, %v1655
    %1657 = vmatmul.f32.gmra.mxu0 %v1403
    %v1658 = vpop.f32.mrf.mxu0
    %v1659 = vadd.f32 0.0, %v1658
    %1660 = vmatmul.f32.gmra.mxu0 %v1406
    %v1661 = vpop.f32.mrf.mxu0
    %v1662 = vadd.f32 0.0, %v1661
    %1663 = vdwg.mxu0
    %v1664 = vadd.f32 %v1627, %v1656
    %v1665 = vadd.f32 %v1630, %v1659
    %v1666 = vadd.f32 %v1633, %v1662
    %s1667 = scalar_lea.vmem %s51, 208
    %v1668 = vld [vmem:[%s1667] sm:$0xff]
    %v1669 = vld [vmem:[%s1667 + $0x8] sm:$0xff]
    %1670 = vmatpush.msra.mxu0 0.0
    %1671 = vmatpush.msra.mxu0 0.0
    %1672 = vmatpush.msra.mxu0 0.0
    %1673 = vmatpush.msra.mxu0 0.0
    %1674 = vmatpush.msra.mxu0 0.0
    %1675 = vmatpush.msra.mxu0 0.0
    %1676 = vmatpush.msra.mxu0 0.0
    %1677 = vmatpush.msra.mxu0 0.0
    %1678 = vmatpush.msra.mxu0 0.0
    %1679 = vmatpush.msra.mxu0 0.0
    %1680 = vmatpush.msra.mxu0 0.0
    %1681 = vmatpush.msra.mxu0 0.0
    %1682 = vmatpush.msra.mxu0 0.0
    %1683 = vmatpush.msra.mxu0 0.0
    %1684 = vmatpush.msra.mxu0 %v1669
    %1685 = vmatpush.msra.mxu0 %v1668
    %1686 = vmatmul.f32.gmra.mxu0 %v1441
    %v1687 = vpop.f32.mrf.mxu0
    %v1688 = vadd.f32 0.0, %v1687
    %1689 = vmatmul.f32.gmra.mxu0 %v1444
    %v1690 = vpop.f32.mrf.mxu0
    %v1691 = vadd.f32 0.0, %v1690
    %1692 = vmatmul.f32.gmra.mxu0 %v1447
    %v1693 = vpop.f32.mrf.mxu0
    %v1694 = vadd.f32 0.0, %v1693
    %1695 = vdwg.mxu0
    %v1696 = vadd.f32 %v1664, %v1688
    %v1697 = vadd.f32 %v1665, %v1691
    %v1698 = vadd.f32 %v1666, %v1694
    %s1699 = scalar_lea.vmem %s53, 1
    %v1700 = vld [vmem:[%s1699] sm:$0x1]
    %s1701 = scalar_lea.vmem %s55, 1
    %v1702 = vld [vmem:[%s1701] sm:$0x1]
    %v1704 = vsel %vm185, %v1700, 0
    %v1707 = vsel %vm185, %v1696, 0
    %v1710 = vsel %vm185, %v1697, 0
    %v1713 = vsel %vm185, %v1698, 0
    %1715 = vmatpush.xpose.msra.mxu0 0.0
    %1716 = vmatpush.xpose.msra.mxu0 0.0
    %1717 = vmatpush.xpose.msra.mxu0 0.0
    %1718 = vmatpush.xpose.msra.mxu0 0.0
    %1719 = vmatpush.xpose.msra.mxu0 0.0
    %1720 = vmatpush.xpose.msra.mxu0 0.0
    %1721 = vmatpush.xpose.msra.mxu0 0.0
    %1722 = vmatpush.xpose.msra.mxu0 0.0
    %1723 = vmatpush.xpose.msra.mxu0 0.0
    %1724 = vmatpush.xpose.msra.mxu0 0.0
    %1725 = vmatpush.xpose.msra.mxu0 0.0
    %1726 = vmatpush.xpose.msra.mxu0 0.0
    %1727 = vmatpush.xpose.msra.mxu0 0.0
    %1728 = vmatpush.xpose.msra.mxu0 %v1713
    %1729 = vmatpush.xpose.msra.mxu0 %v1710
    %1730 = vmatpush.xpose.msra.mxu0 %v1707
    %1731 = vmatmul.f32.gmra.mxu0 %v1704
    %v1732 = vpop.f32.mrf.mxu0
    %v1733 = vadd.f32 0.0, %v1732
    %1734 = vdwg.mxu0
    %v1736 = vperm.slane %v1702, 0
    %v1738 = vmul.f32 %v1696, %v1736
    %v1739 = vmul.f32 %v1697, %v1736
    %v1740 = vmul.f32 %v1698, %v1736
    %v1741 = vsel %vm185, %v1738, 0.0
    %1742 = vadd.xlane.f32.xlu0 %v1741
    %v1743 = vpop.xlane.xlu0 %1742
    %v1744 = vsel %vm185, %v1739, 0.0
    %1745 = vadd.xlane.f32.xlu0 %v1744
    %v1746 = vpop.xlane.xlu0 %1745
    %v1747 = vsel %vm1524, %v1740, 0.0
    %1748 = vadd.xlane.f32.xlu0 %v1747
    %v1749 = vpop.xlane.xlu0 %1748
    %v1750 = vperm.slane %v1733, 0
    %v1751 = vadd.f32 %v1743, %v1750
    %v1752 = vadd.f32 %v1746, %v1750
    %v1753 = vadd.f32 %v1749, %v1750
    %vm1754 = vcmp.gt.f32.partialorder %v1751, 0.0
    %vm1755 = vcmp.gt.f32.partialorder %v1752, 0.0
    %vm1756 = vcmp.gt.f32.partialorder %v1753, 0.0
    %v1757 = vmul.f32 %v1751, 0.2
    %v1758 = vmul.f32 %v1752, 0.2
    %v1759 = vmul.f32 %v1753, 0.2
    %v1760 = vsel %vm1754, %v1751, %v1757
    %v1761 = vsel %vm1755, %v1752, %v1758
    %v1762 = vsel %vm1756, %v1753, %v1759
    %v1763 = vadd.f32 %v1760, %v615
    %v1764 = vadd.f32 %v1761, %v616
    %v1765 = vadd.f32 %v1762, %v617
    %v1766 = vsel %vm720, %v1763, -inf
    %1767 = vmax.xlane.f32.xlu0 %v1766
    %v1768 = vpop.xlane.xlu0 %1767
    %v1769 = vsel %vm720, %v1764, -inf
    %1770 = vmax.xlane.f32.xlu0 %v1769
    %v1771 = vpop.xlane.xlu0 %1770
    %v1772 = vsel %vm727, %v1765, -inf
    %1773 = vmax.xlane.f32.xlu0 %v1772
    %v1774 = vpop.xlane.xlu0 %1773
    %v1775 = vsub.f32 %v1763, %v1768
    %v1776 = vsub.f32 %v1764, %v1771
    %v1777 = vsub.f32 %v1765, %v1774
    %v1778 = vmul.f32 %v1775, 1.442695
    %v1779 = vpow.pop %v1778
    %v1780 = vmul.f32 %v1776, 1.442695
    %v1781 = vpow.pop %v1780
    %v1782 = vmul.f32 %v1777, 1.442695
    %v1783 = vpow.pop %v1782
    %v1784 = vsel %vm720, %v1779, 0.0
    %1785 = vadd.xlane.f32.xlu0 %v1784
    %v1786 = vpop.xlane.xlu0 %1785
    %v1787 = vsel %vm720, %v1781, 0.0
    %1788 = vadd.xlane.f32.xlu0 %v1787
    %v1789 = vpop.xlane.xlu0 %1788
    %v1790 = vsel %vm727, %v1783, 0.0
    %1791 = vadd.xlane.f32.xlu0 %v1790
    %v1792 = vpop.xlane.xlu0 %1791
    %v1793 = vrcp.pop %v1786
    %v1794 = vrcp.pop %v1789
    %v1795 = vrcp.pop %v1792
    %v1796 = vmul.f32 %v1779, %v1793
    %v1797 = vmul.f32 %v1781, %v1794
    %v1798 = vmul.f32 %v1783, %v1795
    %v1800 = vsel %vm720, %v1796, 0
    %v1803 = vsel %vm720, %v1797, 0
    %v1806 = vsel %vm720, %v1798, 0
    %v1808 = vsel %vm226, %v1698, 0
    %1810 = vmatpush.msra.mxu0 0.0
    %1811 = vmatpush.msra.mxu0 0.0
    %1812 = vmatpush.msra.mxu0 0.0
    %1813 = vmatpush.msra.mxu0 0.0
    %1814 = vmatpush.msra.mxu0 0.0
    %1815 = vmatpush.msra.mxu0 0.0
    %1816 = vmatpush.msra.mxu0 0.0
    %1817 = vmatpush.msra.mxu0 0.0
    %1818 = vmatpush.msra.mxu0 0.0
    %1819 = vmatpush.msra.mxu0 0.0
    %1820 = vmatpush.msra.mxu0 0.0
    %1821 = vmatpush.msra.mxu0 0.0
    %1822 = vmatpush.msra.mxu0 0.0
    %1823 = vmatpush.msra.mxu0 %v1808
    %1824 = vmatpush.msra.mxu0 %v1697
    %1825 = vmatpush.msra.mxu0 %v1696
    %1826 = vmatmul.f32.gmra.mxu0 %v1800
    %v1827 = vpop.f32.mrf.mxu0
    %v1828 = vadd.f32 0.0, %v1827
    %1829 = vmatmul.f32.gmra.mxu0 %v1803
    %v1830 = vpop.f32.mrf.mxu0
    %v1831 = vadd.f32 0.0, %v1830
    %1832 = vmatmul.f32.gmra.mxu0 %v1806
    %v1833 = vpop.f32.mrf.mxu0
    %v1834 = vadd.f32 0.0, %v1833
    %1835 = vdwg.mxu0
    %v1837 = vsel %vm720, %v1574, 0
    %v1840 = vsel %vm720, %v1575, 0
    %v1843 = vsel %vm720, %v1576, 0
    %v1845 = vsel %vm226, %v1477, 0
    %1847 = vmatpush.msra.mxu0 0.0
    %1848 = vmatpush.msra.mxu0 0.0
    %1849 = vmatpush.msra.mxu0 0.0
    %1850 = vmatpush.msra.mxu0 0.0
    %1851 = vmatpush.msra.mxu0 0.0
    %1852 = vmatpush.msra.mxu0 0.0
    %1853 = vmatpush.msra.mxu0 0.0
    %1854 = vmatpush.msra.mxu0 0.0
    %1855 = vmatpush.msra.mxu0 0.0
    %1856 = vmatpush.msra.mxu0 0.0
    %1857 = vmatpush.msra.mxu0 0.0
    %1858 = vmatpush.msra.mxu0 0.0
    %1859 = vmatpush.msra.mxu0 0.0
    %1860 = vmatpush.msra.mxu0 %v1845
    %1861 = vmatpush.msra.mxu0 %v1476
    %1862 = vmatpush.msra.mxu0 %v1475
    %1863 = vmatmul.f32.gmra.mxu0 %v1837
    %v1864 = vpop.f32.mrf.mxu0
    %v1865 = vadd.f32 %v1828, %v1864
    %1866 = vmatmul.f32.gmra.mxu0 %v1840
    %v1867 = vpop.f32.mrf.mxu0
    %v1868 = vadd.f32 %v1831, %v1867
    %1869 = vmatmul.f32.gmra.mxu0 %v1843
    %v1870 = vpop.f32.mrf.mxu0
    %v1871 = vadd.f32 %v1834, %v1870
    %1872 = vdwg.mxu0
    %s1873 = scalar_lea.vmem %s51, 32
    %v1874 = vld [vmem:[%s1873] sm:$0xff]
    %v1875 = vld [vmem:[%s1873 + $0x8] sm:$0xff]
    %s1876 = scalar_lea.vmem %s51, 96
    %v1877 = vld [vmem:[%s1876] sm:$0xff]
    %v1878 = vld [vmem:[%s1876 + $0x8] sm:$0xff]
    %1879 = vmatpush.msra.mxu0 0.0
    %1880 = vmatpush.msra.mxu0 0.0
    %1881 = vmatpush.msra.mxu0 0.0
    %1882 = vmatpush.msra.mxu0 0.0
    %1883 = vmatpush.msra.mxu0 0.0
    %1884 = vmatpush.msra.mxu0 0.0
    %1885 = vmatpush.msra.mxu0 0.0
    %1886 = vmatpush.msra.mxu0 0.0
    %1887 = vmatpush.msra.mxu0 0.0
    %1888 = vmatpush.msra.mxu0 0.0
    %1889 = vmatpush.msra.mxu0 0.0
    %1890 = vmatpush.msra.mxu0 0.0
    %1891 = vmatpush.msra.mxu0 0.0
    %1892 = vmatpush.msra.mxu0 0.0
    %1893 = vmatpush.msra.mxu0 %v1878
    %1894 = vmatpush.msra.mxu0 %v1877
    %1895 = vmatmul.f32.gmra.mxu0 %v1327
    %v1896 = vpop.f32.mrf.mxu0
    %v1897 = vadd.f32 0.0, %v1896
    %1898 = vmatmul.f32.gmra.mxu0 %v1330
    %v1899 = vpop.f32.mrf.mxu0
    %v1900 = vadd.f32 0.0, %v1899
    %1901 = vmatmul.f32.gmra.mxu0 %v1333
    %v1902 = vpop.f32.mrf.mxu0
    %v1903 = vadd.f32 0.0, %v1902
    %1904 = vdwg.mxu0
    %1905 = vmatpush.msra.mxu0 0.0
    %1906 = vmatpush.msra.mxu0 0.0
    %1907 = vmatpush.msra.mxu0 0.0
    %1908 = vmatpush.msra.mxu0 0.0
    %1909 = vmatpush.msra.mxu0 0.0
    %1910 = vmatpush.msra.mxu0 0.0
    %1911 = vmatpush.msra.mxu0 0.0
    %1912 = vmatpush.msra.mxu0 0.0
    %1913 = vmatpush.msra.mxu0 0.0
    %1914 = vmatpush.msra.mxu0 0.0
    %1915 = vmatpush.msra.mxu0 0.0
    %1916 = vmatpush.msra.mxu0 0.0
    %1917 = vmatpush.msra.mxu0 0.0
    %1918 = vmatpush.msra.mxu0 0.0
    %1919 = vmatpush.msra.mxu0 %v1875
    %1920 = vmatpush.msra.mxu0 %v1874
    %1921 = vmatmul.f32.gmra.mxu0 %v1362
    %v1922 = vpop.f32.mrf.mxu0
    %v1923 = vadd.f32 %v1897, %v1922
    %1924 = vmatmul.f32.gmra.mxu0 %v1365
    %v1925 = vpop.f32.mrf.mxu0
    %v1926 = vadd.f32 %v1900, %v1925
    %1927 = vmatmul.f32.gmra.mxu0 %v1368
    %v1928 = vpop.f32.mrf.mxu0
    %v1929 = vadd.f32 %v1903, %v1928
    %1930 = vdwg.mxu0
    %s1931 = scalar_lea.vmem %s51, 160
    %v1932 = vld [vmem:[%s1931] sm:$0xff]
    %v1933 = vld [vmem:[%s1931 + $0x8] sm:$0xff]
    %1934 = vmatpush.msra.mxu0 0.0
    %1935 = vmatpush.msra.mxu0 0.0
    %1936 = vmatpush.msra.mxu0 0.0
    %1937 = vmatpush.msra.mxu0 0.0
    %1938 = vmatpush.msra.mxu0 0.0
    %1939 = vmatpush.msra.mxu0 0.0
    %1940 = vmatpush.msra.mxu0 0.0
    %1941 = vmatpush.msra.mxu0 0.0
    %1942 = vmatpush.msra.mxu0 0.0
    %1943 = vmatpush.msra.mxu0 0.0
    %1944 = vmatpush.msra.mxu0 0.0
    %1945 = vmatpush.msra.mxu0 0.0
    %1946 = vmatpush.msra.mxu0 0.0
    %1947 = vmatpush.msra.mxu0 0.0
    %1948 = vmatpush.msra.mxu0 %v1933
    %1949 = vmatpush.msra.mxu0 %v1932
    %1950 = vmatmul.f32.gmra.mxu0 %v1400
    %v1951 = vpop.f32.mrf.mxu0
    %v1952 = vadd.f32 0.0, %v1951
    %1953 = vmatmul.f32.gmra.mxu0 %v1403
    %v1954 = vpop.f32.mrf.mxu0
    %v1955 = vadd.f32 0.0, %v1954
    %1956 = vmatmul.f32.gmra.mxu0 %v1406
    %v1957 = vpop.f32.mrf.mxu0
    %v1958 = vadd.f32 0.0, %v1957
    %1959 = vdwg.mxu0
    %v1960 = vadd.f32 %v1923, %v1952
    %v1961 = vadd.f32 %v1926, %v1955
    %v1962 = vadd.f32 %v1929, %v1958
    %s1963 = scalar_lea.vmem %s51, 224
    %v1964 = vld [vmem:[%s1963] sm:$0xff]
    %v1965 = vld [vmem:[%s1963 + $0x8] sm:$0xff]
    %1966 = vmatpush.msra.mxu0 0.0
    %1967 = vmatpush.msra.mxu0 0.0
    %1968 = vmatpush.msra.mxu0 0.0
    %1969 = vmatpush.msra.mxu0 0.0
    %1970 = vmatpush.msra.mxu0 0.0
    %1971 = vmatpush.msra.mxu0 0.0
    %1972 = vmatpush.msra.mxu0 0.0
    %1973 = vmatpush.msra.mxu0 0.0
    %1974 = vmatpush.msra.mxu0 0.0
    %1975 = vmatpush.msra.mxu0 0.0
    %1976 = vmatpush.msra.mxu0 0.0
    %1977 = vmatpush.msra.mxu0 0.0
    %1978 = vmatpush.msra.mxu0 0.0
    %1979 = vmatpush.msra.mxu0 0.0
    %1980 = vmatpush.msra.mxu0 %v1965
    %1981 = vmatpush.msra.mxu0 %v1964
    %1982 = vmatmul.f32.gmra.mxu0 %v1441
    %v1983 = vpop.f32.mrf.mxu0
    %v1984 = vadd.f32 0.0, %v1983
    %1985 = vmatmul.f32.gmra.mxu0 %v1444
    %v1986 = vpop.f32.mrf.mxu0
    %v1987 = vadd.f32 0.0, %v1986
    %1988 = vmatmul.f32.gmra.mxu0 %v1447
    %v1989 = vpop.f32.mrf.mxu0
    %v1990 = vadd.f32 0.0, %v1989
    %1991 = vdwg.mxu0
    %v1992 = vadd.f32 %v1960, %v1984
    %v1993 = vadd.f32 %v1961, %v1987
    %v1994 = vadd.f32 %v1962, %v1990
    %s1995 = scalar_lea.vmem %s53, 2
    %v1996 = vld [vmem:[%s1995] sm:$0x1]
    %s1997 = scalar_lea.vmem %s55, 2
    %v1998 = vld [vmem:[%s1997] sm:$0x1]
    %v2000 = vsel %vm185, %v1996, 0
    %v2003 = vsel %vm185, %v1992, 0
    %v2006 = vsel %vm185, %v1993, 0
    %v2009 = vsel %vm185, %v1994, 0
    %2011 = vmatpush.xpose.msra.mxu0 0.0
    %2012 = vmatpush.xpose.msra.mxu0 0.0
    %2013 = vmatpush.xpose.msra.mxu0 0.0
    %2014 = vmatpush.xpose.msra.mxu0 0.0
    %2015 = vmatpush.xpose.msra.mxu0 0.0
    %2016 = vmatpush.xpose.msra.mxu0 0.0
    %2017 = vmatpush.xpose.msra.mxu0 0.0
    %2018 = vmatpush.xpose.msra.mxu0 0.0
    %2019 = vmatpush.xpose.msra.mxu0 0.0
    %2020 = vmatpush.xpose.msra.mxu0 0.0
    %2021 = vmatpush.xpose.msra.mxu0 0.0
    %2022 = vmatpush.xpose.msra.mxu0 0.0
    %2023 = vmatpush.xpose.msra.mxu0 0.0
    %2024 = vmatpush.xpose.msra.mxu0 %v2009
    %2025 = vmatpush.xpose.msra.mxu0 %v2006
    %2026 = vmatpush.xpose.msra.mxu0 %v2003
    %2027 = vmatmul.f32.gmra.mxu0 %v2000
    %v2028 = vpop.f32.mrf.mxu0
    %v2029 = vadd.f32 0.0, %v2028
    %2030 = vdwg.mxu0
    %v2032 = vperm.slane %v1998, 0
    %v2034 = vmul.f32 %v1992, %v2032
    %v2035 = vmul.f32 %v1993, %v2032
    %v2036 = vmul.f32 %v1994, %v2032
    %v2037 = vsel %vm185, %v2034, 0.0
    %2038 = vadd.xlane.f32.xlu0 %v2037
    %v2039 = vpop.xlane.xlu0 %2038
    %v2040 = vsel %vm185, %v2035, 0.0
    %2041 = vadd.xlane.f32.xlu0 %v2040
    %v2042 = vpop.xlane.xlu0 %2041
    %v2043 = vsel %vm1524, %v2036, 0.0
    %2044 = vadd.xlane.f32.xlu0 %v2043
    %v2045 = vpop.xlane.xlu0 %2044
    %v2046 = vperm.slane %v2029, 0
    %v2047 = vadd.f32 %v2039, %v2046
    %v2048 = vadd.f32 %v2042, %v2046
    %v2049 = vadd.f32 %v2045, %v2046
    %vm2050 = vcmp.gt.f32.partialorder %v2047, 0.0
    %vm2051 = vcmp.gt.f32.partialorder %v2048, 0.0
    %vm2052 = vcmp.gt.f32.partialorder %v2049, 0.0
    %v2053 = vmul.f32 %v2047, 0.2
    %v2054 = vmul.f32 %v2048, 0.2
    %v2055 = vmul.f32 %v2049, 0.2
    %v2056 = vsel %vm2050, %v2047, %v2053
    %v2057 = vsel %vm2051, %v2048, %v2054
    %v2058 = vsel %vm2052, %v2049, %v2055
    %v2059 = vadd.f32 %v2056, %v615
    %v2060 = vadd.f32 %v2057, %v616
    %v2061 = vadd.f32 %v2058, %v617
    %v2062 = vsel %vm720, %v2059, -inf
    %2063 = vmax.xlane.f32.xlu0 %v2062
    %v2064 = vpop.xlane.xlu0 %2063
    %v2065 = vsel %vm720, %v2060, -inf
    %2066 = vmax.xlane.f32.xlu0 %v2065
    %v2067 = vpop.xlane.xlu0 %2066
    %v2068 = vsel %vm727, %v2061, -inf
    %2069 = vmax.xlane.f32.xlu0 %v2068
    %v2070 = vpop.xlane.xlu0 %2069
    %v2071 = vsub.f32 %v2059, %v2064
    %v2072 = vsub.f32 %v2060, %v2067
    %v2073 = vsub.f32 %v2061, %v2070
    %v2074 = vmul.f32 %v2071, 1.442695
    %v2075 = vpow.pop %v2074
    %v2076 = vmul.f32 %v2072, 1.442695
    %v2077 = vpow.pop %v2076
    %v2078 = vmul.f32 %v2073, 1.442695
    %v2079 = vpow.pop %v2078
    %v2080 = vsel %vm720, %v2075, 0.0
    %2081 = vadd.xlane.f32.xlu0 %v2080
    %v2082 = vpop.xlane.xlu0 %2081
    %v2083 = vsel %vm720, %v2077, 0.0
    %2084 = vadd.xlane.f32.xlu0 %v2083
    %v2085 = vpop.xlane.xlu0 %2084
    %v2086 = vsel %vm727, %v2079, 0.0
    %2087 = vadd.xlane.f32.xlu0 %v2086
    %v2088 = vpop.xlane.xlu0 %2087
    %v2089 = vrcp.pop %v2082
    %v2090 = vrcp.pop %v2085
    %v2091 = vrcp.pop %v2088
    %v2092 = vmul.f32 %v2075, %v2089
    %v2093 = vmul.f32 %v2077, %v2090
    %v2094 = vmul.f32 %v2079, %v2091
    %v2096 = vsel %vm720, %v2092, 0
    %v2099 = vsel %vm720, %v2093, 0
    %v2102 = vsel %vm720, %v2094, 0
    %v2104 = vsel %vm226, %v1994, 0
    %2106 = vmatpush.msra.mxu0 0.0
    %2107 = vmatpush.msra.mxu0 0.0
    %2108 = vmatpush.msra.mxu0 0.0
    %2109 = vmatpush.msra.mxu0 0.0
    %2110 = vmatpush.msra.mxu0 0.0
    %2111 = vmatpush.msra.mxu0 0.0
    %2112 = vmatpush.msra.mxu0 0.0
    %2113 = vmatpush.msra.mxu0 0.0
    %2114 = vmatpush.msra.mxu0 0.0
    %2115 = vmatpush.msra.mxu0 0.0
    %2116 = vmatpush.msra.mxu0 0.0
    %2117 = vmatpush.msra.mxu0 0.0
    %2118 = vmatpush.msra.mxu0 0.0
    %2119 = vmatpush.msra.mxu0 %v2104
    %2120 = vmatpush.msra.mxu0 %v1993
    %2121 = vmatpush.msra.mxu0 %v1992
    %2122 = vmatmul.f32.gmra.mxu0 %v2096
    %v2123 = vpop.f32.mrf.mxu0
    %v2124 = vadd.f32 0.0, %v2123
    %2125 = vmatmul.f32.gmra.mxu0 %v2099
    %v2126 = vpop.f32.mrf.mxu0
    %v2127 = vadd.f32 0.0, %v2126
    %2128 = vmatmul.f32.gmra.mxu0 %v2102
    %v2129 = vpop.f32.mrf.mxu0
    %v2130 = vadd.f32 0.0, %v2129
    %2131 = vdwg.mxu0
    %v2132 = vadd.f32 %v1865, %v2124
    %v2133 = vadd.f32 %v1868, %v2127
    %v2134 = vadd.f32 %v1871, %v2130
    %s2135 = scalar_lea.vmem %s51, 48
    %v2136 = vld [vmem:[%s2135] sm:$0xff]
    %v2137 = vld [vmem:[%s2135 + $0x8] sm:$0xff]
    %s2138 = scalar_lea.vmem %s51, 112
    %v2139 = vld [vmem:[%s2138] sm:$0xff]
    %v2140 = vld [vmem:[%s2138 + $0x8] sm:$0xff]
    %2141 = vmatpush.msra.mxu0 0.0
    %2142 = vmatpush.msra.mxu0 0.0
    %2143 = vmatpush.msra.mxu0 0.0
    %2144 = vmatpush.msra.mxu0 0.0
    %2145 = vmatpush.msra.mxu0 0.0
    %2146 = vmatpush.msra.mxu0 0.0
    %2147 = vmatpush.msra.mxu0 0.0
    %2148 = vmatpush.msra.mxu0 0.0
    %2149 = vmatpush.msra.mxu0 0.0
    %2150 = vmatpush.msra.mxu0 0.0
    %2151 = vmatpush.msra.mxu0 0.0
    %2152 = vmatpush.msra.mxu0 0.0
    %2153 = vmatpush.msra.mxu0 0.0
    %2154 = vmatpush.msra.mxu0 0.0
    %2155 = vmatpush.msra.mxu0 %v2140
    %2156 = vmatpush.msra.mxu0 %v2139
    %2157 = vmatmul.f32.gmra.mxu0 %v1327
    %v2158 = vpop.f32.mrf.mxu0
    %v2159 = vadd.f32 0.0, %v2158
    %2160 = vmatmul.f32.gmra.mxu0 %v1330
    %v2161 = vpop.f32.mrf.mxu0
    %v2162 = vadd.f32 0.0, %v2161
    %2163 = vmatmul.f32.gmra.mxu0 %v1333
    %v2164 = vpop.f32.mrf.mxu0
    %v2165 = vadd.f32 0.0, %v2164
    %2166 = vdwg.mxu0
    %2167 = vmatpush.msra.mxu0 0.0
    %2168 = vmatpush.msra.mxu0 0.0
    %2169 = vmatpush.msra.mxu0 0.0
    %2170 = vmatpush.msra.mxu0 0.0
    %2171 = vmatpush.msra.mxu0 0.0
    %2172 = vmatpush.msra.mxu0 0.0
    %2173 = vmatpush.msra.mxu0 0.0
    %2174 = vmatpush.msra.mxu0 0.0
    %2175 = vmatpush.msra.mxu0 0.0
    %2176 = vmatpush.msra.mxu0 0.0
    %2177 = vmatpush.msra.mxu0 0.0
    %2178 = vmatpush.msra.mxu0 0.0
    %2179 = vmatpush.msra.mxu0 0.0
    %2180 = vmatpush.msra.mxu0 0.0
    %2181 = vmatpush.msra.mxu0 %v2137
    %2182 = vmatpush.msra.mxu0 %v2136
    %2183 = vmatmul.f32.gmra.mxu0 %v1362
    %v2184 = vpop.f32.mrf.mxu0
    %v2185 = vadd.f32 %v2159, %v2184
    %2186 = vmatmul.f32.gmra.mxu0 %v1365
    %v2187 = vpop.f32.mrf.mxu0
    %v2188 = vadd.f32 %v2162, %v2187
    %2189 = vmatmul.f32.gmra.mxu0 %v1368
    %v2190 = vpop.f32.mrf.mxu0
    %v2191 = vadd.f32 %v2165, %v2190
    %2192 = vdwg.mxu0
    %s2193 = scalar_lea.vmem %s51, 176
    %v2194 = vld [vmem:[%s2193] sm:$0xff]
    %v2195 = vld [vmem:[%s2193 + $0x8] sm:$0xff]
    %2196 = vmatpush.msra.mxu0 0.0
    %2197 = vmatpush.msra.mxu0 0.0
    %2198 = vmatpush.msra.mxu0 0.0
    %2199 = vmatpush.msra.mxu0 0.0
    %2200 = vmatpush.msra.mxu0 0.0
    %2201 = vmatpush.msra.mxu0 0.0
    %2202 = vmatpush.msra.mxu0 0.0
    %2203 = vmatpush.msra.mxu0 0.0
    %2204 = vmatpush.msra.mxu0 0.0
    %2205 = vmatpush.msra.mxu0 0.0
    %2206 = vmatpush.msra.mxu0 0.0
    %2207 = vmatpush.msra.mxu0 0.0
    %2208 = vmatpush.msra.mxu0 0.0
    %2209 = vmatpush.msra.mxu0 0.0
    %2210 = vmatpush.msra.mxu0 %v2195
    %2211 = vmatpush.msra.mxu0 %v2194
    %2212 = vmatmul.f32.gmra.mxu0 %v1400
    %v2213 = vpop.f32.mrf.mxu0
    %v2214 = vadd.f32 0.0, %v2213
    %2215 = vmatmul.f32.gmra.mxu0 %v1403
    %v2216 = vpop.f32.mrf.mxu0
    %v2217 = vadd.f32 0.0, %v2216
    %2218 = vmatmul.f32.gmra.mxu0 %v1406
    %v2219 = vpop.f32.mrf.mxu0
    %v2220 = vadd.f32 0.0, %v2219
    %2221 = vdwg.mxu0
    %v2222 = vadd.f32 %v2185, %v2214
    %v2223 = vadd.f32 %v2188, %v2217
    %v2224 = vadd.f32 %v2191, %v2220
    %s2225 = scalar_lea.vmem %s51, 240
    %v2226 = vld [vmem:[%s2225] sm:$0xff]
    %v2227 = vld [vmem:[%s2225 + $0x8] sm:$0xff]
    %2228 = vmatpush.msra.mxu0 0.0
    %2229 = vmatpush.msra.mxu0 0.0
    %2230 = vmatpush.msra.mxu0 0.0
    %2231 = vmatpush.msra.mxu0 0.0
    %2232 = vmatpush.msra.mxu0 0.0
    %2233 = vmatpush.msra.mxu0 0.0
    %2234 = vmatpush.msra.mxu0 0.0
    %2235 = vmatpush.msra.mxu0 0.0
    %2236 = vmatpush.msra.mxu0 0.0
    %2237 = vmatpush.msra.mxu0 0.0
    %2238 = vmatpush.msra.mxu0 0.0
    %2239 = vmatpush.msra.mxu0 0.0
    %2240 = vmatpush.msra.mxu0 0.0
    %2241 = vmatpush.msra.mxu0 0.0
    %2242 = vmatpush.msra.mxu0 %v2227
    %2243 = vmatpush.msra.mxu0 %v2226
    %2244 = vmatmul.f32.gmra.mxu0 %v1441
    %v2245 = vpop.f32.mrf.mxu0
    %v2246 = vadd.f32 0.0, %v2245
    %2247 = vmatmul.f32.gmra.mxu0 %v1444
    %v2248 = vpop.f32.mrf.mxu0
    %v2249 = vadd.f32 0.0, %v2248
    %2250 = vmatmul.f32.gmra.mxu0 %v1447
    %v2251 = vpop.f32.mrf.mxu0
    %v2252 = vadd.f32 0.0, %v2251
    %2253 = vdwg.mxu0
    %v2254 = vadd.f32 %v2222, %v2246
    %v2255 = vadd.f32 %v2223, %v2249
    %v2256 = vadd.f32 %v2224, %v2252
    %s2257 = scalar_lea.vmem %s53, 3
    %v2258 = vld [vmem:[%s2257] sm:$0x1]
    %s2259 = scalar_lea.vmem %s55, 3
    %v2260 = vld [vmem:[%s2259] sm:$0x1]
    %v2262 = vsel %vm185, %v2258, 0
    %v2265 = vsel %vm185, %v2254, 0
    %v2268 = vsel %vm185, %v2255, 0
    %v2271 = vsel %vm185, %v2256, 0
    %2273 = vmatpush.xpose.msra.mxu0 0.0
    %2274 = vmatpush.xpose.msra.mxu0 0.0
    %2275 = vmatpush.xpose.msra.mxu0 0.0
    %2276 = vmatpush.xpose.msra.mxu0 0.0
    %2277 = vmatpush.xpose.msra.mxu0 0.0
    %2278 = vmatpush.xpose.msra.mxu0 0.0
    %2279 = vmatpush.xpose.msra.mxu0 0.0
    %2280 = vmatpush.xpose.msra.mxu0 0.0
    %2281 = vmatpush.xpose.msra.mxu0 0.0
    %2282 = vmatpush.xpose.msra.mxu0 0.0
    %2283 = vmatpush.xpose.msra.mxu0 0.0
    %2284 = vmatpush.xpose.msra.mxu0 0.0
    %2285 = vmatpush.xpose.msra.mxu0 0.0
    %2286 = vmatpush.xpose.msra.mxu0 %v2271
    %2287 = vmatpush.xpose.msra.mxu0 %v2268
    %2288 = vmatpush.xpose.msra.mxu0 %v2265
    %2289 = vmatmul.f32.gmra.mxu0 %v2262
    %v2290 = vpop.f32.mrf.mxu0
    %v2291 = vadd.f32 0.0, %v2290
    %2292 = vdwg.mxu0
    %v2294 = vperm.slane %v2260, 0
    %v2296 = vmul.f32 %v2254, %v2294
    %v2297 = vmul.f32 %v2255, %v2294
    %v2298 = vmul.f32 %v2256, %v2294
    %v2299 = vsel %vm185, %v2296, 0.0
    %2300 = vadd.xlane.f32.xlu0 %v2299
    %v2301 = vpop.xlane.xlu0 %2300
    %v2302 = vsel %vm185, %v2297, 0.0
    %2303 = vadd.xlane.f32.xlu0 %v2302
    %v2304 = vpop.xlane.xlu0 %2303
    %v2305 = vsel %vm1524, %v2298, 0.0
    %2306 = vadd.xlane.f32.xlu0 %v2305
    %v2307 = vpop.xlane.xlu0 %2306
    %v2308 = vperm.slane %v2291, 0
    %v2309 = vadd.f32 %v2301, %v2308
    %v2310 = vadd.f32 %v2304, %v2308
    %v2311 = vadd.f32 %v2307, %v2308
    %vm2312 = vcmp.gt.f32.partialorder %v2309, 0.0
    %vm2313 = vcmp.gt.f32.partialorder %v2310, 0.0
    %vm2314 = vcmp.gt.f32.partialorder %v2311, 0.0
    %v2315 = vmul.f32 %v2309, 0.2
    %v2316 = vmul.f32 %v2310, 0.2
    %v2317 = vmul.f32 %v2311, 0.2
    %v2318 = vsel %vm2312, %v2309, %v2315
    %v2319 = vsel %vm2313, %v2310, %v2316
    %v2320 = vsel %vm2314, %v2311, %v2317
    %v2321 = vadd.f32 %v2318, %v615
    %v2322 = vadd.f32 %v2319, %v616
    %v2323 = vadd.f32 %v2320, %v617
    %v2324 = vsel %vm720, %v2321, -inf
    %2325 = vmax.xlane.f32.xlu0 %v2324
    %v2326 = vpop.xlane.xlu0 %2325
    %v2327 = vsel %vm720, %v2322, -inf
    %2328 = vmax.xlane.f32.xlu0 %v2327
    %v2329 = vpop.xlane.xlu0 %2328
    %v2330 = vsel %vm727, %v2323, -inf
    %2331 = vmax.xlane.f32.xlu0 %v2330
    %v2332 = vpop.xlane.xlu0 %2331
    %v2333 = vsub.f32 %v2321, %v2326
    %v2334 = vsub.f32 %v2322, %v2329
    %v2335 = vsub.f32 %v2323, %v2332
    %v2336 = vmul.f32 %v2333, 1.442695
    %v2337 = vpow.pop %v2336
    %v2338 = vmul.f32 %v2334, 1.442695
    %v2339 = vpow.pop %v2338
    %v2340 = vmul.f32 %v2335, 1.442695
    %v2341 = vpow.pop %v2340
    %v2342 = vsel %vm720, %v2337, 0.0
    %2343 = vadd.xlane.f32.xlu0 %v2342
    %v2344 = vpop.xlane.xlu0 %2343
    %v2345 = vsel %vm720, %v2339, 0.0
    %2346 = vadd.xlane.f32.xlu0 %v2345
    %v2347 = vpop.xlane.xlu0 %2346
    %v2348 = vsel %vm727, %v2341, 0.0
    %2349 = vadd.xlane.f32.xlu0 %v2348
    %v2350 = vpop.xlane.xlu0 %2349
    %v2351 = vrcp.pop %v2344
    %v2352 = vrcp.pop %v2347
    %v2353 = vrcp.pop %v2350
    %v2354 = vmul.f32 %v2337, %v2351
    %v2355 = vmul.f32 %v2339, %v2352
    %v2356 = vmul.f32 %v2341, %v2353
    %v2358 = vsel %vm720, %v2354, 0
    %v2361 = vsel %vm720, %v2355, 0
    %v2364 = vsel %vm720, %v2356, 0
    %v2366 = vsel %vm226, %v2256, 0
    %2368 = vmatpush.msra.mxu0 0.0
    %2369 = vmatpush.msra.mxu0 0.0
    %2370 = vmatpush.msra.mxu0 0.0
    %2371 = vmatpush.msra.mxu0 0.0
    %2372 = vmatpush.msra.mxu0 0.0
    %2373 = vmatpush.msra.mxu0 0.0
    %2374 = vmatpush.msra.mxu0 0.0
    %2375 = vmatpush.msra.mxu0 0.0
    %2376 = vmatpush.msra.mxu0 0.0
    %2377 = vmatpush.msra.mxu0 0.0
    %2378 = vmatpush.msra.mxu0 0.0
    %2379 = vmatpush.msra.mxu0 0.0
    %2380 = vmatpush.msra.mxu0 0.0
    %2381 = vmatpush.msra.mxu0 %v2366
    %2382 = vmatpush.msra.mxu0 %v2255
    %2383 = vmatpush.msra.mxu0 %v2254
    %2384 = vmatmul.f32.gmra.mxu0 %v2358
    %v2385 = vpop.f32.mrf.mxu0
    %v2386 = vadd.f32 0.0, %v2385
    %2387 = vmatmul.f32.gmra.mxu0 %v2361
    %v2388 = vpop.f32.mrf.mxu0
    %v2389 = vadd.f32 0.0, %v2388
    %2390 = vmatmul.f32.gmra.mxu0 %v2364
    %v2391 = vpop.f32.mrf.mxu0
    %v2392 = vadd.f32 0.0, %v2391
    %2393 = vdwg.mxu0
    %v2394 = vadd.f32 %v2132, %v2386
    %v2395 = vadd.f32 %v2133, %v2389
    %v2396 = vadd.f32 %v2134, %v2392
    %v2397 = vmul.f32 %v2394, 0.25
    %v2398 = vmul.f32 %v2395, 0.25
    %v2399 = vmul.f32 %v2396, 0.25
    %v2400 = vld [vmem:[%s57] sm:$0x1]
    %v2402 = vperm.slane %v2400, 0
    %v2404 = vadd.f32 %v2397, %v2402
    %v2405 = vadd.f32 %v2398, %v2402
    %v2406 = vadd.f32 %v2399, %v2402
    %v2407 = vtanh.pop %v2404
    %v2408 = vtanh.pop %v2405
    %v2409 = vtanh.pop %v2406
    %v2410 = vld [vmem:[%s59] sm:$0xff]
    %v2411 = vld [vmem:[%s59 + $0x8] sm:$0xff]
    %v2412 = vld [vmem:[%s61] sm:$0xff]
    %v2414 = vsel %vm185, %v2408, 0
    %v2417 = vsel %vm185, %v2409, 0
    %2419 = vmatpush.msra.mxu0 0.0
    %2420 = vmatpush.msra.mxu0 0.0
    %2421 = vmatpush.msra.mxu0 0.0
    %2422 = vmatpush.msra.mxu0 0.0
    %2423 = vmatpush.msra.mxu0 0.0
    %2424 = vmatpush.msra.mxu0 0.0
    %2425 = vmatpush.msra.mxu0 0.0
    %2426 = vmatpush.msra.mxu0 0.0
    %2427 = vmatpush.msra.mxu0 0.0
    %2428 = vmatpush.msra.mxu0 0.0
    %2429 = vmatpush.msra.mxu0 0.0
    %2430 = vmatpush.msra.mxu0 0.0
    %2431 = vmatpush.msra.mxu0 0.0
    %2432 = vmatpush.msra.mxu0 0.0
    %2433 = vmatpush.msra.mxu0 0.0
    %2434 = vmatpush.msra.mxu0 %v2412
    %2435 = vmatmul.f32.gmra.mxu0 %v2414
    %v2436 = vpop.f32.mrf.mxu0
    %v2437 = vadd.f32 0.0, %v2436
    %2438 = vmatmul.f32.gmra.mxu0 %v2417
    %v2439 = vpop.f32.mrf.mxu0
    %v2440 = vadd.f32 0.0, %v2439
    %2441 = vdwg.mxu0
    %2442 = vmatpush.msra.mxu0 0.0
    %2443 = vmatpush.msra.mxu0 0.0
    %2444 = vmatpush.msra.mxu0 0.0
    %2445 = vmatpush.msra.mxu0 0.0
    %2446 = vmatpush.msra.mxu0 0.0
    %2447 = vmatpush.msra.mxu0 0.0
    %2448 = vmatpush.msra.mxu0 0.0
    %2449 = vmatpush.msra.mxu0 0.0
    %2450 = vmatpush.msra.mxu0 0.0
    %2451 = vmatpush.msra.mxu0 0.0
    %2452 = vmatpush.msra.mxu0 0.0
    %2453 = vmatpush.msra.mxu0 0.0
    %2454 = vmatpush.msra.mxu0 0.0
    %2455 = vmatpush.msra.mxu0 0.0
    %2456 = vmatpush.msra.mxu0 %v2411
    %2457 = vmatpush.msra.mxu0 %v2410
    %2458 = vmatmul.f32.gmra.mxu0 %v624
    %v2459 = vpop.f32.mrf.mxu0
    %v2460 = vadd.f32 %v2437, %v2459
    %2461 = vmatmul.f32.gmra.mxu0 %v627
    %v2462 = vpop.f32.mrf.mxu0
    %v2463 = vadd.f32 %v2440, %v2462
    %2464 = vdwg.mxu0
    %v2465 = vld [vmem:[%s63] sm:$0x1]
    %v2467 = vperm.slane %v2465, 0
    %v2469 = vadd.f32 %v2460, %v2467
    %v2470 = vadd.f32 %v2463, %v2467
    %v2471 = vtanh.pop %v2469
    %v2472 = vtanh.pop %v2470
    %v2473 = vld [vmem:[%s65] sm:$0xff]
    %v2474 = vld [vmem:[%s65 + $0x8] sm:$0xff]
    %v2475 = vld [vmem:[#allocation2] sm:$0x1]
    %v2477 = vperm.slane %v2475, 0
    %v2480 = vsel %vm255, %v2471, 0
    %v2483 = vsel %vm255, %v2472, 0
    %2485 = vmatpush.msra.mxu0 0.0
    %2486 = vmatpush.msra.mxu0 0.0
    %2487 = vmatpush.msra.mxu0 0.0
    %2488 = vmatpush.msra.mxu0 0.0
    %2489 = vmatpush.msra.mxu0 0.0
    %2490 = vmatpush.msra.mxu0 0.0
    %2491 = vmatpush.msra.mxu0 0.0
    %2492 = vmatpush.msra.mxu0 0.0
    %2493 = vmatpush.msra.mxu0 0.0
    %2494 = vmatpush.msra.mxu0 0.0
    %2495 = vmatpush.msra.mxu0 0.0
    %2496 = vmatpush.msra.mxu0 0.0
    %2497 = vmatpush.msra.mxu0 0.0
    %2498 = vmatpush.msra.mxu0 0.0
    %2499 = vmatpush.msra.mxu0 %v2474
    %2500 = vmatpush.msra.mxu0 %v2473
    %2501 = vmatmul.f32.gmra.mxu0 %v2480
    %v2502 = vpop.f32.mrf.mxu0
    %v2503 = vadd.f32 %v2477, %v2502
    %2504 = vmatmul.f32.gmra.mxu0 %v2483
    %v2505 = vpop.f32.mrf.mxu0
    %v2506 = vadd.f32 %v2477, %v2505
    %2507 = vdwg.mxu0
    %vm2508 = vcmask 7168
    %2509 = vst.msk [vmem:[%s79] sm:$0xff] %vm2508, %v2503
    %vm2510 = vcmask 3072
    %2511 = vst.msk [vmem:[%s79 + $0x8] sm:$0xf] %vm2510, %v2506
    %v2512 = vld [vmem:[%s69] sm:$0xff]
    %v2513 = vld [vmem:[%s69 + $0x8] sm:$0xff]
    %v2514 = vld [vmem:[%s71] sm:$0xff]
    %v2516 = vsel %vm185, %v2407, 0
    %2518 = vmatpush.msra.mxu0 0.0
    %2519 = vmatpush.msra.mxu0 0.0
    %2520 = vmatpush.msra.mxu0 0.0
    %2521 = vmatpush.msra.mxu0 0.0
    %2522 = vmatpush.msra.mxu0 0.0
    %2523 = vmatpush.msra.mxu0 0.0
    %2524 = vmatpush.msra.mxu0 0.0
    %2525 = vmatpush.msra.mxu0 0.0
    %2526 = vmatpush.msra.mxu0 0.0
    %2527 = vmatpush.msra.mxu0 0.0
    %2528 = vmatpush.msra.mxu0 0.0
    %2529 = vmatpush.msra.mxu0 0.0
    %2530 = vmatpush.msra.mxu0 0.0
    %2531 = vmatpush.msra.mxu0 0.0
    %2532 = vmatpush.msra.mxu0 0.0
    %2533 = vmatpush.msra.mxu0 %v2514
    %2534 = vmatmul.f32.gmra.mxu0 %v2516
    %v2535 = vpop.f32.mrf.mxu0
    %v2536 = vadd.f32 0.0, %v2535
    %2537 = vdwg.mxu0
    %2538 = vmatpush.msra.mxu0 0.0
    %2539 = vmatpush.msra.mxu0 0.0
    %2540 = vmatpush.msra.mxu0 0.0
    %2541 = vmatpush.msra.mxu0 0.0
    %2542 = vmatpush.msra.mxu0 0.0
    %2543 = vmatpush.msra.mxu0 0.0
    %2544 = vmatpush.msra.mxu0 0.0
    %2545 = vmatpush.msra.mxu0 0.0
    %2546 = vmatpush.msra.mxu0 0.0
    %2547 = vmatpush.msra.mxu0 0.0
    %2548 = vmatpush.msra.mxu0 0.0
    %2549 = vmatpush.msra.mxu0 0.0
    %2550 = vmatpush.msra.mxu0 0.0
    %2551 = vmatpush.msra.mxu0 0.0
    %2552 = vmatpush.msra.mxu0 %v2513
    %2553 = vmatpush.msra.mxu0 %v2512
    %2554 = vmatmul.f32.gmra.mxu0 %v621
    %v2555 = vpop.f32.mrf.mxu0
    %v2556 = vadd.f32 %v2536, %v2555
    %2557 = vdwg.mxu0
    %v2558 = vld [vmem:[%s73] sm:$0x1]
    %v2560 = vperm.slane %v2558, 0
    %v2562 = vadd.f32 %v2556, %v2560
    %v2563 = vtanh.pop %v2562
    %v2564 = vld [vmem:[%s75] sm:$0xff]
    %v2565 = vld [vmem:[%s75 + $0x8] sm:$0xff]
    %v2566 = vld [vmem:[#allocation3] sm:$0x1]
    %v2568 = vperm.slane %v2566, 0
    %v2571 = vsel %vm255, %v2563, 0
    %2573 = vmatpush.msra.mxu0 0.0
    %2574 = vmatpush.msra.mxu0 0.0
    %2575 = vmatpush.msra.mxu0 0.0
    %2576 = vmatpush.msra.mxu0 0.0
    %2577 = vmatpush.msra.mxu0 0.0
    %2578 = vmatpush.msra.mxu0 0.0
    %2579 = vmatpush.msra.mxu0 0.0
    %2580 = vmatpush.msra.mxu0 0.0
    %2581 = vmatpush.msra.mxu0 0.0
    %2582 = vmatpush.msra.mxu0 0.0
    %2583 = vmatpush.msra.mxu0 0.0
    %2584 = vmatpush.msra.mxu0 0.0
    %2585 = vmatpush.msra.mxu0 0.0
    %2586 = vmatpush.msra.mxu0 0.0
    %2587 = vmatpush.msra.mxu0 %v2565
    %2588 = vmatpush.msra.mxu0 %v2564
    %2589 = vmatmul.f32.gmra.mxu0 %v2571
    %v2590 = vpop.f32.mrf.mxu0
    %v2591 = vadd.f32 %v2568, %v2590
    %2592 = vdwg.mxu0
    %2593 = vst.msk [vmem:[%s85] sm:$0xff] %vm2508, %v2591
    %2594 = vst.msk [vmem:[#allocation4] sm:$0xff] %vm255, %v423
    %2595 = vst.msk [vmem:[#allocation4 + $0x8] sm:$0xf] %vm257, %v424
    %2596 = vst.msk [vmem:[%s83] sm:$0xff] %vm185, %v2408
    %2597 = vst.msk [vmem:[%s83 + $0x8] sm:$0xf] %vm1524, %v2409
    %2598 = vst.msk [vmem:[#allocation6] sm:$0xff] %vm255, %v614
    %2599 = vst.msk [vmem:[#allocation8] sm:$0xff] %vm185, %v2407
    // Predicated region
    $region158: #{tpu_custom_call.1} parent=1 // pred_check
      _
    $region159: #{tpu_custom_call.1} parent=1 // pred_check_branch
      %2601 = sbr.rel (0) target = $region161
    $region160: #{tpu_custom_call.1} parent=1 // pred_region
      _
    $region161: #{tpu_custom_call.1} parent=1 // pred_fallthru
      _
    // Predicated region
    $region162: #{tpu_custom_call.1} parent=1 // pred_check
      _
    $region163: #{tpu_custom_call.1} parent=1 // pred_check_branch
      %2603 = sbr.rel (0) target = $region165
    $region164: #{tpu_custom_call.1} parent=1 // pred_region
      %2605 = vsyncadd [#allocation5], 0
      %s2606 = sshll.u32 [#allocation4], 4
      %s2607 = int_to_ptr.vmem [resolvable:$true] %s2606
      %s2608 = sshll.u32 %s81, 4
      %s2609 = int_to_ptr.hbm [resolvable:$true] %s2608
      %2614 = dma.vmem_to_hbm [thread:$0]  %s2607, 256, %s2609, [#allocation5], 128, 128, 8
    $region165: #{tpu_custom_call.1} parent=1 // pred_fallthru
      _
    // Predicated region
    $region166: #{tpu_custom_call.1} parent=1 // pred_check
      _
    $region167: #{tpu_custom_call.1} parent=1 // pred_check_branch
      %2616 = sbr.rel (0) target = $region169
    $region168: #{tpu_custom_call.1} parent=1 // pred_region
      _
    $region169: #{tpu_custom_call.1} parent=1 // pred_fallthru
      _
    // Predicated region
    $region170: #{tpu_custom_call.1} parent=1 // pred_check
      _
    $region171: #{tpu_custom_call.1} parent=1 // pred_check_branch
      %2618 = sbr.rel (0) target = $region173
    $region172: #{tpu_custom_call.1} parent=1 // pred_region
      _
    $region173: #{tpu_custom_call.1} parent=1 // pred_fallthru
      _
    // Predicated region
    $region174: #{tpu_custom_call.1} parent=1 // pred_check
      _
    $region175: #{tpu_custom_call.1} parent=1 // pred_check_branch
      %2620 = sbr.rel (0) target = $region177
    $region176: #{tpu_custom_call.1} parent=1 // pred_region
      %2622 = vsyncadd [#allocation7], 0
      %s2624 = sshll.u32 [#allocation6], 4
      %s2625 = int_to_ptr.vmem [resolvable:$true] %s2624
      %s2626 = sshll.u32 %s87, 4
      %s2627 = int_to_ptr.hbm [resolvable:$true] %s2626
      %2629 = dma.vmem_to_hbm [thread:$0]  %s2625, 128, %s2627, [#allocation7]
    $region177: #{tpu_custom_call.1} parent=1 // pred_fallthru
      _
    // Predicated region
    $region178: #{tpu_custom_call.1} parent=1 // pred_check
      _
    $region179: #{tpu_custom_call.1} parent=1 // pred_check_branch
      %2631 = sbr.rel (0) target = $region181
    $region180: #{tpu_custom_call.1} parent=1 // pred_region
      %2633 = vsyncadd [#allocation7], 0
      %s2635 = sshll.u32 [#allocation8], 4
      %s2636 = int_to_ptr.vmem [resolvable:$true] %s2635
      %s2637 = sshll.u32 %s89, 4
      %s2638 = int_to_ptr.hbm [resolvable:$true] %s2637
      %2640 = dma.vmem_to_hbm [thread:$0]  %s2636, 128, %s2638, [#allocation7]
    $region181: #{tpu_custom_call.1} parent=1 // pred_fallthru
      _
    // Predicated region
    $region182: #{tpu_custom_call.1} parent=1 // pred_check
      _
    $region183: #{tpu_custom_call.1} parent=1 // pred_check_branch
      %2642 = sbr.rel (0) target = $region185
    $region184: #{tpu_custom_call.1} parent=1 // pred_region
      _
    $region185: #{tpu_custom_call.1} parent=1 // pred_fallthru
      _
    // Predicated region
    $region186: #{tpu_custom_call.1} parent=1 // pred_check
      _
    $region187: #{tpu_custom_call.1} parent=1 // pred_check_branch
      %2644 = sbr.rel (0) target = $region189
    $region188: #{tpu_custom_call.1} parent=1 // pred_region
      %2646 = dma.done [#allocation5], 256
    $region189: #{tpu_custom_call.1} parent=1 // pred_fallthru
      _
    // Predicated region
    $region190: #{tpu_custom_call.1} parent=1 // pred_check
      _
    $region191: #{tpu_custom_call.1} parent=1 // pred_check_branch
      %2648 = sbr.rel (0) target = $region193
    $region192: #{tpu_custom_call.1} parent=1 // pred_region
      _
    $region193: #{tpu_custom_call.1} parent=1 // pred_fallthru
      _
    // Predicated region
    $region194: #{tpu_custom_call.1} parent=1 // pred_check
      _
    $region195: #{tpu_custom_call.1} parent=1 // pred_check_branch
      %2650 = sbr.rel (0) target = $region197
    $region196: #{tpu_custom_call.1} parent=1 // pred_region
      _
    $region197: #{tpu_custom_call.1} parent=1 // pred_fallthru
      _
    // Predicated region
    $region198: #{tpu_custom_call.1} parent=1 // pred_check
      _
    $region199: #{tpu_custom_call.1} parent=1 // pred_check_branch
      %2652 = sbr.rel (0) target = $region201
    $region200: #{tpu_custom_call.1} parent=1 // pred_region
      %2654 = dma.done [#allocation7], 128
    $region201: #{tpu_custom_call.1} parent=1 // pred_fallthru
      _
    // Predicated region
    $region202: #{tpu_custom_call.1} parent=1 // pred_check
      _
    $region203: #{tpu_custom_call.1} parent=1 // pred_check_branch
      %2656 = sbr.rel (0) target = $region205
    $region204: #{tpu_custom_call.1} parent=1 // pred_region
      %2658 = dma.done [#allocation7], 128
    $region205: #{tpu_custom_call.1} parent=1 // pred_fallthru
      _
    %2659 = vsyncpa [#allocation5], 1
    %2660 = vsyncpa [#allocation7], 1

</llo_original>
